<compile_context>
chip_gen: v5e
topology: v5e:2x2
jax: 0.10.0
libtpu: 0.0.40
codegen_flags: <defaults>
</compile_context>

<pallas_src>
import jax
import jax.numpy as jnp
from jax.experimental import pallas as pl
from jax.experimental.pallas import tpu as pltpu  # noqa: F401  (kept for TPU-specific tuning hooks)

# ----------------------------- small config ---------------------------------
B = 2       # batch
T = 16      # NUM_CLIPS
L = 8       # sentences per batch item (kept equal across batch)
C_IN = 256  # cfg.MODEL.DTF.FEATPOOL.HIDDEN_SIZE
D = 256     # joint_space (d_model)
FF = 1024   # dim_feedforward (as in build_staticnet)
EPS = 1e-5  # torch LayerNorm default

# Row layout of the packed (11, D) parameter slab.
_BB0, _G1, _BE1, _BB1, _GN1, _BN1, _GN2, _BN2, _GN3, _BN3, _BF2 = range(11)


def _layernorm(x, gamma, beta):
    mu = jnp.mean(x, axis=-1, keepdims=True)
    var = jnp.mean(jnp.square(x - mu), axis=-1, keepdims=True)
    return (x - mu) * jax.lax.rsqrt(var + EPS) * gamma + beta


# ----------------------- fused DTF forward kernel ---------------------------
def _dtf_fused_kernel(vid_ref, txt_ref, pos_ref, ln0_ref, vec_ref,
                      w0_ref, w1p_ref, wf1_ref, bf1_ref, wf2_ref,
                      vid_out_ref, txt_out_ref):
    ln0 = ln0_ref[...]                                   # [2, C_IN]
    v = vec_ref[...]                                     # [11, D]

    def row(i):                                          # (1, D) broadcast row
        return v[i:i + 1, :]

    # ---- input_vid_proj layer 0: LayerNorm -> Dropout(id) -> Linear -> ReLU
    x = _layernorm(vid_ref[...], ln0[0:1, :], ln0[1:2, :])          # [B*T, C_IN]
    x = jnp.dot(x, w0_ref[...], preferred_element_type=jnp.float32) + row(_BB0)
    x = jnp.maximum(x, 0.0)
    # ---- input_vid_proj layer 1: LayerNorm -> Dropout(id) -> Linear (no relu)
    x = _layernorm(x, row(_G1), row(_BE1))
    src_vid = jnp.dot(x, w1p_ref[...],
                      preferred_element_type=jnp.float32) + row(_BB1)  # [B*T, D]

    # StaticTemporalNet: purely row-wise along D, so one pass over all
    # B*(T+L) rows (vid rows first, then txt rows) is row-for-row identical to
    # the reference's per-item concat([src_vid_i, src_txt_i]) path.
    src = jnp.concatenate([src_vid, txt_ref[...]], axis=0)          # [B*(T+L), D]
    src2 = _layernorm(src, row(_GN1), row(_BN1)) + pos_ref[...]     # norm1 + pos
    src = src + src2                                                # dropout1 = id
    src2 = _layernorm(src, row(_GN2), row(_BN2))                    # norm2
    h = jnp.dot(src2, wf1_ref[...],
                preferred_element_type=jnp.float32) + bf1_ref[...]  # linear1
    h = jnp.maximum(h, 0.0)                                         # relu
    src2 = jnp.dot(h, wf2_ref[...],
                   preferred_element_type=jnp.float32) + row(_BF2)  # linear2
    src = src + src2                                                # dropout2 = id
    out = _layernorm(src, row(_GN3), row(_BN3))                     # norm3

    n_vid = vid_out_ref.shape[0]
    vid_out_ref[...] = out[:n_vid, :]
    txt_out_ref[...] = out[n_vid:, :]


def dtf_fused(vid_flat, txt_flat, pos_all, p):
    """vid_flat [B*T, C_IN], txt_flat [B*L, D], pos_all [B*(T+L), D]."""
    n_vid, cin = vid_flat.shape
    n_txt, d = txt_flat.shape
    ff = p["wf1"].shape[1]
    n_all = n_vid + n_txt

    flops = 2 * (n_vid * cin * d + n_vid * d * d + n_all * d * ff + n_all * ff * d)
    transcendentals = 2 * n_vid + 3 * n_all            # one rsqrt per LayerNorm row
    bytes_accessed = 4 * (vid_flat.size + txt_flat.size + pos_all.size
                          + p["ln0"].size + p["vecs"].size + p["bf1"].size
                          + p["w0"].size + p["w1p"].size
                          + p["wf1"].size + p["wf2"].size
                          + n_all * d)

    # Single grid step, full-array blocks (defaults): every input/output is
    # DMA'd HBM<->VMEM exactly once; no per-batch loop, no per-core weight dup.
    return pl.pallas_call(
        _dtf_fused_kernel,
        out_shape=(jax.ShapeDtypeStruct((n_vid, d), jnp.float32),
                   jax.ShapeDtypeStruct((n_txt, d), jnp.float32)),
        cost_estimate=pl.CostEstimate(flops=flops,
                                      transcendentals=transcendentals,
                                      bytes_accessed=bytes_accessed),
    )(vid_flat, txt_flat, pos_all, p["ln0"], p["vecs"],
      p["w0"], p["w1p"], p["wf1"], p["bf1"], p["wf2"])


# ------------------------------ glue (plain JAX) -----------------------------
def sine_pos_embed(length, dim):
    # TODO(synk): build_position_encoding is an external builder; a [sin | cos]
    # sinusoidal positional encoding is a deterministic stand-in.
    pos = jnp.arange(length, dtype=jnp.float32)[:, None]
    i = jnp.arange(dim // 2, dtype=jnp.float32)[None, :]
    div = jnp.power(10000.0, 2.0 * i / dim)
    return jnp.concatenate([jnp.sin(pos / div), jnp.cos(pos / div)], axis=-1)


def easy_mlp(src, pos):
    # EasyMLP.forward in eval mode: dropout = identity and its LayerNorm output
    # is discarded by the reference -> pure elementwise add. A Pallas kernel
    # here would be pure launch overhead; XLA fuses this trivially.
    return src + (src + pos)


def init_params(key):
    f32 = jnp.float32
    ks = jax.random.split(key, 8)

    def xavier(k, fin, fout):
        bound = (6.0 / (fin + fout)) ** 0.5
        return jax.random.uniform(k, (fin, fout), f32, -bound, bound)

    def lin_bias(k, fin, n):
        bound = 1.0 / (fin ** 0.5)
        return jax.random.uniform(k, (n,), f32, -bound, bound)

    ones_d, zeros_d = jnp.ones((D,), f32), jnp.zeros((D,), f32)
    rows = [None] * 11
    rows[_BB0] = lin_bias(ks[4], C_IN, D)       # proj0 linear bias
    rows[_G1], rows[_BE1] = ones_d, zeros_d     # proj1 LayerNorm
    rows[_BB1] = lin_bias(ks[5], D, D)          # proj1 linear bias
    rows[_GN1], rows[_BN1] = ones_d, zeros_d    # static norm1
    rows[_GN2], rows[_BN2] = ones_d, zeros_d    # static norm2
    rows[_GN3], rows[_BN3] = ones_d, zeros_d    # static norm3
    rows[_BF2] = lin_bias(ks[6], FF, D)         # static linear2 bias

    return dict(
        ln0=jnp.stack([jnp.ones((C_IN,), f32), jnp.zeros((C_IN,), f32)], axis=0),
        vecs=jnp.stack(rows, axis=0),           # packed (11, D) LN/bias slab
        w0=xavier(ks[0], C_IN, D),              # proj layer 0 linear
        w1p=xavier(ks[1], D, D),                # proj layer 1 linear
        wf1=xavier(ks[2], D, FF),               # static linear1
        bf1=lin_bias(ks[7], D, FF).reshape(1, FF),
        wf2=xavier(ks[3], FF, D),               # static linear2 (bias in vecs)
    )


def dtf_forward(vid_feats, txt_feats, params):
    """use_static=True, use_gnn=False branch of DTF.forward (eval mode).

    vid_feats: [B, T, C_IN]  (featpool output transposed to (B, T, C))
    txt_feats: [B, L, D]     (sent_feat from the text encoder, joint space)
    returns    vid_out [B, D, T], txt_mem [B, L, D]
    """
    b, t, cin = vid_feats.shape
    l, d = txt_feats.shape[1], txt_feats.shape[2]

    pos_all = jnp.concatenate([jnp.tile(sine_pos_embed(t, d), (b, 1)),
                               jnp.tile(sine_pos_embed(l, d), (b, 1))], axis=0)
    vid_mem, txt_mem = dtf_fused(vid_feats.reshape(b * t, cin),
                                 txt_feats.reshape(b * l, d),
                                 pos_all, params)
    vid_out = jnp.transpose(vid_mem.reshape(b, t, d), (0, 2, 1))   # B x D x T
    txt_mem = txt_mem.reshape(b, l, d)
    # TODO(synk): feat2d / proposal_conv / text_out / iou scoring depend on
    # external builders not provided; the pipeline stops at the fused memory.
    return vid_out, txt_mem


def dtf_reference(vid_feats, txt_feats, p):
    """Pure-JAX (non-Pallas) reference of the same forward path."""
    b, t, _ = vid_feats.shape
    l, d = txt_feats.shape[1], txt_feats.shape[2]
    v = p["vecs"]
    x = _layernorm(vid_feats, p["ln0"][0], p["ln0"][1])
    x = jnp.maximum(x @ p["w0"] + v[_BB0], 0.0)
    x = _layernorm(x, v[_G1], v[_BE1])
    src_vid = x @ p["w1p"] + v[_BB1]
    src = jnp.concatenate([src_vid, txt_feats], axis=1)
    pos = jnp.concatenate(
        [jnp.broadcast_to(sine_pos_embed(t, d)[None], (b, t, d)),
         jnp.broadcast_to(sine_pos_embed(l, d)[None], (b, l, d))], axis=1)
    src2 = _layernorm(src, v[_GN1], v[_BN1]) + pos
    src = src + src2
    src2 = _layernorm(src, v[_GN2], v[_BN2])
    h = jnp.maximum(src2 @ p["wf1"] + p["bf1"][0], 0.0)
    src2 = h @ p["wf2"] + v[_BF2]
    src = src + src2
    out = _layernorm(src, v[_GN3], v[_BN3])
    return jnp.transpose(out[:, :t], (0, 2, 1)), out[:, t:]


if __name__ == "__main__":
    key = jax.random.PRNGKey(0)
    k_vid, k_txt, k_par = jax.random.split(key, 3)

    vid_feats = jax.random.normal(k_vid, (B, T, C_IN), jnp.float32)
    txt_feats = jax.random.normal(k_txt, (B, L, D), jnp.float32)
    params = init_params(k_par)

    fwd = jax.jit(dtf_forward)
    vid_out, txt_mem = fwd(vid_feats, txt_feats, params)
    jax.block_until_ready((vid_out, txt_mem))
    assert vid_out.shape == (B, D, T)
    assert txt_mem.shape == (B, L, D)

    # Pure-JAX reference check (tolerance covers MXU vs XLA f32 matmul paths).
    ref_vid, ref_txt = jax.jit(dtf_reference)(vid_feats, txt_feats, params)
    assert jnp.allclose(vid_out, ref_vid, rtol=3e-2, atol=3e-2)
    assert jnp.allclose(txt_mem, ref_txt, rtol=3e-2, atol=3e-2)

    # Exercise the (use_gnn-only) EasyMLP path in plain JAX (elementwise add).
    mlp_mem = easy_mlp(txt_feats, sine_pos_embed(L, D)[None])
    jax.block_until_ready(mlp_mem)
    assert mlp_mem.shape == (B, L, D)

    print("KERNEL_OK")
</pallas_src>

<mosaic_0001>
module attributes {stable_mosaic.version = 11 : i64} {
  func.func @_dtf_fused_kernel(%arg0: memref<32x256xf32, #tpu.memory_space<vmem>>, %arg1: memref<16x256xf32, #tpu.memory_space<vmem>>, %arg2: memref<48x256xf32, #tpu.memory_space<vmem>>, %arg3: memref<2x256xf32, #tpu.memory_space<vmem>>, %arg4: memref<11x256xf32, #tpu.memory_space<vmem>>, %arg5: memref<256x256xf32, #tpu.memory_space<vmem>>, %arg6: memref<256x256xf32, #tpu.memory_space<vmem>>, %arg7: memref<256x1024xf32, #tpu.memory_space<vmem>>, %arg8: memref<1x1024xf32, #tpu.memory_space<vmem>>, %arg9: memref<1024x256xf32, #tpu.memory_space<vmem>>, %arg10: memref<32x256xf32, #tpu.memory_space<vmem>>, %arg11: memref<16x256xf32, #tpu.memory_space<vmem>>) attributes {dimension_semantics = [], scalar_prefetch = 0 : i64, scratch_operands = 0 : i64, tpu.core_type = #tpu.core_type<tc>} {
    %c0 = arith.constant 0 : index
    %c0_0 = arith.constant 0 : index
    %0 = vector.load %arg3[%c0, %c0_0] : memref<2x256xf32, #tpu.memory_space<vmem>>, vector<2x256xf32>
    %c0_1 = arith.constant 0 : index
    %c0_2 = arith.constant 0 : index
    %1 = vector.load %arg4[%c0_1, %c0_2] : memref<11x256xf32, #tpu.memory_space<vmem>>, vector<11x256xf32>
    %c0_3 = arith.constant 0 : index
    %c0_4 = arith.constant 0 : index
    %2 = vector.load %arg0[%c0_3, %c0_4] : memref<32x256xf32, #tpu.memory_space<vmem>>, vector<32x256xf32>
    %3 = vector.extract_strided_slice %0 {offsets = [0, 0], sizes = [1, 256], strides = [1, 1]} : vector<2x256xf32> to vector<1x256xf32>
    %4 = vector.extract_strided_slice %0 {offsets = [1, 0], sizes = [1, 256], strides = [1, 1]} : vector<2x256xf32> to vector<1x256xf32>
    %cst = arith.constant dense<0.000000e+00> : vector<32xf32>
    %5 = vector.multi_reduction <add>, %2, %cst [1] : vector<32x256xf32> to vector<32xf32>
    %6 = vector.shape_cast %5 : vector<32xf32> to vector<32x1xf32>
    %cst_5 = arith.constant 2.560000e+02 : f32
    %7 = vector.broadcast %cst_5 : f32 to vector<32x1xf32>
    %8 = arith.divf %6, %7 : vector<32x1xf32>
    %9 = vector.broadcast %8 : vector<32x1xf32> to vector<32x256xf32>
    %10 = arith.subf %2, %9 : vector<32x256xf32>
    %11 = arith.mulf %10, %10 : vector<32x256xf32>
    %cst_6 = arith.constant dense<0.000000e+00> : vector<32xf32>
    %12 = vector.multi_reduction <add>, %11, %cst_6 [1] : vector<32x256xf32> to vector<32xf32>
    %13 = vector.shape_cast %12 : vector<32xf32> to vector<32x1xf32>
    %cst_7 = arith.constant 2.560000e+02 : f32
    %14 = vector.broadcast %cst_7 : f32 to vector<32x1xf32>
    %15 = arith.divf %13, %14 : vector<32x1xf32>
    %16 = vector.broadcast %8 : vector<32x1xf32> to vector<32x256xf32>
    %17 = arith.subf %2, %16 : vector<32x256xf32>
    %cst_8 = arith.constant 9.99999974E-6 : f32
    %18 = vector.broadcast %cst_8 : f32 to vector<32x1xf32>
    %19 = arith.addf %15, %18 : vector<32x1xf32>
    %20 = math.rsqrt %19 : vector<32x1xf32>
    %21 = vector.broadcast %20 : vector<32x1xf32> to vector<32x256xf32>
    %22 = arith.mulf %17, %21 : vector<32x256xf32>
    %23 = vector.broadcast %3 : vector<1x256xf32> to vector<32x256xf32>
    %24 = arith.mulf %22, %23 : vector<32x256xf32>
    %25 = vector.broadcast %4 : vector<1x256xf32> to vector<32x256xf32>
    %26 = arith.addf %24, %25 : vector<32x256xf32>
    %c0_9 = arith.constant 0 : index
    %c0_10 = arith.constant 0 : index
    %27 = vector.load %arg5[%c0_9, %c0_10] : memref<256x256xf32, #tpu.memory_space<vmem>>, vector<256x256xf32>
    %cst_11 = arith.constant dense<0.000000e+00> : vector<32x256xf32>
    %28 = tpu.matmul %26, %27, %cst_11 {dimension_numbers = #tpu.dot_dimension_numbers<[1], [0], [0], [1], [0, 0, 1, 1], [], []>} : vector<32x256xf32>, vector<256x256xf32>, vector<32x256xf32> -> vector<32x256xf32>
    %29 = vector.extract_strided_slice %1 {offsets = [0, 0], sizes = [1, 256], strides = [1, 1]} : vector<11x256xf32> to vector<1x256xf32>
    %30 = vector.broadcast %29 : vector<1x256xf32> to vector<32x256xf32>
    %31 = arith.addf %28, %30 : vector<32x256xf32>
    %cst_12 = arith.constant 0.000000e+00 : f32
    %32 = vector.broadcast %cst_12 : f32 to vector<32x256xf32>
    %33 = arith.maximumf %31, %32 : vector<32x256xf32>
    %34 = vector.extract_strided_slice %1 {offsets = [1, 0], sizes = [1, 256], strides = [1, 1]} : vector<11x256xf32> to vector<1x256xf32>
    %35 = vector.extract_strided_slice %1 {offsets = [2, 0], sizes = [1, 256], strides = [1, 1]} : vector<11x256xf32> to vector<1x256xf32>
    %cst_13 = arith.constant dense<0.000000e+00> : vector<32xf32>
    %36 = vector.multi_reduction <add>, %33, %cst_13 [1] : vector<32x256xf32> to vector<32xf32>
    %37 = vector.shape_cast %36 : vector<32xf32> to vector<32x1xf32>
    %cst_14 = arith.constant 2.560000e+02 : f32
    %38 = vector.broadcast %cst_14 : f32 to vector<32x1xf32>
    %39 = arith.divf %37, %38 : vector<32x1xf32>
    %40 = vector.broadcast %39 : vector<32x1xf32> to vector<32x256xf32>
    %41 = arith.subf %33, %40 : vector<32x256xf32>
    %42 = arith.mulf %41, %41 : vector<32x256xf32>
    %cst_15 = arith.constant dense<0.000000e+00> : vector<32xf32>
    %43 = vector.multi_reduction <add>, %42, %cst_15 [1] : vector<32x256xf32> to vector<32xf32>
    %44 = vector.shape_cast %43 : vector<32xf32> to vector<32x1xf32>
    %cst_16 = arith.constant 2.560000e+02 : f32
    %45 = vector.broadcast %cst_16 : f32 to vector<32x1xf32>
    %46 = arith.divf %44, %45 : vector<32x1xf32>
    %47 = vector.broadcast %39 : vector<32x1xf32> to vector<32x256xf32>
    %48 = arith.subf %33, %47 : vector<32x256xf32>
    %cst_17 = arith.constant 9.99999974E-6 : f32
    %49 = vector.broadcast %cst_17 : f32 to vector<32x1xf32>
    %50 = arith.addf %46, %49 : vector<32x1xf32>
    %51 = math.rsqrt %50 : vector<32x1xf32>
    %52 = vector.broadcast %51 : vector<32x1xf32> to vector<32x256xf32>
    %53 = arith.mulf %48, %52 : vector<32x256xf32>
    %54 = vector.broadcast %34 : vector<1x256xf32> to vector<32x256xf32>
    %55 = arith.mulf %53, %54 : vector<32x256xf32>
    %56 = vector.broadcast %35 : vector<1x256xf32> to vector<32x256xf32>
    %57 = arith.addf %55, %56 : vector<32x256xf32>
    %c0_18 = arith.constant 0 : index
    %c0_19 = arith.constant 0 : index
    %58 = vector.load %arg6[%c0_18, %c0_19] : memref<256x256xf32, #tpu.memory_space<vmem>>, vector<256x256xf32>
    %cst_20 = arith.constant dense<0.000000e+00> : vector<32x256xf32>
    %59 = tpu.matmul %57, %58, %cst_20 {dimension_numbers = #tpu.dot_dimension_numbers<[1], [0], [0], [1], [0, 0, 1, 1], [], []>} : vector<32x256xf32>, vector<256x256xf32>, vector<32x256xf32> -> vector<32x256xf32>
    %60 = vector.extract_strided_slice %1 {offsets = [3, 0], sizes = [1, 256], strides = [1, 1]} : vector<11x256xf32> to vector<1x256xf32>
    %61 = vector.broadcast %60 : vector<1x256xf32> to vector<32x256xf32>
    %62 = arith.addf %59, %61 : vector<32x256xf32>
    %c0_21 = arith.constant 0 : index
    %c0_22 = arith.constant 0 : index
    %63 = vector.load %arg1[%c0_21, %c0_22] : memref<16x256xf32, #tpu.memory_space<vmem>>, vector<16x256xf32>
    %64 = tpu.concatenate %62, %63 in 0 : vector<32x256xf32>, vector<16x256xf32> -> vector<48x256xf32>
    %65 = vector.extract_strided_slice %1 {offsets = [4, 0], sizes = [1, 256], strides = [1, 1]} : vector<11x256xf32> to vector<1x256xf32>
    %66 = vector.extract_strided_slice %1 {offsets = [5, 0], sizes = [1, 256], strides = [1, 1]} : vector<11x256xf32> to vector<1x256xf32>
    %cst_23 = arith.constant dense<0.000000e+00> : vector<48xf32>
    %67 = vector.multi_reduction <add>, %64, %cst_23 [1] : vector<48x256xf32> to vector<48xf32>
    %68 = vector.shape_cast %67 : vector<48xf32> to vector<48x1xf32>
    %cst_24 = arith.constant 2.560000e+02 : f32
    %69 = vector.broadcast %cst_24 : f32 to vector<48x1xf32>
    %70 = arith.divf %68, %69 : vector<48x1xf32>
    %71 = vector.broadcast %70 : vector<48x1xf32> to vector<48x256xf32>
    %72 = arith.subf %64, %71 : vector<48x256xf32>
    %73 = arith.mulf %72, %72 : vector<48x256xf32>
    %cst_25 = arith.constant dense<0.000000e+00> : vector<48xf32>
    %74 = vector.multi_reduction <add>, %73, %cst_25 [1] : vector<48x256xf32> to vector<48xf32>
    %75 = vector.shape_cast %74 : vector<48xf32> to vector<48x1xf32>
    %cst_26 = arith.constant 2.560000e+02 : f32
    %76 = vector.broadcast %cst_26 : f32 to vector<48x1xf32>
    %77 = arith.divf %75, %76 : vector<48x1xf32>
    %78 = vector.broadcast %70 : vector<48x1xf32> to vector<48x256xf32>
    %79 = arith.subf %64, %78 : vector<48x256xf32>
    %cst_27 = arith.constant 9.99999974E-6 : f32
    %80 = vector.broadcast %cst_27 : f32 to vector<48x1xf32>
    %81 = arith.addf %77, %80 : vector<48x1xf32>
    %82 = math.rsqrt %81 : vector<48x1xf32>
    %83 = vector.broadcast %82 : vector<48x1xf32> to vector<48x256xf32>
    %84 = arith.mulf %79, %83 : vector<48x256xf32>
    %85 = vector.broadcast %65 : vector<1x256xf32> to vector<48x256xf32>
    %86 = arith.mulf %84, %85 : vector<48x256xf32>
    %87 = vector.broadcast %66 : vector<1x256xf32> to vector<48x256xf32>
    %88 = arith.addf %86, %87 : vector<48x256xf32>
    %c0_28 = arith.constant 0 : index
    %c0_29 = arith.constant 0 : index
    %89 = vector.load %arg2[%c0_28, %c0_29] : memref<48x256xf32, #tpu.memory_space<vmem>>, vector<48x256xf32>
    %90 = arith.addf %88, %89 : vector<48x256xf32>
    %91 = arith.addf %64, %90 : vector<48x256xf32>
    %92 = vector.extract_strided_slice %1 {offsets = [6, 0], sizes = [1, 256], strides = [1, 1]} : vector<11x256xf32> to vector<1x256xf32>
    %93 = vector.extract_strided_slice %1 {offsets = [7, 0], sizes = [1, 256], strides = [1, 1]} : vector<11x256xf32> to vector<1x256xf32>
    %cst_30 = arith.constant dense<0.000000e+00> : vector<48xf32>
    %94 = vector.multi_reduction <add>, %91, %cst_30 [1] : vector<48x256xf32> to vector<48xf32>
    %95 = vector.shape_cast %94 : vector<48xf32> to vector<48x1xf32>
    %cst_31 = arith.constant 2.560000e+02 : f32
    %96 = vector.broadcast %cst_31 : f32 to vector<48x1xf32>
    %97 = arith.divf %95, %96 : vector<48x1xf32>
    %98 = vector.broadcast %97 : vector<48x1xf32> to vector<48x256xf32>
    %99 = arith.subf %91, %98 : vector<48x256xf32>
    %100 = arith.mulf %99, %99 : vector<48x256xf32>
    %cst_32 = arith.constant dense<0.000000e+00> : vector<48xf32>
    %101 = vector.multi_reduction <add>, %100, %cst_32 [1] : vector<48x256xf32> to vector<48xf32>
    %102 = vector.shape_cast %101 : vector<48xf32> to vector<48x1xf32>
    %cst_33 = arith.constant 2.560000e+02 : f32
    %103 = vector.broadcast %cst_33 : f32 to vector<48x1xf32>
    %104 = arith.divf %102, %103 : vector<48x1xf32>
    %105 = vector.broadcast %97 : vector<48x1xf32> to vector<48x256xf32>
    %106 = arith.subf %91, %105 : vector<48x256xf32>
    %cst_34 = arith.constant 9.99999974E-6 : f32
    %107 = vector.broadcast %cst_34 : f32 to vector<48x1xf32>
    %108 = arith.addf %104, %107 : vector<48x1xf32>
    %109 = math.rsqrt %108 : vector<48x1xf32>
    %110 = vector.broadcast %109 : vector<48x1xf32> to vector<48x256xf32>
    %111 = arith.mulf %106, %110 : vector<48x256xf32>
    %112 = vector.broadcast %92 : vector<1x256xf32> to vector<48x256xf32>
    %113 = arith.mulf %111, %112 : vector<48x256xf32>
    %114 = vector.broadcast %93 : vector<1x256xf32> to vector<48x256xf32>
    %115 = arith.addf %113, %114 : vector<48x256xf32>
    %c0_35 = arith.constant 0 : index
    %c0_36 = arith.constant 0 : index
    %116 = vector.load %arg7[%c0_35, %c0_36] : memref<256x1024xf32, #tpu.memory_space<vmem>>, vector<256x1024xf32>
    %cst_37 = arith.constant dense<0.000000e+00> : vector<48x1024xf32>
    %117 = tpu.matmul %115, %116, %cst_37 {dimension_numbers = #tpu.dot_dimension_numbers<[1], [0], [0], [1], [0, 0, 1, 1], [], []>} : vector<48x256xf32>, vector<256x1024xf32>, vector<48x1024xf32> -> vector<48x1024xf32>
    %c0_38 = arith.constant 0 : index
    %c0_39 = arith.constant 0 : index
    %118 = vector.load %arg8[%c0_38, %c0_39] : memref<1x1024xf32, #tpu.memory_space<vmem>>, vector<1x1024xf32>
    %119 = vector.broadcast %118 : vector<1x1024xf32> to vector<48x1024xf32>
    %120 = arith.addf %117, %119 : vector<48x1024xf32>
    %cst_40 = arith.constant 0.000000e+00 : f32
    %121 = vector.broadcast %cst_40 : f32 to vector<48x1024xf32>
    %122 = arith.maximumf %120, %121 : vector<48x1024xf32>
    %c0_41 = arith.constant 0 : index
    %c0_42 = arith.constant 0 : index
    %123 = vector.load %arg9[%c0_41, %c0_42] : memref<1024x256xf32, #tpu.memory_space<vmem>>, vector<1024x256xf32>
    %cst_43 = arith.constant dense<0.000000e+00> : vector<48x256xf32>
    %124 = tpu.matmul %122, %123, %cst_43 {dimension_numbers = #tpu.dot_dimension_numbers<[1], [0], [0], [1], [0, 0, 1, 1], [], []>} : vector<48x1024xf32>, vector<1024x256xf32>, vector<48x256xf32> -> vector<48x256xf32>
    %125 = vector.extract_strided_slice %1 {offsets = [10, 0], sizes = [1, 256], strides = [1, 1]} : vector<11x256xf32> to vector<1x256xf32>
    %126 = vector.broadcast %125 : vector<1x256xf32> to vector<48x256xf32>
    %127 = arith.addf %124, %126 : vector<48x256xf32>
    %128 = arith.addf %91, %127 : vector<48x256xf32>
    %129 = vector.extract_strided_slice %1 {offsets = [8, 0], sizes = [1, 256], strides = [1, 1]} : vector<11x256xf32> to vector<1x256xf32>
    %130 = vector.extract_strided_slice %1 {offsets = [9, 0], sizes = [1, 256], strides = [1, 1]} : vector<11x256xf32> to vector<1x256xf32>
    %cst_44 = arith.constant dense<0.000000e+00> : vector<48xf32>
    %131 = vector.multi_reduction <add>, %128, %cst_44 [1] : vector<48x256xf32> to vector<48xf32>
    %132 = vector.shape_cast %131 : vector<48xf32> to vector<48x1xf32>
    %cst_45 = arith.constant 2.560000e+02 : f32
    %133 = vector.broadcast %cst_45 : f32 to vector<48x1xf32>
    %134 = arith.divf %132, %133 : vector<48x1xf32>
    %135 = vector.broadcast %134 : vector<48x1xf32> to vector<48x256xf32>
    %136 = arith.subf %128, %135 : vector<48x256xf32>
    %137 = arith.mulf %136, %136 : vector<48x256xf32>
    %cst_46 = arith.constant dense<0.000000e+00> : vector<48xf32>
    %138 = vector.multi_reduction <add>, %137, %cst_46 [1] : vector<48x256xf32> to vector<48xf32>
    %139 = vector.shape_cast %138 : vector<48xf32> to vector<48x1xf32>
    %cst_47 = arith.constant 2.560000e+02 : f32
    %140 = vector.broadcast %cst_47 : f32 to vector<48x1xf32>
    %141 = arith.divf %139, %140 : vector<48x1xf32>
    %142 = vector.broadcast %134 : vector<48x1xf32> to vector<48x256xf32>
    %143 = arith.subf %128, %142 : vector<48x256xf32>
    %cst_48 = arith.constant 9.99999974E-6 : f32
    %144 = vector.broadcast %cst_48 : f32 to vector<48x1xf32>
    %145 = arith.addf %141, %144 : vector<48x1xf32>
    %146 = math.rsqrt %145 : vector<48x1xf32>
    %147 = vector.broadcast %146 : vector<48x1xf32> to vector<48x256xf32>
    %148 = arith.mulf %143, %147 : vector<48x256xf32>
    %149 = vector.broadcast %129 : vector<1x256xf32> to vector<48x256xf32>
    %150 = arith.mulf %148, %149 : vector<48x256xf32>
    %151 = vector.broadcast %130 : vector<1x256xf32> to vector<48x256xf32>
    %152 = arith.addf %150, %151 : vector<48x256xf32>
    %153 = vector.extract_strided_slice %152 {offsets = [0, 0], sizes = [32, 256], strides = [1, 1]} : vector<48x256xf32> to vector<32x256xf32>
    %c0_49 = arith.constant 0 : index
    %c0_50 = arith.constant 0 : index
    %154 = vector.load %arg10[%c0_49, %c0_50] : memref<32x256xf32, #tpu.memory_space<vmem>>, vector<32x256xf32>
    tpu.vector_store %arg10[%c0_49, %c0_50], %153 {strides = array<i32>} : memref<32x256xf32, #tpu.memory_space<vmem>>, vector<32x256xf32>,
    %155 = vector.extract_strided_slice %152 {offsets = [32, 0], sizes = [16, 256], strides = [1, 1]} : vector<48x256xf32> to vector<16x256xf32>
    %c0_51 = arith.constant 0 : index
    %c0_52 = arith.constant 0 : index
    %156 = vector.load %arg11[%c0_51, %c0_52] : memref<16x256xf32, #tpu.memory_space<vmem>>, vector<16x256xf32>
    tpu.vector_store %arg11[%c0_51, %c0_52], %155 {strides = array<i32>} : memref<16x256xf32, #tpu.memory_space<vmem>>, vector<16x256xf32>,
    return
  }
}

</mosaic_0001>

<llo_original>
// kernel: dtf_forward.1
$region0: #{dtf_forward.1}
  #allocation0 [shape = 'u32[]', space=smem, size = 0x4, offset = 0x4, fixed_abs, tag = 'smem constant byte address 0x4 - core index']
  #allocation1 [shape = 'u32[72,128]{1,0:T(1,128)}', space=vmem, size = 0x9000, scoped, tag = 'internal scratch']
  %s0 = inlined_call_operand.vmem [shape: f32[32,256], index: 0, kind: input, shape index: {}]
  %s1 = inlined_call_operand.vmem [shape: f32[16,256], index: 1, kind: input, shape index: {}]
  %s2 = inlined_call_operand.vmem [shape: f32[48,256], index: 2, kind: input, shape index: {}]
  %s3 = inlined_call_operand.vmem [shape: f32[2,256], index: 3, kind: input, shape index: {}]
  %s4 = inlined_call_operand.vmem [shape: f32[11,256], index: 4, kind: input, shape index: {}]
  %s5 = inlined_call_operand.hbm [shape: f32[256,256], index: 5, kind: input, shape index: {}]
  %s6 = inlined_call_operand.hbm [shape: f32[256,256], index: 6, kind: input, shape index: {}]
  %s7 = inlined_call_operand.hbm [shape: f32[256,1024], index: 7, kind: input, shape index: {}]
  %s8 = inlined_call_operand.vmem [shape: f32[1,1024], index: 8, kind: input, shape index: {}]
  %s9 = inlined_call_operand.hbm [shape: f32[1024,256], index: 9, kind: input, shape index: {}]
  %s10 = inlined_call_operand.hbm [shape: f32[32,256], index: 10, kind: output, shape index: {0}]
  %s11 = inlined_call_operand.hbm [shape: f32[16,256], index: 11, kind: output, shape index: {1}]
  %12 = xla_tuple %s10, %s11
  %s13 = sld [smem:[#allocation0]]
  $region74: #{dtf_forward.1} parent=0
    _
  %s15 = ssub.s32 1, %s13
  %s16 = scalar_select 0, %s15, %s13
  $region1: #{dtf_forward.1} parent=0
    #allocation2 [shape = 'u8[262144]{0}', space=vmem, size = 0x40000, scoped, tag = 'input window, operand 5, single buffered']
    #allocation3 [shape = 's32[1]{0}', space=sflag, size = 0x4, scoped, tag = 'scoped memory for dtf_forward.1']
    #allocation4 [shape = 's32[1]{0}', space=sflag, size = 0x4, scoped, tag = 'scoped memory for dtf_forward.1']
    #allocation5 [shape = 'u8[262144]{0}', space=vmem, size = 0x40000, scoped, tag = 'input window, operand 6, single buffered']
    #allocation6 [shape = 's32[1]{0}', space=sflag, size = 0x4, scoped, tag = 'scoped memory for dtf_forward.1']
    #allocation7 [shape = 'u8[1048576]{0}', space=vmem, size = 0x100000, scoped, tag = 'input window, operand 7, single buffered']
    #allocation8 [shape = 'u8[1048576]{0}', space=vmem, size = 0x100000, scoped, tag = 'input window, operand 9, single buffered']
    #allocation9 [shape = 's32[1]{0}', space=sflag, size = 0x4, scoped, tag = 'scoped memory for dtf_forward.1']
    #allocation10 [shape = 'u8[32768]{0}', space=vmem, size = 0x8000, scoped, tag = 'output window, operand 0, single buffered']
    #allocation11 [shape = 'u8[16384]{0}', space=vmem, size = 0x4000, scoped, tag = 'output window, operand 1, single buffered']
    #allocation12 [shape = 's32[1]{0}', space=sflag, size = 0x4, scoped, tag = 'scoped memory for dtf_forward.1']
    %17 = vsyncpa [#allocation3], 0
    %18 = vsyncpa [#allocation6], 0
    %19 = vsyncpa [#allocation9], 0
    %20 = vsyncpa [#allocation4], 0
    %21 = vsyncpa [#allocation12], 0
    // Predicated region
    $region2: #{dtf_forward.1} parent=1 // pred_check
      _
    $region3: #{dtf_forward.1} parent=1 // pred_check_branch
      %23 = sbr.rel (0) target = $region5
    $region4: #{dtf_forward.1} parent=1 // pred_region
      _
    $region5: #{dtf_forward.1} parent=1 // pred_fallthru
      _
    // Predicated region
    $region6: #{dtf_forward.1} parent=1 // pred_check
      _
    $region7: #{dtf_forward.1} parent=1 // pred_check_branch
      %25 = sbr.rel (0) target = $region9
    $region8: #{dtf_forward.1} parent=1 // pred_region
      _
    $region9: #{dtf_forward.1} parent=1 // pred_fallthru
      _
    // Predicated region
    $region10: #{dtf_forward.1} parent=1 // pred_check
      _
    $region11: #{dtf_forward.1} parent=1 // pred_check_branch
      %27 = sbr.rel (0) target = $region13
    $region12: #{dtf_forward.1} parent=1 // pred_region
      _
    $region13: #{dtf_forward.1} parent=1 // pred_fallthru
      _
    // Predicated region
    $region14: #{dtf_forward.1} parent=1 // pred_check
      _
    $region15: #{dtf_forward.1} parent=1 // pred_check_branch
      %29 = sbr.rel (0) target = $region17
    $region16: #{dtf_forward.1} parent=1 // pred_region
      _
    $region17: #{dtf_forward.1} parent=1 // pred_fallthru
      _
    // Predicated region
    $region18: #{dtf_forward.1} parent=1 // pred_check
      _
    $region19: #{dtf_forward.1} parent=1 // pred_check_branch
      %31 = sbr.rel (0) target = $region21
    $region20: #{dtf_forward.1} parent=1 // pred_region
      _
    $region21: #{dtf_forward.1} parent=1 // pred_fallthru
      _
    // Predicated region
    $region22: #{dtf_forward.1} parent=1 // pred_check
      _
    $region23: #{dtf_forward.1} parent=1 // pred_check_branch
      %33 = sbr.rel (0) target = $region25
    $region24: #{dtf_forward.1} parent=1 // pred_region
      %35 = vsyncadd [#allocation3], 0
      %s36 = sshll.u32 %s5, 4
      %s37 = int_to_ptr.hbm [resolvable:$true] %s36
      %s38 = sshll.u32 [#allocation2], 4
      %s39 = int_to_ptr.vmem [resolvable:$true] %s38
      %44 = dma.hbm_to_vmem [thread:$0]  %s37, 8192, %s39, [#allocation3], 256, 256, 16
    $region25: #{dtf_forward.1} parent=1 // pred_fallthru
      _
    // Predicated region
    $region26: #{dtf_forward.1} parent=1 // pred_check
      _
    $region27: #{dtf_forward.1} parent=1 // pred_check_branch
      %46 = sbr.rel (0) target = $region29
    $region28: #{dtf_forward.1} parent=1 // pred_region
      %48 = vsyncadd [#allocation6], 0
      %s49 = sshll.u32 %s6, 4
      %s50 = int_to_ptr.hbm [resolvable:$true] %s49
      %s51 = sshll.u32 [#allocation5], 4
      %s52 = int_to_ptr.vmem [resolvable:$true] %s51
      %57 = dma.hbm_to_vmem [thread:$0]  %s50, 8192, %s52, [#allocation6], 256, 256, 16
    $region29: #{dtf_forward.1} parent=1 // pred_fallthru
      _
    // Predicated region
    $region30: #{dtf_forward.1} parent=1 // pred_check
      _
    $region31: #{dtf_forward.1} parent=1 // pred_check_branch
      %59 = sbr.rel (0) target = $region33
    $region32: #{dtf_forward.1} parent=1 // pred_region
      %61 = vsyncadd [#allocation6], 0
      %s62 = sshll.u32 %s7, 4
      %s63 = int_to_ptr.hbm [resolvable:$true] %s62
      %s64 = sshll.u32 [#allocation7], 4
      %s65 = int_to_ptr.vmem [resolvable:$true] %s64
      %70 = dma.hbm_to_vmem [thread:$0]  %s63, 32768, %s65, [#allocation6], 1024, 1024, 64
    $region33: #{dtf_forward.1} parent=1 // pred_fallthru
      _
    // Predicated region
    $region34: #{dtf_forward.1} parent=1 // pred_check
      _
    $region35: #{dtf_forward.1} parent=1 // pred_check_branch
      %72 = sbr.rel (0) target = $region37
    $region36: #{dtf_forward.1} parent=1 // pred_region
      _
    $region37: #{dtf_forward.1} parent=1 // pred_fallthru
      _
    // Predicated region
    $region38: #{dtf_forward.1} parent=1 // pred_check
      _
    $region39: #{dtf_forward.1} parent=1 // pred_check_branch
      %74 = sbr.rel (0) target = $region41
    $region40: #{dtf_forward.1} parent=1 // pred_region
      %76 = vsyncadd [#allocation9], 0
      %s77 = sshll.u32 %s9, 4
      %s78 = int_to_ptr.hbm [resolvable:$true] %s77
      %s79 = sshll.u32 [#allocation8], 4
      %s80 = int_to_ptr.vmem [resolvable:$true] %s79
      %85 = dma.hbm_to_vmem [thread:$0]  %s78, 32768, %s80, [#allocation9], 256, 256, 16
    $region41: #{dtf_forward.1} parent=1 // pred_fallthru
      _
    // Predicated region
    $region42: #{dtf_forward.1} parent=1 // pred_check
      _
    $region43: #{dtf_forward.1} parent=1 // pred_check_branch
      %87 = sbr.rel (0) target = $region45
    $region44: #{dtf_forward.1} parent=1 // pred_region
      %89 = dma.done [#allocation3], 8192
    $region45: #{dtf_forward.1} parent=1 // pred_fallthru
      _
    // Predicated region
    $region46: #{dtf_forward.1} parent=1 // pred_check
      _
    $region47: #{dtf_forward.1} parent=1 // pred_check_branch
      %91 = sbr.rel (0) target = $region49
    $region48: #{dtf_forward.1} parent=1 // pred_region
      %93 = dma.done [#allocation6], 8192
    $region49: #{dtf_forward.1} parent=1 // pred_fallthru
      _
    // Predicated region
    $region50: #{dtf_forward.1} parent=1 // pred_check
      _
    $region51: #{dtf_forward.1} parent=1 // pred_check_branch
      %95 = sbr.rel (0) target = $region53
    $region52: #{dtf_forward.1} parent=1 // pred_region
      %97 = dma.done [#allocation6], 32768
    $region53: #{dtf_forward.1} parent=1 // pred_fallthru
      _
    // Predicated region
    $region54: #{dtf_forward.1} parent=1 // pred_check
      _
    $region55: #{dtf_forward.1} parent=1 // pred_check_branch
      %99 = sbr.rel (0) target = $region57
    $region56: #{dtf_forward.1} parent=1 // pred_region
      %101 = dma.done [#allocation9], 32768
    $region57: #{dtf_forward.1} parent=1 // pred_fallthru
      _
    %v102 = vld [vmem:[%s3] sm:$0xf]
    %v103 = vld [vmem:[%s4] sm:$0xff]
    %v104 = vld [vmem:[%s4 + $0x8] sm:$0xff]
    %v105 = vld [vmem:[%s4 + $0x10] sm:$0x7]
    %v106 = vld [vmem:[%s4 + $0x18] sm:$0x7]
    %v107 = vld [vmem:[%s0] sm:$0xff]
    %v108 = vld [vmem:[%s0 + $0x8] sm:$0xff]
    %v109 = vld [vmem:[%s0 + $0x10] sm:$0xff]
    %v110 = vld [vmem:[%s0 + $0x18] sm:$0xff]
    %v111 = vld [vmem:[%s0 + $0x20] sm:$0xff]
    %v112 = vld [vmem:[%s0 + $0x28] sm:$0xff]
    %v113 = vld [vmem:[%s0 + $0x30] sm:$0xff]
    %v114 = vld [vmem:[%s0 + $0x38] sm:$0xff]
    %v115 = vadd.f32 %v107, %v108
    %116 = vadd.xlane.f32.xlu0 %v115
    %v117 = vpop.xlane.xlu0 %116
    %v118 = vadd.f32 %v109, %v110
    %119 = vadd.xlane.f32.xlu0 %v118
    %v120 = vpop.xlane.xlu0 %119
    %v121 = vadd.f32 %v111, %v112
    %122 = vadd.xlane.f32.xlu0 %v121
    %v123 = vpop.xlane.xlu0 %122
    %v124 = vadd.f32 %v113, %v114
    %125 = vadd.xlane.f32.xlu0 %v124
    %v126 = vpop.xlane.xlu0 %125
    %v127 = vrcp.pop 256.0
    %v128 = vmul.f32 256.0, %v127
    %v129 = vsub.f32 1.0, %v128
    %v130 = vmul.f32 %v127, %v129
    %v131 = vadd.f32 %v127, %v130
    %vm132 = vweird.f32 %v127
    %v133 = vsel %vm132, %v127, %v131
    %v134 = vmul.f32 %v117, %v133
    %v135 = vmul.f32 %v120, %v133
    %v136 = vmul.f32 %v123, %v133
    %v137 = vmul.f32 %v126, %v133
    %v138 = vsub.f32 %v107, %v134
    %v139 = vsub.f32 %v108, %v134
    %v140 = vsub.f32 %v109, %v135
    %v141 = vsub.f32 %v110, %v135
    %v142 = vsub.f32 %v111, %v136
    %v143 = vsub.f32 %v112, %v136
    %v144 = vsub.f32 %v113, %v137
    %v145 = vsub.f32 %v114, %v137
    %v146 = vmul.f32 %v138, %v138
    %v147 = vmul.f32 %v139, %v139
    %v148 = vmul.f32 %v140, %v140
    %v149 = vmul.f32 %v141, %v141
    %v150 = vmul.f32 %v142, %v142
    %v151 = vmul.f32 %v143, %v143
    %v152 = vmul.f32 %v144, %v144
    %v153 = vmul.f32 %v145, %v145
    %v154 = vadd.f32 %v146, %v147
    %155 = vadd.xlane.f32.xlu0 %v154
    %v156 = vpop.xlane.xlu0 %155
    %v157 = vadd.f32 %v148, %v149
    %158 = vadd.xlane.f32.xlu0 %v157
    %v159 = vpop.xlane.xlu0 %158
    %v160 = vadd.f32 %v150, %v151
    %161 = vadd.xlane.f32.xlu0 %v160
    %v162 = vpop.xlane.xlu0 %161
    %v163 = vadd.f32 %v152, %v153
    %164 = vadd.xlane.f32.xlu0 %v163
    %v165 = vpop.xlane.xlu0 %164
    %v166 = vmul.f32 %v156, %v133
    %v167 = vmul.f32 %v159, %v133
    %v168 = vmul.f32 %v162, %v133
    %v169 = vmul.f32 %v165, %v133
    %v170 = vadd.f32 %v166, 1e-05
    %v171 = vadd.f32 %v167, 1e-05
    %v172 = vadd.f32 %v168, 1e-05
    %v173 = vadd.f32 %v169, 1e-05
    %v174 = vrsqrt.pop %v170
    %v175 = vmul.f32 %v174, %v170
    %v176 = vmul.f32 %v175, %v174
    %v177 = vmul.f32 0.5, %v176
    %v178 = vsub.f32 1.5, %v177
    %v179 = vmul.f32 %v174, %v178
    %vm180 = vweird.f32 %v170
    %vm181 = vweird.f32 %v174
    %vm182 = vmor %vm180, %vm181
    %v183 = vsel %vm182, %v174, %v179
    %v184 = vrsqrt.pop %v171
    %v185 = vmul.f32 %v184, %v171
    %v186 = vmul.f32 %v185, %v184
    %v187 = vmul.f32 0.5, %v186
    %v188 = vsub.f32 1.5, %v187
    %v189 = vmul.f32 %v184, %v188
    %vm190 = vweird.f32 %v171
    %vm191 = vweird.f32 %v184
    %vm192 = vmor %vm190, %vm191
    %v193 = vsel %vm192, %v184, %v189
    %v194 = vrsqrt.pop %v172
    %v195 = vmul.f32 %v194, %v172
    %v196 = vmul.f32 %v195, %v194
    %v197 = vmul.f32 0.5, %v196
    %v198 = vsub.f32 1.5, %v197
    %v199 = vmul.f32 %v194, %v198
    %vm200 = vweird.f32 %v172
    %vm201 = vweird.f32 %v194
    %vm202 = vmor %vm200, %vm201
    %v203 = vsel %vm202, %v194, %v199
    %v204 = vrsqrt.pop %v173
    %v205 = vmul.f32 %v204, %v173
    %v206 = vmul.f32 %v205, %v204
    %v207 = vmul.f32 0.5, %v206
    %v208 = vsub.f32 1.5, %v207
    %v209 = vmul.f32 %v204, %v208
    %vm210 = vweird.f32 %v173
    %vm211 = vweird.f32 %v204
    %vm212 = vmor %vm210, %vm211
    %v213 = vsel %vm212, %v204, %v209
    %v214 = vmul.f32 %v138, %v183
    %v215 = vmul.f32 %v139, %v183
    %v216 = vmul.f32 %v140, %v193
    %v217 = vmul.f32 %v141, %v193
    %v218 = vmul.f32 %v142, %v203
    %v219 = vmul.f32 %v143, %v203
    %v220 = vmul.f32 %v144, %v213
    %v221 = vmul.f32 %v145, %v213
    %v223 = vperm.slane %v102, 0
    %v224 = vperm.slane %v102, 2
    %v227 = vperm.slane %v223, 0
    %v228 = vperm.slane %v224, 0
    %v229 = vmul.f32 %v214, %v227
    %v230 = vmul.f32 %v215, %v228
    %v231 = vmul.f32 %v216, %v227
    %v232 = vmul.f32 %v217, %v228
    %v233 = vmul.f32 %v218, %v227
    %v234 = vmul.f32 %v219, %v228
    %v235 = vmul.f32 %v220, %v227
    %v236 = vmul.f32 %v221, %v228
    %v237 = vperm.slane %v102, 1
    %v238 = vperm.slane %v102, 3
    %v241 = vperm.slane %v237, 1
    %v242 = vperm.slane %v238, 1
    %v243 = vadd.f32 %v229, %v241
    %v244 = vadd.f32 %v230, %v242
    %v245 = vadd.f32 %v231, %v241
    %v246 = vadd.f32 %v232, %v242
    %v247 = vadd.f32 %v233, %v241
    %v248 = vadd.f32 %v234, %v242
    %v249 = vadd.f32 %v235, %v241
    %v250 = vadd.f32 %v236, %v242
    %v251 = vld [vmem:[#allocation2] sm:$0xff]
    %v252 = vld [vmem:[#allocation2 + $0x8] sm:$0xff]
    %v253 = vld [vmem:[#allocation2 + $0x10] sm:$0xff]
    %v254 = vld [vmem:[#allocation2 + $0x18] sm:$0xff]
    %v255 = vld [vmem:[#allocation2 + $0x20] sm:$0xff]
    %v256 = vld [vmem:[#allocation2 + $0x28] sm:$0xff]
    %v257 = vld [vmem:[#allocation2 + $0x30] sm:$0xff]
    %v258 = vld [vmem:[#allocation2 + $0x38] sm:$0xff]
    %v259 = vld [vmem:[#allocation2 + $0x40] sm:$0xff]
    %v260 = vld [vmem:[#allocation2 + $0x48] sm:$0xff]
    %v261 = vld [vmem:[#allocation2 + $0x50] sm:$0xff]
    %v262 = vld [vmem:[#allocation2 + $0x58] sm:$0xff]
    %v263 = vld [vmem:[#allocation2 + $0x60] sm:$0xff]
    %v264 = vld [vmem:[#allocation2 + $0x68] sm:$0xff]
    %v265 = vld [vmem:[#allocation2 + $0x70] sm:$0xff]
    %v266 = vld [vmem:[#allocation2 + $0x78] sm:$0xff]
    %v267 = vld [vmem:[#allocation2 + $0x80] sm:$0xff]
    %v268 = vld [vmem:[#allocation2 + $0x88] sm:$0xff]
    %v269 = vld [vmem:[#allocation2 + $0x90] sm:$0xff]
    %v270 = vld [vmem:[#allocation2 + $0x98] sm:$0xff]
    %v271 = vld [vmem:[#allocation2 + $0xa0] sm:$0xff]
    %v272 = vld [vmem:[#allocation2 + $0xa8] sm:$0xff]
    %v273 = vld [vmem:[#allocation2 + $0xb0] sm:$0xff]
    %v274 = vld [vmem:[#allocation2 + $0xb8] sm:$0xff]
    %v275 = vld [vmem:[#allocation2 + $0xc0] sm:$0xff]
    %v276 = vld [vmem:[#allocation2 + $0xc8] sm:$0xff]
    %v277 = vld [vmem:[#allocation2 + $0xd0] sm:$0xff]
    %v278 = vld [vmem:[#allocation2 + $0xd8] sm:$0xff]
    %v279 = vld [vmem:[#allocation2 + $0xe0] sm:$0xff]
    %v280 = vld [vmem:[#allocation2 + $0xe8] sm:$0xff]
    %v281 = vld [vmem:[#allocation2 + $0xf0] sm:$0xff]
    %v282 = vld [vmem:[#allocation2 + $0xf8] sm:$0xff]
    %v283 = vld [vmem:[#allocation2 + $0x100] sm:$0xff]
    %v284 = vld [vmem:[#allocation2 + $0x108] sm:$0xff]
    %v285 = vld [vmem:[#allocation2 + $0x110] sm:$0xff]
    %v286 = vld [vmem:[#allocation2 + $0x118] sm:$0xff]
    %v287 = vld [vmem:[#allocation2 + $0x120] sm:$0xff]
    %v288 = vld [vmem:[#allocation2 + $0x128] sm:$0xff]
    %v289 = vld [vmem:[#allocation2 + $0x130] sm:$0xff]
    %v290 = vld [vmem:[#allocation2 + $0x138] sm:$0xff]
    %v291 = vld [vmem:[#allocation2 + $0x140] sm:$0xff]
    %v292 = vld [vmem:[#allocation2 + $0x148] sm:$0xff]
    %v293 = vld [vmem:[#allocation2 + $0x150] sm:$0xff]
    %v294 = vld [vmem:[#allocation2 + $0x158] sm:$0xff]
    %v295 = vld [vmem:[#allocation2 + $0x160] sm:$0xff]
    %v296 = vld [vmem:[#allocation2 + $0x168] sm:$0xff]
    %v297 = vld [vmem:[#allocation2 + $0x170] sm:$0xff]
    %v298 = vld [vmem:[#allocation2 + $0x178] sm:$0xff]
    %v299 = vld [vmem:[#allocation2 + $0x180] sm:$0xff]
    %v300 = vld [vmem:[#allocation2 + $0x188] sm:$0xff]
    %v301 = vld [vmem:[#allocation2 + $0x190] sm:$0xff]
    %v302 = vld [vmem:[#allocation2 + $0x198] sm:$0xff]
    %v303 = vld [vmem:[#allocation2 + $0x1a0] sm:$0xff]
    %v304 = vld [vmem:[#allocation2 + $0x1a8] sm:$0xff]
    %v305 = vld [vmem:[#allocation2 + $0x1b0] sm:$0xff]
    %v306 = vld [vmem:[#allocation2 + $0x1b8] sm:$0xff]
    %v307 = vld [vmem:[#allocation2 + $0x1c0] sm:$0xff]
    %v308 = vld [vmem:[#allocation2 + $0x1c8] sm:$0xff]
    %v309 = vld [vmem:[#allocation2 + $0x1d0] sm:$0xff]
    %v310 = vld [vmem:[#allocation2 + $0x1d8] sm:$0xff]
    %v311 = vld [vmem:[#allocation2 + $0x1e0] sm:$0xff]
    %v312 = vld [vmem:[#allocation2 + $0x1e8] sm:$0xff]
    %v313 = vld [vmem:[#allocation2 + $0x1f0] sm:$0xff]
    %v314 = vld [vmem:[#allocation2 + $0x1f8] sm:$0xff]
    %v315 = vperm.slane %v103, 0
    %v316 = vperm.slane %v104, 0
    %317 = vmatpush.msra.mxu0 %v281
    %318 = vmatpush.msra.mxu0 %v279
    %319 = vmatpush.msra.mxu0 %v277
    %320 = vmatpush.msra.mxu0 %v275
    %321 = vmatpush.msra.mxu0 %v273
    %322 = vmatpush.msra.mxu0 %v271
    %323 = vmatpush.msra.mxu0 %v269
    %324 = vmatpush.msra.mxu0 %v267
    %325 = vmatpush.msra.mxu0 %v265
    %326 = vmatpush.msra.mxu0 %v263
    %327 = vmatpush.msra.mxu0 %v261
    %328 = vmatpush.msra.mxu0 %v259
    %329 = vmatpush.msra.mxu0 %v257
    %330 = vmatpush.msra.mxu0 %v255
    %331 = vmatpush.msra.mxu0 %v253
    %332 = vmatpush.msra.mxu0 %v251
    %333 = vmatmul.f32.gmra.mxu0 %v243
    %v334 = vpop.f32.mrf.mxu0
    %v335 = vadd.f32 %v315, %v334
    %336 = vmatmul.f32.gmra.mxu0 %v245
    %v337 = vpop.f32.mrf.mxu0
    %v338 = vadd.f32 %v315, %v337
    %339 = vmatmul.f32.gmra.mxu0 %v247
    %v340 = vpop.f32.mrf.mxu0
    %v341 = vadd.f32 %v315, %v340
    %342 = vmatmul.f32.gmra.mxu0 %v249
    %v343 = vpop.f32.mrf.mxu0
    %v344 = vadd.f32 %v315, %v343
    %345 = vdwg.mxu0
    %346 = vmatpush.msra.mxu0 %v313
    %347 = vmatpush.msra.mxu0 %v311
    %348 = vmatpush.msra.mxu0 %v309
    %349 = vmatpush.msra.mxu0 %v307
    %350 = vmatpush.msra.mxu0 %v305
    %351 = vmatpush.msra.mxu0 %v303
    %352 = vmatpush.msra.mxu0 %v301
    %353 = vmatpush.msra.mxu0 %v299
    %354 = vmatpush.msra.mxu0 %v297
    %355 = vmatpush.msra.mxu0 %v295
    %356 = vmatpush.msra.mxu0 %v293
    %357 = vmatpush.msra.mxu0 %v291
    %358 = vmatpush.msra.mxu0 %v289
    %359 = vmatpush.msra.mxu0 %v287
    %360 = vmatpush.msra.mxu0 %v285
    %361 = vmatpush.msra.mxu0 %v283
    %362 = vmatmul.f32.gmra.mxu0 %v244
    %v363 = vpop.f32.mrf.mxu0
    %v364 = vadd.f32 %v335, %v363
    %365 = vmatmul.f32.gmra.mxu0 %v246
    %v366 = vpop.f32.mrf.mxu0
    %v367 = vadd.f32 %v338, %v366
    %368 = vmatmul.f32.gmra.mxu0 %v248
    %v369 = vpop.f32.mrf.mxu0
    %v370 = vadd.f32 %v341, %v369
    %371 = vmatmul.f32.gmra.mxu0 %v250
    %v372 = vpop.f32.mrf.mxu0
    %v373 = vadd.f32 %v344, %v372
    %374 = vdwg.mxu0
    %375 = vmatpush.msra.mxu0 %v282
    %376 = vmatpush.msra.mxu0 %v280
    %377 = vmatpush.msra.mxu0 %v278
    %378 = vmatpush.msra.mxu0 %v276
    %379 = vmatpush.msra.mxu0 %v274
    %380 = vmatpush.msra.mxu0 %v272
    %381 = vmatpush.msra.mxu0 %v270
    %382 = vmatpush.msra.mxu0 %v268
    %383 = vmatpush.msra.mxu0 %v266
    %384 = vmatpush.msra.mxu0 %v264
    %385 = vmatpush.msra.mxu0 %v262
    %386 = vmatpush.msra.mxu0 %v260
    %387 = vmatpush.msra.mxu0 %v258
    %388 = vmatpush.msra.mxu0 %v256
    %389 = vmatpush.msra.mxu0 %v254
    %390 = vmatpush.msra.mxu0 %v252
    %391 = vmatmul.f32.gmra.mxu0 %v243
    %v392 = vpop.f32.mrf.mxu0
    %v393 = vadd.f32 %v316, %v392
    %394 = vmatmul.f32.gmra.mxu0 %v245
    %v395 = vpop.f32.mrf.mxu0
    %v396 = vadd.f32 %v316, %v395
    %397 = vmatmul.f32.gmra.mxu0 %v247
    %v398 = vpop.f32.mrf.mxu0
    %v399 = vadd.f32 %v316, %v398
    %400 = vmatmul.f32.gmra.mxu0 %v249
    %v401 = vpop.f32.mrf.mxu0
    %v402 = vadd.f32 %v316, %v401
    %403 = vdwg.mxu0
    %404 = vmatpush.msra.mxu0 %v314
    %405 = vmatpush.msra.mxu0 %v312
    %406 = vmatpush.msra.mxu0 %v310
    %407 = vmatpush.msra.mxu0 %v308
    %408 = vmatpush.msra.mxu0 %v306
    %409 = vmatpush.msra.mxu0 %v304
    %410 = vmatpush.msra.mxu0 %v302
    %411 = vmatpush.msra.mxu0 %v300
    %412 = vmatpush.msra.mxu0 %v298
    %413 = vmatpush.msra.mxu0 %v296
    %414 = vmatpush.msra.mxu0 %v294
    %415 = vmatpush.msra.mxu0 %v292
    %416 = vmatpush.msra.mxu0 %v290
    %417 = vmatpush.msra.mxu0 %v288
    %418 = vmatpush.msra.mxu0 %v286
    %419 = vmatpush.msra.mxu0 %v284
    %420 = vmatmul.f32.gmra.mxu0 %v244
    %v421 = vpop.f32.mrf.mxu0
    %v422 = vadd.f32 %v393, %v421
    %423 = vmatmul.f32.gmra.mxu0 %v246
    %v424 = vpop.f32.mrf.mxu0
    %v425 = vadd.f32 %v396, %v424
    %426 = vmatmul.f32.gmra.mxu0 %v248
    %v427 = vpop.f32.mrf.mxu0
    %v428 = vadd.f32 %v399, %v427
    %429 = vmatmul.f32.gmra.mxu0 %v250
    %v430 = vpop.f32.mrf.mxu0
    %v431 = vadd.f32 %v402, %v430
    %432 = vdwg.mxu0
    %v433 = vmax.f32 %v364, 0.0
    %v434 = vmax.f32 %v422, 0.0
    %v435 = vmax.f32 %v367, 0.0
    %v436 = vmax.f32 %v425, 0.0
    %v437 = vmax.f32 %v370, 0.0
    %v438 = vmax.f32 %v428, 0.0
    %v439 = vmax.f32 %v373, 0.0
    %v440 = vmax.f32 %v431, 0.0
    %v441 = vadd.f32 %v433, %v434
    %442 = vadd.xlane.f32.xlu0 %v441
    %v443 = vpop.xlane.xlu0 %442
    %v444 = vadd.f32 %v435, %v436
    %445 = vadd.xlane.f32.xlu0 %v444
    %v446 = vpop.xlane.xlu0 %445
    %v447 = vadd.f32 %v437, %v438
    %448 = vadd.xlane.f32.xlu0 %v447
    %v449 = vpop.xlane.xlu0 %448
    %v450 = vadd.f32 %v439, %v440
    %451 = vadd.xlane.f32.xlu0 %v450
    %v452 = vpop.xlane.xlu0 %451
    %v453 = vmul.f32 %v443, %v133
    %v454 = vmul.f32 %v446, %v133
    %v455 = vmul.f32 %v449, %v133
    %v456 = vmul.f32 %v452, %v133
    %v457 = vsub.f32 %v433, %v453
    %v458 = vsub.f32 %v434, %v453
    %v459 = vsub.f32 %v435, %v454
    %v460 = vsub.f32 %v436, %v454
    %v461 = vsub.f32 %v437, %v455
    %v462 = vsub.f32 %v438, %v455
    %v463 = vsub.f32 %v439, %v456
    %v464 = vsub.f32 %v440, %v456
    %v465 = vmul.f32 %v457, %v457
    %v466 = vmul.f32 %v458, %v458
    %v467 = vmul.f32 %v459, %v459
    %v468 = vmul.f32 %v460, %v460
    %v469 = vmul.f32 %v461, %v461
    %v470 = vmul.f32 %v462, %v462
    %v471 = vmul.f32 %v463, %v463
    %v472 = vmul.f32 %v464, %v464
    %v473 = vadd.f32 %v465, %v466
    %474 = vadd.xlane.f32.xlu0 %v473
    %v475 = vpop.xlane.xlu0 %474
    %v476 = vadd.f32 %v467, %v468
    %477 = vadd.xlane.f32.xlu0 %v476
    %v478 = vpop.xlane.xlu0 %477
    %v479 = vadd.f32 %v469, %v470
    %480 = vadd.xlane.f32.xlu0 %v479
    %v481 = vpop.xlane.xlu0 %480
    %v482 = vadd.f32 %v471, %v472
    %483 = vadd.xlane.f32.xlu0 %v482
    %v484 = vpop.xlane.xlu0 %483
    %v485 = vmul.f32 %v475, %v133
    %v486 = vmul.f32 %v478, %v133
    %v487 = vmul.f32 %v481, %v133
    %v488 = vmul.f32 %v484, %v133
    %v489 = vadd.f32 %v485, 1e-05
    %v490 = vadd.f32 %v486, 1e-05
    %v491 = vadd.f32 %v487, 1e-05
    %v492 = vadd.f32 %v488, 1e-05
    %v493 = vrsqrt.pop %v489
    %v494 = vmul.f32 %v493, %v489
    %v495 = vmul.f32 %v494, %v493
    %v496 = vmul.f32 0.5, %v495
    %v497 = vsub.f32 1.5, %v496
    %v498 = vmul.f32 %v493, %v497
    %vm499 = vweird.f32 %v489
    %vm500 = vweird.f32 %v493
    %vm501 = vmor %vm499, %vm500
    %v502 = vsel %vm501, %v493, %v498
    %v503 = vrsqrt.pop %v490
    %v504 = vmul.f32 %v503, %v490
    %v505 = vmul.f32 %v504, %v503
    %v506 = vmul.f32 0.5, %v505
    %v507 = vsub.f32 1.5, %v506
    %v508 = vmul.f32 %v503, %v507
    %vm509 = vweird.f32 %v490
    %vm510 = vweird.f32 %v503
    %vm511 = vmor %vm509, %vm510
    %v512 = vsel %vm511, %v503, %v508
    %v513 = vrsqrt.pop %v491
    %v514 = vmul.f32 %v513, %v491
    %v515 = vmul.f32 %v514, %v513
    %v516 = vmul.f32 0.5, %v515
    %v517 = vsub.f32 1.5, %v516
    %v518 = vmul.f32 %v513, %v517
    %vm519 = vweird.f32 %v491
    %vm520 = vweird.f32 %v513
    %vm521 = vmor %vm519, %vm520
    %v522 = vsel %vm521, %v513, %v518
    %v523 = vrsqrt.pop %v492
    %v524 = vmul.f32 %v523, %v492
    %v525 = vmul.f32 %v524, %v523
    %v526 = vmul.f32 0.5, %v525
    %v527 = vsub.f32 1.5, %v526
    %v528 = vmul.f32 %v523, %v527
    %vm529 = vweird.f32 %v492
    %vm530 = vweird.f32 %v523
    %vm531 = vmor %vm529, %vm530
    %v532 = vsel %vm531, %v523, %v528
    %v533 = vmul.f32 %v457, %v502
    %v534 = vmul.f32 %v458, %v502
    %v535 = vmul.f32 %v459, %v512
    %v536 = vmul.f32 %v460, %v512
    %v537 = vmul.f32 %v461, %v522
    %v538 = vmul.f32 %v462, %v522
    %v539 = vmul.f32 %v463, %v532
    %v540 = vmul.f32 %v464, %v532
    %v541 = vperm.slane %v103, 1
    %v542 = vperm.slane %v104, 1
    %v543 = vmul.f32 %v533, %v541
    %v544 = vmul.f32 %v534, %v542
    %v545 = vmul.f32 %v535, %v541
    %v546 = vmul.f32 %v536, %v542
    %v547 = vmul.f32 %v537, %v541
    %v548 = vmul.f32 %v538, %v542
    %v549 = vmul.f32 %v539, %v541
    %v550 = vmul.f32 %v540, %v542
    %v551 = vperm.slane %v103, 2
    %v552 = vperm.slane %v104, 2
    %v553 = vadd.f32 %v543, %v551
    %v554 = vadd.f32 %v544, %v552
    %v555 = vadd.f32 %v545, %v551
    %v556 = vadd.f32 %v546, %v552
    %v557 = vadd.f32 %v547, %v551
    %v558 = vadd.f32 %v548, %v552
    %v559 = vadd.f32 %v549, %v551
    %v560 = vadd.f32 %v550, %v552
    %v561 = vld [vmem:[#allocation5] sm:$0xff]
    %v562 = vld [vmem:[#allocation5 + $0x8] sm:$0xff]
    %v563 = vld [vmem:[#allocation5 + $0x10] sm:$0xff]
    %v564 = vld [vmem:[#allocation5 + $0x18] sm:$0xff]
    %v565 = vld [vmem:[#allocation5 + $0x20] sm:$0xff]
    %v566 = vld [vmem:[#allocation5 + $0x28] sm:$0xff]
    %v567 = vld [vmem:[#allocation5 + $0x30] sm:$0xff]
    %v568 = vld [vmem:[#allocation5 + $0x38] sm:$0xff]
    %v569 = vld [vmem:[#allocation5 + $0x40] sm:$0xff]
    %v570 = vld [vmem:[#allocation5 + $0x48] sm:$0xff]
    %v571 = vld [vmem:[#allocation5 + $0x50] sm:$0xff]
    %v572 = vld [vmem:[#allocation5 + $0x58] sm:$0xff]
    %v573 = vld [vmem:[#allocation5 + $0x60] sm:$0xff]
    %v574 = vld [vmem:[#allocation5 + $0x68] sm:$0xff]
    %v575 = vld [vmem:[#allocation5 + $0x70] sm:$0xff]
    %v576 = vld [vmem:[#allocation5 + $0x78] sm:$0xff]
    %v577 = vld [vmem:[#allocation5 + $0x80] sm:$0xff]
    %v578 = vld [vmem:[#allocation5 + $0x88] sm:$0xff]
    %v579 = vld [vmem:[#allocation5 + $0x90] sm:$0xff]
    %v580 = vld [vmem:[#allocation5 + $0x98] sm:$0xff]
    %v581 = vld [vmem:[#allocation5 + $0xa0] sm:$0xff]
    %v582 = vld [vmem:[#allocation5 + $0xa8] sm:$0xff]
    %v583 = vld [vmem:[#allocation5 + $0xb0] sm:$0xff]
    %v584 = vld [vmem:[#allocation5 + $0xb8] sm:$0xff]
    %v585 = vld [vmem:[#allocation5 + $0xc0] sm:$0xff]
    %v586 = vld [vmem:[#allocation5 + $0xc8] sm:$0xff]
    %v587 = vld [vmem:[#allocation5 + $0xd0] sm:$0xff]
    %v588 = vld [vmem:[#allocation5 + $0xd8] sm:$0xff]
    %v589 = vld [vmem:[#allocation5 + $0xe0] sm:$0xff]
    %v590 = vld [vmem:[#allocation5 + $0xe8] sm:$0xff]
    %v591 = vld [vmem:[#allocation5 + $0xf0] sm:$0xff]
    %v592 = vld [vmem:[#allocation5 + $0xf8] sm:$0xff]
    %v593 = vld [vmem:[#allocation5 + $0x100] sm:$0xff]
    %v594 = vld [vmem:[#allocation5 + $0x108] sm:$0xff]
    %v595 = vld [vmem:[#allocation5 + $0x110] sm:$0xff]
    %v596 = vld [vmem:[#allocation5 + $0x118] sm:$0xff]
    %v597 = vld [vmem:[#allocation5 + $0x120] sm:$0xff]
    %v598 = vld [vmem:[#allocation5 + $0x128] sm:$0xff]
    %v599 = vld [vmem:[#allocation5 + $0x130] sm:$0xff]
    %v600 = vld [vmem:[#allocation5 + $0x138] sm:$0xff]
    %v601 = vld [vmem:[#allocation5 + $0x140] sm:$0xff]
    %v602 = vld [vmem:[#allocation5 + $0x148] sm:$0xff]
    %v603 = vld [vmem:[#allocation5 + $0x150] sm:$0xff]
    %v604 = vld [vmem:[#allocation5 + $0x158] sm:$0xff]
    %v605 = vld [vmem:[#allocation5 + $0x160] sm:$0xff]
    %v606 = vld [vmem:[#allocation5 + $0x168] sm:$0xff]
    %v607 = vld [vmem:[#allocation5 + $0x170] sm:$0xff]
    %v608 = vld [vmem:[#allocation5 + $0x178] sm:$0xff]
    %v609 = vld [vmem:[#allocation5 + $0x180] sm:$0xff]
    %v610 = vld [vmem:[#allocation5 + $0x188] sm:$0xff]
    %v611 = vld [vmem:[#allocation5 + $0x190] sm:$0xff]
    %v612 = vld [vmem:[#allocation5 + $0x198] sm:$0xff]
    %v613 = vld [vmem:[#allocation5 + $0x1a0] sm:$0xff]
    %v614 = vld [vmem:[#allocation5 + $0x1a8] sm:$0xff]
    %v615 = vld [vmem:[#allocation5 + $0x1b0] sm:$0xff]
    %v616 = vld [vmem:[#allocation5 + $0x1b8] sm:$0xff]
    %v617 = vld [vmem:[#allocation5 + $0x1c0] sm:$0xff]
    %v618 = vld [vmem:[#allocation5 + $0x1c8] sm:$0xff]
    %v619 = vld [vmem:[#allocation5 + $0x1d0] sm:$0xff]
    %v620 = vld [vmem:[#allocation5 + $0x1d8] sm:$0xff]
    %v621 = vld [vmem:[#allocation5 + $0x1e0] sm:$0xff]
    %v622 = vld [vmem:[#allocation5 + $0x1e8] sm:$0xff]
    %v623 = vld [vmem:[#allocation5 + $0x1f0] sm:$0xff]
    %v624 = vld [vmem:[#allocation5 + $0x1f8] sm:$0xff]
    %v625 = vperm.slane %v103, 3
    %v626 = vperm.slane %v104, 3
    %627 = vmatpush.msra.mxu0 %v591
    %628 = vmatpush.msra.mxu0 %v589
    %629 = vmatpush.msra.mxu0 %v587
    %630 = vmatpush.msra.mxu0 %v585
    %631 = vmatpush.msra.mxu0 %v583
    %632 = vmatpush.msra.mxu0 %v581
    %633 = vmatpush.msra.mxu0 %v579
    %634 = vmatpush.msra.mxu0 %v577
    %635 = vmatpush.msra.mxu0 %v575
    %636 = vmatpush.msra.mxu0 %v573
    %637 = vmatpush.msra.mxu0 %v571
    %638 = vmatpush.msra.mxu0 %v569
    %639 = vmatpush.msra.mxu0 %v567
    %640 = vmatpush.msra.mxu0 %v565
    %641 = vmatpush.msra.mxu0 %v563
    %642 = vmatpush.msra.mxu0 %v561
    %643 = vmatmul.f32.gmra.mxu0 %v553
    %v644 = vpop.f32.mrf.mxu0
    %v645 = vadd.f32 %v625, %v644
    %646 = vmatmul.f32.gmra.mxu0 %v555
    %v647 = vpop.f32.mrf.mxu0
    %v648 = vadd.f32 %v625, %v647
    %649 = vmatmul.f32.gmra.mxu0 %v557
    %v650 = vpop.f32.mrf.mxu0
    %v651 = vadd.f32 %v625, %v650
    %652 = vmatmul.f32.gmra.mxu0 %v559
    %v653 = vpop.f32.mrf.mxu0
    %v654 = vadd.f32 %v625, %v653
    %655 = vdwg.mxu0
    %656 = vmatpush.msra.mxu0 %v623
    %657 = vmatpush.msra.mxu0 %v621
    %658 = vmatpush.msra.mxu0 %v619
    %659 = vmatpush.msra.mxu0 %v617
    %660 = vmatpush.msra.mxu0 %v615
    %661 = vmatpush.msra.mxu0 %v613
    %662 = vmatpush.msra.mxu0 %v611
    %663 = vmatpush.msra.mxu0 %v609
    %664 = vmatpush.msra.mxu0 %v607
    %665 = vmatpush.msra.mxu0 %v605
    %666 = vmatpush.msra.mxu0 %v603
    %667 = vmatpush.msra.mxu0 %v601
    %668 = vmatpush.msra.mxu0 %v599
    %669 = vmatpush.msra.mxu0 %v597
    %670 = vmatpush.msra.mxu0 %v595
    %671 = vmatpush.msra.mxu0 %v593
    %672 = vmatmul.f32.gmra.mxu0 %v554
    %v673 = vpop.f32.mrf.mxu0
    %v674 = vadd.f32 %v645, %v673
    %675 = vmatmul.f32.gmra.mxu0 %v556
    %v676 = vpop.f32.mrf.mxu0
    %v677 = vadd.f32 %v648, %v676
    %678 = vmatmul.f32.gmra.mxu0 %v558
    %v679 = vpop.f32.mrf.mxu0
    %v680 = vadd.f32 %v651, %v679
    %681 = vmatmul.f32.gmra.mxu0 %v560
    %v682 = vpop.f32.mrf.mxu0
    %v683 = vadd.f32 %v654, %v682
    %684 = vdwg.mxu0
    %685 = vmatpush.msra.mxu0 %v592
    %686 = vmatpush.msra.mxu0 %v590
    %687 = vmatpush.msra.mxu0 %v588
    %688 = vmatpush.msra.mxu0 %v586
    %689 = vmatpush.msra.mxu0 %v584
    %690 = vmatpush.msra.mxu0 %v582
    %691 = vmatpush.msra.mxu0 %v580
    %692 = vmatpush.msra.mxu0 %v578
    %693 = vmatpush.msra.mxu0 %v576
    %694 = vmatpush.msra.mxu0 %v574
    %695 = vmatpush.msra.mxu0 %v572
    %696 = vmatpush.msra.mxu0 %v570
    %697 = vmatpush.msra.mxu0 %v568
    %698 = vmatpush.msra.mxu0 %v566
    %699 = vmatpush.msra.mxu0 %v564
    %700 = vmatpush.msra.mxu0 %v562
    %701 = vmatmul.f32.gmra.mxu0 %v553
    %v702 = vpop.f32.mrf.mxu0
    %v703 = vadd.f32 %v626, %v702
    %704 = vmatmul.f32.gmra.mxu0 %v555
    %v705 = vpop.f32.mrf.mxu0
    %v706 = vadd.f32 %v626, %v705
    %707 = vmatmul.f32.gmra.mxu0 %v557
    %v708 = vpop.f32.mrf.mxu0
    %v709 = vadd.f32 %v626, %v708
    %710 = vmatmul.f32.gmra.mxu0 %v559
    %v711 = vpop.f32.mrf.mxu0
    %v712 = vadd.f32 %v626, %v711
    %713 = vdwg.mxu0
    %714 = vmatpush.msra.mxu0 %v624
    %715 = vmatpush.msra.mxu0 %v622
    %716 = vmatpush.msra.mxu0 %v620
    %717 = vmatpush.msra.mxu0 %v618
    %718 = vmatpush.msra.mxu0 %v616
    %719 = vmatpush.msra.mxu0 %v614
    %720 = vmatpush.msra.mxu0 %v612
    %721 = vmatpush.msra.mxu0 %v610
    %722 = vmatpush.msra.mxu0 %v608
    %723 = vmatpush.msra.mxu0 %v606
    %724 = vmatpush.msra.mxu0 %v604
    %725 = vmatpush.msra.mxu0 %v602
    %726 = vmatpush.msra.mxu0 %v600
    %727 = vmatpush.msra.mxu0 %v598
    %728 = vmatpush.msra.mxu0 %v596
    %729 = vmatpush.msra.mxu0 %v594
    %730 = vmatmul.f32.gmra.mxu0 %v554
    %v731 = vpop.f32.mrf.mxu0
    %v732 = vadd.f32 %v703, %v731
    %733 = vmatmul.f32.gmra.mxu0 %v556
    %v734 = vpop.f32.mrf.mxu0
    %v735 = vadd.f32 %v706, %v734
    %736 = vmatmul.f32.gmra.mxu0 %v558
    %v737 = vpop.f32.mrf.mxu0
    %v738 = vadd.f32 %v709, %v737
    %739 = vmatmul.f32.gmra.mxu0 %v560
    %v740 = vpop.f32.mrf.mxu0
    %v741 = vadd.f32 %v712, %v740
    %742 = vdwg.mxu0
    %v743 = vld [vmem:[%s1] sm:$0xff]
    %v744 = vld [vmem:[%s1 + $0x8] sm:$0xff]
    %v745 = vld [vmem:[%s1 + $0x10] sm:$0xff]
    %v746 = vld [vmem:[%s1 + $0x18] sm:$0xff]
    %v747 = vadd.f32 %v674, %v732
    %748 = vadd.xlane.f32.xlu0 %v747
    %v749 = vpop.xlane.xlu0 %748
    %v750 = vadd.f32 %v677, %v735
    %751 = vadd.xlane.f32.xlu0 %v750
    %v752 = vpop.xlane.xlu0 %751
    %v753 = vadd.f32 %v680, %v738
    %754 = vadd.xlane.f32.xlu0 %v753
    %v755 = vpop.xlane.xlu0 %754
    %v756 = vadd.f32 %v683, %v741
    %757 = vadd.xlane.f32.xlu0 %v756
    %v758 = vpop.xlane.xlu0 %757
    %v759 = vadd.f32 %v743, %v744
    %760 = vadd.xlane.f32.xlu0 %v759
    %v761 = vpop.xlane.xlu0 %760
    %v762 = vadd.f32 %v745, %v746
    %763 = vadd.xlane.f32.xlu0 %v762
    %v764 = vpop.xlane.xlu0 %763
    %v765 = vmul.f32 %v749, %v133
    %v766 = vmul.f32 %v752, %v133
    %v767 = vmul.f32 %v755, %v133
    %v768 = vmul.f32 %v758, %v133
    %v769 = vmul.f32 %v761, %v133
    %v770 = vmul.f32 %v764, %v133
    %v771 = vsub.f32 %v674, %v765
    %v772 = vsub.f32 %v732, %v765
    %v773 = vsub.f32 %v677, %v766
    %v774 = vsub.f32 %v735, %v766
    %v775 = vsub.f32 %v680, %v767
    %v776 = vsub.f32 %v738, %v767
    %v777 = vsub.f32 %v683, %v768
    %v778 = vsub.f32 %v741, %v768
    %v779 = vsub.f32 %v743, %v769
    %v780 = vsub.f32 %v744, %v769
    %v781 = vsub.f32 %v745, %v770
    %v782 = vsub.f32 %v746, %v770
    %v783 = vmul.f32 %v771, %v771
    %v784 = vmul.f32 %v772, %v772
    %v785 = vmul.f32 %v773, %v773
    %v786 = vmul.f32 %v774, %v774
    %v787 = vmul.f32 %v775, %v775
    %v788 = vmul.f32 %v776, %v776
    %v789 = vmul.f32 %v777, %v777
    %v790 = vmul.f32 %v778, %v778
    %v791 = vmul.f32 %v779, %v779
    %v792 = vmul.f32 %v780, %v780
    %v793 = vmul.f32 %v781, %v781
    %v794 = vmul.f32 %v782, %v782
    %v795 = vadd.f32 %v783, %v784
    %796 = vadd.xlane.f32.xlu0 %v795
    %v797 = vpop.xlane.xlu0 %796
    %v798 = vadd.f32 %v785, %v786
    %799 = vadd.xlane.f32.xlu0 %v798
    %v800 = vpop.xlane.xlu0 %799
    %v801 = vadd.f32 %v787, %v788
    %802 = vadd.xlane.f32.xlu0 %v801
    %v803 = vpop.xlane.xlu0 %802
    %v804 = vadd.f32 %v789, %v790
    %805 = vadd.xlane.f32.xlu0 %v804
    %v806 = vpop.xlane.xlu0 %805
    %v807 = vadd.f32 %v791, %v792
    %808 = vadd.xlane.f32.xlu0 %v807
    %v809 = vpop.xlane.xlu0 %808
    %v810 = vadd.f32 %v793, %v794
    %811 = vadd.xlane.f32.xlu0 %v810
    %v812 = vpop.xlane.xlu0 %811
    %v813 = vmul.f32 %v797, %v133
    %v814 = vmul.f32 %v800, %v133
    %v815 = vmul.f32 %v803, %v133
    %v816 = vmul.f32 %v806, %v133
    %v817 = vmul.f32 %v809, %v133
    %v818 = vmul.f32 %v812, %v133
    %v819 = vadd.f32 %v813, 1e-05
    %v820 = vadd.f32 %v814, 1e-05
    %v821 = vadd.f32 %v815, 1e-05
    %v822 = vadd.f32 %v816, 1e-05
    %v823 = vadd.f32 %v817, 1e-05
    %v824 = vadd.f32 %v818, 1e-05
    %v825 = vrsqrt.pop %v819
    %v826 = vmul.f32 %v825, %v819
    %v827 = vmul.f32 %v826, %v825
    %v828 = vmul.f32 0.5, %v827
    %v829 = vsub.f32 1.5, %v828
    %v830 = vmul.f32 %v825, %v829
    %vm831 = vweird.f32 %v819
    %vm832 = vweird.f32 %v825
    %vm833 = vmor %vm831, %vm832
    %v834 = vsel %vm833, %v825, %v830
    %v835 = vrsqrt.pop %v820
    %v836 = vmul.f32 %v835, %v820
    %v837 = vmul.f32 %v836, %v835
    %v838 = vmul.f32 0.5, %v837
    %v839 = vsub.f32 1.5, %v838
    %v840 = vmul.f32 %v835, %v839
    %vm841 = vweird.f32 %v820
    %vm842 = vweird.f32 %v835
    %vm843 = vmor %vm841, %vm842
    %v844 = vsel %vm843, %v835, %v840
    %v845 = vrsqrt.pop %v821
    %v846 = vmul.f32 %v845, %v821
    %v847 = vmul.f32 %v846, %v845
    %v848 = vmul.f32 0.5, %v847
    %v849 = vsub.f32 1.5, %v848
    %v850 = vmul.f32 %v845, %v849
    %vm851 = vweird.f32 %v821
    %vm852 = vweird.f32 %v845
    %vm853 = vmor %vm851, %vm852
    %v854 = vsel %vm853, %v845, %v850
    %v855 = vrsqrt.pop %v822
    %v856 = vmul.f32 %v855, %v822
    %v857 = vmul.f32 %v856, %v855
    %v858 = vmul.f32 0.5, %v857
    %v859 = vsub.f32 1.5, %v858
    %v860 = vmul.f32 %v855, %v859
    %vm861 = vweird.f32 %v822
    %vm862 = vweird.f32 %v855
    %vm863 = vmor %vm861, %vm862
    %v864 = vsel %vm863, %v855, %v860
    %v865 = vrsqrt.pop %v823
    %v866 = vmul.f32 %v865, %v823
    %v867 = vmul.f32 %v866, %v865
    %v868 = vmul.f32 0.5, %v867
    %v869 = vsub.f32 1.5, %v868
    %v870 = vmul.f32 %v865, %v869
    %vm871 = vweird.f32 %v823
    %vm872 = vweird.f32 %v865
    %vm873 = vmor %vm871, %vm872
    %v874 = vsel %vm873, %v865, %v870
    %v875 = vrsqrt.pop %v824
    %v876 = vmul.f32 %v875, %v824
    %v877 = vmul.f32 %v876, %v875
    %v878 = vmul.f32 0.5, %v877
    %v879 = vsub.f32 1.5, %v878
    %v880 = vmul.f32 %v875, %v879
    %vm881 = vweird.f32 %v824
    %vm882 = vweird.f32 %v875
    %vm883 = vmor %vm881, %vm882
    %v884 = vsel %vm883, %v875, %v880
    %v885 = vmul.f32 %v771, %v834
    %v886 = vmul.f32 %v772, %v834
    %v887 = vmul.f32 %v773, %v844
    %v888 = vmul.f32 %v774, %v844
    %v889 = vmul.f32 %v775, %v854
    %v890 = vmul.f32 %v776, %v854
    %v891 = vmul.f32 %v777, %v864
    %v892 = vmul.f32 %v778, %v864
    %v893 = vmul.f32 %v779, %v874
    %v894 = vmul.f32 %v780, %v874
    %v895 = vmul.f32 %v781, %v884
    %v896 = vmul.f32 %v782, %v884
    %v897 = vperm.slane %v103, 4
    %v898 = vperm.slane %v104, 4
    %v899 = vmul.f32 %v885, %v897
    %v900 = vmul.f32 %v886, %v898
    %v901 = vmul.f32 %v887, %v897
    %v902 = vmul.f32 %v888, %v898
    %v903 = vmul.f32 %v889, %v897
    %v904 = vmul.f32 %v890, %v898
    %v905 = vmul.f32 %v891, %v897
    %v906 = vmul.f32 %v892, %v898
    %v907 = vmul.f32 %v893, %v897
    %v908 = vmul.f32 %v894, %v898
    %v909 = vmul.f32 %v895, %v897
    %v910 = vmul.f32 %v896, %v898
    %v911 = vperm.slane %v103, 5
    %v912 = vperm.slane %v104, 5
    %v913 = vadd.f32 %v899, %v911
    %v914 = vadd.f32 %v900, %v912
    %v915 = vadd.f32 %v901, %v911
    %v916 = vadd.f32 %v902, %v912
    %v917 = vadd.f32 %v903, %v911
    %v918 = vadd.f32 %v904, %v912
    %v919 = vadd.f32 %v905, %v911
    %v920 = vadd.f32 %v906, %v912
    %v921 = vadd.f32 %v907, %v911
    %v922 = vadd.f32 %v908, %v912
    %v923 = vadd.f32 %v909, %v911
    %v924 = vadd.f32 %v910, %v912
    %v925 = vld [vmem:[%s2] sm:$0xff]
    %v926 = vld [vmem:[%s2 + $0x8] sm:$0xff]
    %v927 = vld [vmem:[%s2 + $0x10] sm:$0xff]
    %v928 = vld [vmem:[%s2 + $0x18] sm:$0xff]
    %v929 = vld [vmem:[%s2 + $0x20] sm:$0xff]
    %v930 = vld [vmem:[%s2 + $0x28] sm:$0xff]
    %v931 = vld [vmem:[%s2 + $0x30] sm:$0xff]
    %v932 = vld [vmem:[%s2 + $0x38] sm:$0xff]
    %v933 = vld [vmem:[%s2 + $0x40] sm:$0xff]
    %v934 = vld [vmem:[%s2 + $0x48] sm:$0xff]
    %v935 = vld [vmem:[%s2 + $0x50] sm:$0xff]
    %v936 = vld [vmem:[%s2 + $0x58] sm:$0xff]
    %v937 = vadd.f32 %v913, %v925
    %v938 = vadd.f32 %v914, %v926
    %v939 = vadd.f32 %v915, %v927
    %v940 = vadd.f32 %v916, %v928
    %v941 = vadd.f32 %v917, %v929
    %v942 = vadd.f32 %v918, %v930
    %v943 = vadd.f32 %v919, %v931
    %v944 = vadd.f32 %v920, %v932
    %v945 = vadd.f32 %v921, %v933
    %v946 = vadd.f32 %v922, %v934
    %v947 = vadd.f32 %v923, %v935
    %v948 = vadd.f32 %v924, %v936
    %v949 = vadd.f32 %v674, %v937
    %v950 = vadd.f32 %v732, %v938
    %v951 = vadd.f32 %v677, %v939
    %v952 = vadd.f32 %v735, %v940
    %v953 = vadd.f32 %v680, %v941
    %v954 = vadd.f32 %v738, %v942
    %v955 = vadd.f32 %v683, %v943
    %v956 = vadd.f32 %v741, %v944
    %v957 = vadd.f32 %v743, %v945
    %v958 = vadd.f32 %v744, %v946
    %v959 = vadd.f32 %v745, %v947
    %v960 = vadd.f32 %v746, %v948
    %v961 = vadd.f32 %v949, %v950
    %962 = vadd.xlane.f32.xlu0 %v961
    %v963 = vpop.xlane.xlu0 %962
    %v964 = vadd.f32 %v951, %v952
    %965 = vadd.xlane.f32.xlu0 %v964
    %v966 = vpop.xlane.xlu0 %965
    %v967 = vadd.f32 %v953, %v954
    %968 = vadd.xlane.f32.xlu0 %v967
    %v969 = vpop.xlane.xlu0 %968
    %v970 = vadd.f32 %v955, %v956
    %971 = vadd.xlane.f32.xlu0 %v970
    %v972 = vpop.xlane.xlu0 %971
    %v973 = vadd.f32 %v957, %v958
    %974 = vadd.xlane.f32.xlu0 %v973
    %v975 = vpop.xlane.xlu0 %974
    %v976 = vadd.f32 %v959, %v960
    %977 = vadd.xlane.f32.xlu0 %v976
    %v978 = vpop.xlane.xlu0 %977
    %v979 = vmul.f32 %v963, %v133
    %v980 = vmul.f32 %v966, %v133
    %v981 = vmul.f32 %v969, %v133
    %v982 = vmul.f32 %v972, %v133
    %v983 = vmul.f32 %v975, %v133
    %v984 = vmul.f32 %v978, %v133
    %v985 = vsub.f32 %v949, %v979
    %v986 = vsub.f32 %v950, %v979
    %v987 = vsub.f32 %v951, %v980
    %v988 = vsub.f32 %v952, %v980
    %v989 = vsub.f32 %v953, %v981
    %v990 = vsub.f32 %v954, %v981
    %v991 = vsub.f32 %v955, %v982
    %v992 = vsub.f32 %v956, %v982
    %v993 = vsub.f32 %v957, %v983
    %v994 = vsub.f32 %v958, %v983
    %v995 = vsub.f32 %v959, %v984
    %v996 = vsub.f32 %v960, %v984
    %v997 = vmul.f32 %v985, %v985
    %v998 = vmul.f32 %v986, %v986
    %v999 = vmul.f32 %v987, %v987
    %v1000 = vmul.f32 %v988, %v988
    %v1001 = vmul.f32 %v989, %v989
    %v1002 = vmul.f32 %v990, %v990
    %v1003 = vmul.f32 %v991, %v991
    %v1004 = vmul.f32 %v992, %v992
    %v1005 = vmul.f32 %v993, %v993
    %v1006 = vmul.f32 %v994, %v994
    %v1007 = vmul.f32 %v995, %v995
    %v1008 = vmul.f32 %v996, %v996
    %v1009 = vadd.f32 %v997, %v998
    %1010 = vadd.xlane.f32.xlu0 %v1009
    %v1011 = vpop.xlane.xlu0 %1010
    %v1012 = vadd.f32 %v999, %v1000
    %1013 = vadd.xlane.f32.xlu0 %v1012
    %v1014 = vpop.xlane.xlu0 %1013
    %v1015 = vadd.f32 %v1001, %v1002
    %1016 = vadd.xlane.f32.xlu0 %v1015
    %v1017 = vpop.xlane.xlu0 %1016
    %v1018 = vadd.f32 %v1003, %v1004
    %1019 = vadd.xlane.f32.xlu0 %v1018
    %v1020 = vpop.xlane.xlu0 %1019
    %v1021 = vadd.f32 %v1005, %v1006
    %1022 = vadd.xlane.f32.xlu0 %v1021
    %v1023 = vpop.xlane.xlu0 %1022
    %v1024 = vadd.f32 %v1007, %v1008
    %1025 = vadd.xlane.f32.xlu0 %v1024
    %v1026 = vpop.xlane.xlu0 %1025
    %v1027 = vmul.f32 %v1011, %v133
    %v1028 = vmul.f32 %v1014, %v133
    %v1029 = vmul.f32 %v1017, %v133
    %v1030 = vmul.f32 %v1020, %v133
    %v1031 = vmul.f32 %v1023, %v133
    %v1032 = vmul.f32 %v1026, %v133
    %v1033 = vadd.f32 %v1027, 1e-05
    %v1034 = vadd.f32 %v1028, 1e-05
    %v1035 = vadd.f32 %v1029, 1e-05
    %v1036 = vadd.f32 %v1030, 1e-05
    %v1037 = vadd.f32 %v1031, 1e-05
    %v1038 = vadd.f32 %v1032, 1e-05
    %v1039 = vrsqrt.pop %v1033
    %v1040 = vmul.f32 %v1039, %v1033
    %v1041 = vmul.f32 %v1040, %v1039
    %v1042 = vmul.f32 0.5, %v1041
    %v1043 = vsub.f32 1.5, %v1042
    %v1044 = vmul.f32 %v1039, %v1043
    %vm1045 = vweird.f32 %v1033
    %vm1046 = vweird.f32 %v1039
    %vm1047 = vmor %vm1045, %vm1046
    %v1048 = vsel %vm1047, %v1039, %v1044
    %v1049 = vrsqrt.pop %v1034
    %v1050 = vmul.f32 %v1049, %v1034
    %v1051 = vmul.f32 %v1050, %v1049
    %v1052 = vmul.f32 0.5, %v1051
    %v1053 = vsub.f32 1.5, %v1052
    %v1054 = vmul.f32 %v1049, %v1053
    %vm1055 = vweird.f32 %v1034
    %vm1056 = vweird.f32 %v1049
    %vm1057 = vmor %vm1055, %vm1056
    %v1058 = vsel %vm1057, %v1049, %v1054
    %v1059 = vrsqrt.pop %v1035
    %v1060 = vmul.f32 %v1059, %v1035
    %v1061 = vmul.f32 %v1060, %v1059
    %v1062 = vmul.f32 0.5, %v1061
    %v1063 = vsub.f32 1.5, %v1062
    %v1064 = vmul.f32 %v1059, %v1063
    %vm1065 = vweird.f32 %v1035
    %vm1066 = vweird.f32 %v1059
    %vm1067 = vmor %vm1065, %vm1066
    %v1068 = vsel %vm1067, %v1059, %v1064
    %v1069 = vrsqrt.pop %v1036
    %v1070 = vmul.f32 %v1069, %v1036
    %v1071 = vmul.f32 %v1070, %v1069
    %v1072 = vmul.f32 0.5, %v1071
    %v1073 = vsub.f32 1.5, %v1072
    %v1074 = vmul.f32 %v1069, %v1073
    %vm1075 = vweird.f32 %v1036
    %vm1076 = vweird.f32 %v1069
    %vm1077 = vmor %vm1075, %vm1076
    %v1078 = vsel %vm1077, %v1069, %v1074
    %v1079 = vrsqrt.pop %v1037
    %v1080 = vmul.f32 %v1079, %v1037
    %v1081 = vmul.f32 %v1080, %v1079
    %v1082 = vmul.f32 0.5, %v1081
    %v1083 = vsub.f32 1.5, %v1082
    %v1084 = vmul.f32 %v1079, %v1083
    %vm1085 = vweird.f32 %v1037
    %vm1086 = vweird.f32 %v1079
    %vm1087 = vmor %vm1085, %vm1086
    %v1088 = vsel %vm1087, %v1079, %v1084
    %v1089 = vrsqrt.pop %v1038
    %v1090 = vmul.f32 %v1089, %v1038
    %v1091 = vmul.f32 %v1090, %v1089
    %v1092 = vmul.f32 0.5, %v1091
    %v1093 = vsub.f32 1.5, %v1092
    %v1094 = vmul.f32 %v1089, %v1093
    %vm1095 = vweird.f32 %v1038
    %vm1096 = vweird.f32 %v1089
    %vm1097 = vmor %vm1095, %vm1096
    %v1098 = vsel %vm1097, %v1089, %v1094
    %v1099 = vmul.f32 %v985, %v1048
    %v1100 = vmul.f32 %v986, %v1048
    %v1101 = vmul.f32 %v987, %v1058
    %v1102 = vmul.f32 %v988, %v1058
    %v1103 = vmul.f32 %v989, %v1068
    %v1104 = vmul.f32 %v990, %v1068
    %v1105 = vmul.f32 %v991, %v1078
    %v1106 = vmul.f32 %v992, %v1078
    %v1107 = vmul.f32 %v993, %v1088
    %v1108 = vmul.f32 %v994, %v1088
    %v1109 = vmul.f32 %v995, %v1098
    %v1110 = vmul.f32 %v996, %v1098
    %v1111 = vperm.slane %v103, 6
    %v1112 = vperm.slane %v104, 6
    %v1113 = vmul.f32 %v1099, %v1111
    %v1114 = vmul.f32 %v1100, %v1112
    %v1115 = vmul.f32 %v1101, %v1111
    %v1116 = vmul.f32 %v1102, %v1112
    %v1117 = vmul.f32 %v1103, %v1111
    %v1118 = vmul.f32 %v1104, %v1112
    %v1119 = vmul.f32 %v1105, %v1111
    %v1120 = vmul.f32 %v1106, %v1112
    %v1121 = vmul.f32 %v1107, %v1111
    %v1122 = vmul.f32 %v1108, %v1112
    %v1123 = vmul.f32 %v1109, %v1111
    %v1124 = vmul.f32 %v1110, %v1112
    %v1125 = vperm.slane %v103, 7
    %v1126 = vperm.slane %v104, 7
    %v1127 = vadd.f32 %v1113, %v1125
    %v1128 = vadd.f32 %v1114, %v1126
    %v1129 = vadd.f32 %v1115, %v1125
    %v1130 = vadd.f32 %v1116, %v1126
    %v1131 = vadd.f32 %v1117, %v1125
    %v1132 = vadd.f32 %v1118, %v1126
    %v1133 = vadd.f32 %v1119, %v1125
    %v1134 = vadd.f32 %v1120, %v1126
    %v1135 = vadd.f32 %v1121, %v1125
    %v1136 = vadd.f32 %v1122, %v1126
    %v1137 = vadd.f32 %v1123, %v1125
    %v1138 = vadd.f32 %v1124, %v1126
    %v1139 = vld [vmem:[#allocation7] sm:$0xff]
    %v1140 = vld [vmem:[#allocation7 + $0x8] sm:$0xff]
    %v1141 = vld [vmem:[#allocation7 + $0x10] sm:$0xff]
    %v1142 = vld [vmem:[#allocation7 + $0x18] sm:$0xff]
    %v1143 = vld [vmem:[#allocation7 + $0x20] sm:$0xff]
    %v1144 = vld [vmem:[#allocation7 + $0x28] sm:$0xff]
    %v1145 = vld [vmem:[#allocation7 + $0x30] sm:$0xff]
    %v1146 = vld [vmem:[#allocation7 + $0x38] sm:$0xff]
    %v1147 = vld [vmem:[#allocation7 + $0x40] sm:$0xff]
    %v1148 = vld [vmem:[#allocation7 + $0x48] sm:$0xff]
    %v1149 = vld [vmem:[#allocation7 + $0x50] sm:$0xff]
    %v1150 = vld [vmem:[#allocation7 + $0x58] sm:$0xff]
    %v1151 = vld [vmem:[#allocation7 + $0x60] sm:$0xff]
    %v1152 = vld [vmem:[#allocation7 + $0x68] sm:$0xff]
    %v1153 = vld [vmem:[#allocation7 + $0x70] sm:$0xff]
    %v1154 = vld [vmem:[#allocation7 + $0x78] sm:$0xff]
    %v1155 = vld [vmem:[#allocation7 + $0x80] sm:$0xff]
    %v1156 = vld [vmem:[#allocation7 + $0x88] sm:$0xff]
    %v1157 = vld [vmem:[#allocation7 + $0x90] sm:$0xff]
    %v1158 = vld [vmem:[#allocation7 + $0x98] sm:$0xff]
    %v1159 = vld [vmem:[#allocation7 + $0xa0] sm:$0xff]
    %v1160 = vld [vmem:[#allocation7 + $0xa8] sm:$0xff]
    %v1161 = vld [vmem:[#allocation7 + $0xb0] sm:$0xff]
    %v1162 = vld [vmem:[#allocation7 + $0xb8] sm:$0xff]
    %v1163 = vld [vmem:[#allocation7 + $0xc0] sm:$0xff]
    %v1164 = vld [vmem:[#allocation7 + $0xc8] sm:$0xff]
    %v1165 = vld [vmem:[#allocation7 + $0xd0] sm:$0xff]
    %v1166 = vld [vmem:[#allocation7 + $0xd8] sm:$0xff]
    %v1167 = vld [vmem:[#allocation7 + $0xe0] sm:$0xff]
    %v1168 = vld [vmem:[#allocation7 + $0xe8] sm:$0xff]
    %v1169 = vld [vmem:[#allocation7 + $0xf0] sm:$0xff]
    %v1170 = vld [vmem:[#allocation7 + $0xf8] sm:$0xff]
    %v1171 = vld [vmem:[#allocation7 + $0x100] sm:$0xff]
    %v1172 = vld [vmem:[#allocation7 + $0x108] sm:$0xff]
    %v1173 = vld [vmem:[#allocation7 + $0x110] sm:$0xff]
    %v1174 = vld [vmem:[#allocation7 + $0x118] sm:$0xff]
    %v1175 = vld [vmem:[#allocation7 + $0x120] sm:$0xff]
    %v1176 = vld [vmem:[#allocation7 + $0x128] sm:$0xff]
    %v1177 = vld [vmem:[#allocation7 + $0x130] sm:$0xff]
    %v1178 = vld [vmem:[#allocation7 + $0x138] sm:$0xff]
    %v1179 = vld [vmem:[#allocation7 + $0x140] sm:$0xff]
    %v1180 = vld [vmem:[#allocation7 + $0x148] sm:$0xff]
    %v1181 = vld [vmem:[#allocation7 + $0x150] sm:$0xff]
    %v1182 = vld [vmem:[#allocation7 + $0x158] sm:$0xff]
    %v1183 = vld [vmem:[#allocation7 + $0x160] sm:$0xff]
    %v1184 = vld [vmem:[#allocation7 + $0x168] sm:$0xff]
    %v1185 = vld [vmem:[#allocation7 + $0x170] sm:$0xff]
    %v1186 = vld [vmem:[#allocation7 + $0x178] sm:$0xff]
    %v1187 = vld [vmem:[#allocation7 + $0x180] sm:$0xff]
    %v1188 = vld [vmem:[#allocation7 + $0x188] sm:$0xff]
    %v1189 = vld [vmem:[#allocation7 + $0x190] sm:$0xff]
    %v1190 = vld [vmem:[#allocation7 + $0x198] sm:$0xff]
    %v1191 = vld [vmem:[#allocation7 + $0x1a0] sm:$0xff]
    %v1192 = vld [vmem:[#allocation7 + $0x1a8] sm:$0xff]
    %v1193 = vld [vmem:[#allocation7 + $0x1b0] sm:$0xff]
    %v1194 = vld [vmem:[#allocation7 + $0x1b8] sm:$0xff]
    %v1195 = vld [vmem:[#allocation7 + $0x1c0] sm:$0xff]
    %v1196 = vld [vmem:[#allocation7 + $0x1c8] sm:$0xff]
    %v1197 = vld [vmem:[#allocation7 + $0x1d0] sm:$0xff]
    %v1198 = vld [vmem:[#allocation7 + $0x1d8] sm:$0xff]
    %v1199 = vld [vmem:[#allocation7 + $0x1e0] sm:$0xff]
    %v1200 = vld [vmem:[#allocation7 + $0x1e8] sm:$0xff]
    %v1201 = vld [vmem:[#allocation7 + $0x1f0] sm:$0xff]
    %v1202 = vld [vmem:[#allocation7 + $0x1f8] sm:$0xff]
    %v1203 = vld [vmem:[#allocation7 + $0x200] sm:$0xff]
    %v1204 = vld [vmem:[#allocation7 + $0x208] sm:$0xff]
    %v1205 = vld [vmem:[#allocation7 + $0x210] sm:$0xff]
    %v1206 = vld [vmem:[#allocation7 + $0x218] sm:$0xff]
    %v1207 = vld [vmem:[#allocation7 + $0x220] sm:$0xff]
    %v1208 = vld [vmem:[#allocation7 + $0x228] sm:$0xff]
    %v1209 = vld [vmem:[#allocation7 + $0x230] sm:$0xff]
    %v1210 = vld [vmem:[#allocation7 + $0x238] sm:$0xff]
    %v1211 = vld [vmem:[#allocation7 + $0x240] sm:$0xff]
    %v1212 = vld [vmem:[#allocation7 + $0x248] sm:$0xff]
    %v1213 = vld [vmem:[#allocation7 + $0x250] sm:$0xff]
    %v1214 = vld [vmem:[#allocation7 + $0x258] sm:$0xff]
    %v1215 = vld [vmem:[#allocation7 + $0x260] sm:$0xff]
    %v1216 = vld [vmem:[#allocation7 + $0x268] sm:$0xff]
    %v1217 = vld [vmem:[#allocation7 + $0x270] sm:$0xff]
    %v1218 = vld [vmem:[#allocation7 + $0x278] sm:$0xff]
    %v1219 = vld [vmem:[#allocation7 + $0x280] sm:$0xff]
    %v1220 = vld [vmem:[#allocation7 + $0x288] sm:$0xff]
    %v1221 = vld [vmem:[#allocation7 + $0x290] sm:$0xff]
    %v1222 = vld [vmem:[#allocation7 + $0x298] sm:$0xff]
    %v1223 = vld [vmem:[#allocation7 + $0x2a0] sm:$0xff]
    %v1224 = vld [vmem:[#allocation7 + $0x2a8] sm:$0xff]
    %v1225 = vld [vmem:[#allocation7 + $0x2b0] sm:$0xff]
    %v1226 = vld [vmem:[#allocation7 + $0x2b8] sm:$0xff]
    %v1227 = vld [vmem:[#allocation7 + $0x2c0] sm:$0xff]
    %v1228 = vld [vmem:[#allocation7 + $0x2c8] sm:$0xff]
    %v1229 = vld [vmem:[#allocation7 + $0x2d0] sm:$0xff]
    %v1230 = vld [vmem:[#allocation7 + $0x2d8] sm:$0xff]
    %v1231 = vld [vmem:[#allocation7 + $0x2e0] sm:$0xff]
    %v1232 = vld [vmem:[#allocation7 + $0x2e8] sm:$0xff]
    %v1233 = vld [vmem:[#allocation7 + $0x2f0] sm:$0xff]
    %v1234 = vld [vmem:[#allocation7 + $0x2f8] sm:$0xff]
    %v1235 = vld [vmem:[#allocation7 + $0x300] sm:$0xff]
    %v1236 = vld [vmem:[#allocation7 + $0x308] sm:$0xff]
    %v1237 = vld [vmem:[#allocation7 + $0x310] sm:$0xff]
    %v1238 = vld [vmem:[#allocation7 + $0x318] sm:$0xff]
    %v1239 = vld [vmem:[#allocation7 + $0x320] sm:$0xff]
    %v1240 = vld [vmem:[#allocation7 + $0x328] sm:$0xff]
    %v1241 = vld [vmem:[#allocation7 + $0x330] sm:$0xff]
    %v1242 = vld [vmem:[#allocation7 + $0x338] sm:$0xff]
    %v1243 = vld [vmem:[#allocation7 + $0x340] sm:$0xff]
    %v1244 = vld [vmem:[#allocation7 + $0x348] sm:$0xff]
    %v1245 = vld [vmem:[#allocation7 + $0x350] sm:$0xff]
    %v1246 = vld [vmem:[#allocation7 + $0x358] sm:$0xff]
    %v1247 = vld [vmem:[#allocation7 + $0x360] sm:$0xff]
    %v1248 = vld [vmem:[#allocation7 + $0x368] sm:$0xff]
    %v1249 = vld [vmem:[#allocation7 + $0x370] sm:$0xff]
    %v1250 = vld [vmem:[#allocation7 + $0x378] sm:$0xff]
    %v1251 = vld [vmem:[#allocation7 + $0x380] sm:$0xff]
    %v1252 = vld [vmem:[#allocation7 + $0x388] sm:$0xff]
    %v1253 = vld [vmem:[#allocation7 + $0x390] sm:$0xff]
    %v1254 = vld [vmem:[#allocation7 + $0x398] sm:$0xff]
    %v1255 = vld [vmem:[#allocation7 + $0x3a0] sm:$0xff]
    %v1256 = vld [vmem:[#allocation7 + $0x3a8] sm:$0xff]
    %v1257 = vld [vmem:[#allocation7 + $0x3b0] sm:$0xff]
    %v1258 = vld [vmem:[#allocation7 + $0x3b8] sm:$0xff]
    %v1259 = vld [vmem:[#allocation7 + $0x3c0] sm:$0xff]
    %v1260 = vld [vmem:[#allocation7 + $0x3c8] sm:$0xff]
    %v1261 = vld [vmem:[#allocation7 + $0x3d0] sm:$0xff]
    %v1262 = vld [vmem:[#allocation7 + $0x3d8] sm:$0xff]
    %v1263 = vld [vmem:[#allocation7 + $0x3e0] sm:$0xff]
    %v1264 = vld [vmem:[#allocation7 + $0x3e8] sm:$0xff]
    %v1265 = vld [vmem:[#allocation7 + $0x3f0] sm:$0xff]
    %v1266 = vld [vmem:[#allocation7 + $0x3f8] sm:$0xff]
    %v1267 = vld [vmem:[#allocation7 + $0x400] sm:$0xff]
    %v1268 = vld [vmem:[#allocation7 + $0x408] sm:$0xff]
    %v1269 = vld [vmem:[#allocation7 + $0x410] sm:$0xff]
    %v1270 = vld [vmem:[#allocation7 + $0x418] sm:$0xff]
    %v1271 = vld [vmem:[#allocation7 + $0x420] sm:$0xff]
    %v1272 = vld [vmem:[#allocation7 + $0x428] sm:$0xff]
    %v1273 = vld [vmem:[#allocation7 + $0x430] sm:$0xff]
    %v1274 = vld [vmem:[#allocation7 + $0x438] sm:$0xff]
    %v1275 = vld [vmem:[#allocation7 + $0x440] sm:$0xff]
    %v1276 = vld [vmem:[#allocation7 + $0x448] sm:$0xff]
    %v1277 = vld [vmem:[#allocation7 + $0x450] sm:$0xff]
    %v1278 = vld [vmem:[#allocation7 + $0x458] sm:$0xff]
    %v1279 = vld [vmem:[#allocation7 + $0x460] sm:$0xff]
    %v1280 = vld [vmem:[#allocation7 + $0x468] sm:$0xff]
    %v1281 = vld [vmem:[#allocation7 + $0x470] sm:$0xff]
    %v1282 = vld [vmem:[#allocation7 + $0x478] sm:$0xff]
    %v1283 = vld [vmem:[#allocation7 + $0x480] sm:$0xff]
    %v1284 = vld [vmem:[#allocation7 + $0x488] sm:$0xff]
    %v1285 = vld [vmem:[#allocation7 + $0x490] sm:$0xff]
    %v1286 = vld [vmem:[#allocation7 + $0x498] sm:$0xff]
    %v1287 = vld [vmem:[#allocation7 + $0x4a0] sm:$0xff]
    %v1288 = vld [vmem:[#allocation7 + $0x4a8] sm:$0xff]
    %v1289 = vld [vmem:[#allocation7 + $0x4b0] sm:$0xff]
    %v1290 = vld [vmem:[#allocation7 + $0x4b8] sm:$0xff]
    %v1291 = vld [vmem:[#allocation7 + $0x4c0] sm:$0xff]
    %v1292 = vld [vmem:[#allocation7 + $0x4c8] sm:$0xff]
    %v1293 = vld [vmem:[#allocation7 + $0x4d0] sm:$0xff]
    %v1294 = vld [vmem:[#allocation7 + $0x4d8] sm:$0xff]
    %v1295 = vld [vmem:[#allocation7 + $0x4e0] sm:$0xff]
    %v1296 = vld [vmem:[#allocation7 + $0x4e8] sm:$0xff]
    %v1297 = vld [vmem:[#allocation7 + $0x4f0] sm:$0xff]
    %v1298 = vld [vmem:[#allocation7 + $0x4f8] sm:$0xff]
    %v1299 = vld [vmem:[#allocation7 + $0x500] sm:$0xff]
    %v1300 = vld [vmem:[#allocation7 + $0x508] sm:$0xff]
    %v1301 = vld [vmem:[#allocation7 + $0x510] sm:$0xff]
    %v1302 = vld [vmem:[#allocation7 + $0x518] sm:$0xff]
    %v1303 = vld [vmem:[#allocation7 + $0x520] sm:$0xff]
    %v1304 = vld [vmem:[#allocation7 + $0x528] sm:$0xff]
    %v1305 = vld [vmem:[#allocation7 + $0x530] sm:$0xff]
    %v1306 = vld [vmem:[#allocation7 + $0x538] sm:$0xff]
    %v1307 = vld [vmem:[#allocation7 + $0x540] sm:$0xff]
    %v1308 = vld [vmem:[#allocation7 + $0x548] sm:$0xff]
    %v1309 = vld [vmem:[#allocation7 + $0x550] sm:$0xff]
    %v1310 = vld [vmem:[#allocation7 + $0x558] sm:$0xff]
    %v1311 = vld [vmem:[#allocation7 + $0x560] sm:$0xff]
    %v1312 = vld [vmem:[#allocation7 + $0x568] sm:$0xff]
    %v1313 = vld [vmem:[#allocation7 + $0x570] sm:$0xff]
    %v1314 = vld [vmem:[#allocation7 + $0x578] sm:$0xff]
    %v1315 = vld [vmem:[#allocation7 + $0x580] sm:$0xff]
    %v1316 = vld [vmem:[#allocation7 + $0x588] sm:$0xff]
    %v1317 = vld [vmem:[#allocation7 + $0x590] sm:$0xff]
    %v1318 = vld [vmem:[#allocation7 + $0x598] sm:$0xff]
    %v1319 = vld [vmem:[#allocation7 + $0x5a0] sm:$0xff]
    %v1320 = vld [vmem:[#allocation7 + $0x5a8] sm:$0xff]
    %v1321 = vld [vmem:[#allocation7 + $0x5b0] sm:$0xff]
    %v1322 = vld [vmem:[#allocation7 + $0x5b8] sm:$0xff]
    %v1323 = vld [vmem:[#allocation7 + $0x5c0] sm:$0xff]
    %v1324 = vld [vmem:[#allocation7 + $0x5c8] sm:$0xff]
    %v1325 = vld [vmem:[#allocation7 + $0x5d0] sm:$0xff]
    %v1326 = vld [vmem:[#allocation7 + $0x5d8] sm:$0xff]
    %v1327 = vld [vmem:[#allocation7 + $0x5e0] sm:$0xff]
    %v1328 = vld [vmem:[#allocation7 + $0x5e8] sm:$0xff]
    %v1329 = vld [vmem:[#allocation7 + $0x5f0] sm:$0xff]
    %v1330 = vld [vmem:[#allocation7 + $0x5f8] sm:$0xff]
    %v1331 = vld [vmem:[#allocation7 + $0x600] sm:$0xff]
    %v1332 = vld [vmem:[#allocation7 + $0x608] sm:$0xff]
    %v1333 = vld [vmem:[#allocation7 + $0x610] sm:$0xff]
    %v1334 = vld [vmem:[#allocation7 + $0x618] sm:$0xff]
    %v1335 = vld [vmem:[#allocation7 + $0x620] sm:$0xff]
    %v1336 = vld [vmem:[#allocation7 + $0x628] sm:$0xff]
    %v1337 = vld [vmem:[#allocation7 + $0x630] sm:$0xff]
    %v1338 = vld [vmem:[#allocation7 + $0x638] sm:$0xff]
    %v1339 = vld [vmem:[#allocation7 + $0x640] sm:$0xff]
    %v1340 = vld [vmem:[#allocation7 + $0x648] sm:$0xff]
    %v1341 = vld [vmem:[#allocation7 + $0x650] sm:$0xff]
    %v1342 = vld [vmem:[#allocation7 + $0x658] sm:$0xff]
    %v1343 = vld [vmem:[#allocation7 + $0x660] sm:$0xff]
    %v1344 = vld [vmem:[#allocation7 + $0x668] sm:$0xff]
    %v1345 = vld [vmem:[#allocation7 + $0x670] sm:$0xff]
    %v1346 = vld [vmem:[#allocation7 + $0x678] sm:$0xff]
    %v1347 = vld [vmem:[#allocation7 + $0x680] sm:$0xff]
    %v1348 = vld [vmem:[#allocation7 + $0x688] sm:$0xff]
    %v1349 = vld [vmem:[#allocation7 + $0x690] sm:$0xff]
    %v1350 = vld [vmem:[#allocation7 + $0x698] sm:$0xff]
    %v1351 = vld [vmem:[#allocation7 + $0x6a0] sm:$0xff]
    %v1352 = vld [vmem:[#allocation7 + $0x6a8] sm:$0xff]
    %v1353 = vld [vmem:[#allocation7 + $0x6b0] sm:$0xff]
    %v1354 = vld [vmem:[#allocation7 + $0x6b8] sm:$0xff]
    %v1355 = vld [vmem:[#allocation7 + $0x6c0] sm:$0xff]
    %v1356 = vld [vmem:[#allocation7 + $0x6c8] sm:$0xff]
    %v1357 = vld [vmem:[#allocation7 + $0x6d0] sm:$0xff]
    %v1358 = vld [vmem:[#allocation7 + $0x6d8] sm:$0xff]
    %v1359 = vld [vmem:[#allocation7 + $0x6e0] sm:$0xff]
    %v1360 = vld [vmem:[#allocation7 + $0x6e8] sm:$0xff]
    %v1361 = vld [vmem:[#allocation7 + $0x6f0] sm:$0xff]
    %v1362 = vld [vmem:[#allocation7 + $0x6f8] sm:$0xff]
    %v1363 = vld [vmem:[#allocation7 + $0x700] sm:$0xff]
    %v1364 = vld [vmem:[#allocation7 + $0x708] sm:$0xff]
    %v1365 = vld [vmem:[#allocation7 + $0x710] sm:$0xff]
    %v1366 = vld [vmem:[#allocation7 + $0x718] sm:$0xff]
    %v1367 = vld [vmem:[#allocation7 + $0x720] sm:$0xff]
    %v1368 = vld [vmem:[#allocation7 + $0x728] sm:$0xff]
    %v1369 = vld [vmem:[#allocation7 + $0x730] sm:$0xff]
    %v1370 = vld [vmem:[#allocation7 + $0x738] sm:$0xff]
    %v1371 = vld [vmem:[#allocation7 + $0x740] sm:$0xff]
    %v1372 = vld [vmem:[#allocation7 + $0x748] sm:$0xff]
    %v1373 = vld [vmem:[#allocation7 + $0x750] sm:$0xff]
    %v1374 = vld [vmem:[#allocation7 + $0x758] sm:$0xff]
    %v1375 = vld [vmem:[#allocation7 + $0x760] sm:$0xff]
    %v1376 = vld [vmem:[#allocation7 + $0x768] sm:$0xff]
    %v1377 = vld [vmem:[#allocation7 + $0x770] sm:$0xff]
    %v1378 = vld [vmem:[#allocation7 + $0x778] sm:$0xff]
    %v1379 = vld [vmem:[#allocation7 + $0x780] sm:$0xff]
    %v1380 = vld [vmem:[#allocation7 + $0x788] sm:$0xff]
    %v1381 = vld [vmem:[#allocation7 + $0x790] sm:$0xff]
    %v1382 = vld [vmem:[#allocation7 + $0x798] sm:$0xff]
    %v1383 = vld [vmem:[#allocation7 + $0x7a0] sm:$0xff]
    %v1384 = vld [vmem:[#allocation7 + $0x7a8] sm:$0xff]
    %v1385 = vld [vmem:[#allocation7 + $0x7b0] sm:$0xff]
    %v1386 = vld [vmem:[#allocation7 + $0x7b8] sm:$0xff]
    %v1387 = vld [vmem:[#allocation7 + $0x7c0] sm:$0xff]
    %v1388 = vld [vmem:[#allocation7 + $0x7c8] sm:$0xff]
    %v1389 = vld [vmem:[#allocation7 + $0x7d0] sm:$0xff]
    %v1390 = vld [vmem:[#allocation7 + $0x7d8] sm:$0xff]
    %v1391 = vld [vmem:[#allocation7 + $0x7e0] sm:$0xff]
    %v1392 = vld [vmem:[#allocation7 + $0x7e8] sm:$0xff]
    %v1393 = vld [vmem:[#allocation7 + $0x7f0] sm:$0xff]
    %v1394 = vld [vmem:[#allocation7 + $0x7f8] sm:$0xff]
    %v1395 = vld [vmem:[%s8] sm:$0xff]
    %v1397 = vperm.slane %v1395, 0
    %v1398 = vperm.slane %v1395, 1
    %v1399 = vperm.slane %v1395, 2
    %v1400 = vperm.slane %v1395, 3
    %v1401 = vperm.slane %v1395, 4
    %v1402 = vperm.slane %v1395, 5
    %v1403 = vperm.slane %v1395, 6
    %v1404 = vperm.slane %v1395, 7
    %1413 = vmatpush.msra.mxu0 %v1259
    %1414 = vmatpush.msra.mxu0 %v1251
    %1415 = vmatpush.msra.mxu0 %v1243
    %1416 = vmatpush.msra.mxu0 %v1235
    %1417 = vmatpush.msra.mxu0 %v1227
    %1418 = vmatpush.msra.mxu0 %v1219
    %1419 = vmatpush.msra.mxu0 %v1211
    %1420 = vmatpush.msra.mxu0 %v1203
    %1421 = vmatpush.msra.mxu0 %v1195
    %1422 = vmatpush.msra.mxu0 %v1187
    %1423 = vmatpush.msra.mxu0 %v1179
    %1424 = vmatpush.msra.mxu0 %v1171
    %1425 = vmatpush.msra.mxu0 %v1163
    %1426 = vmatpush.msra.mxu0 %v1155
    %1427 = vmatpush.msra.mxu0 %v1147
    %1428 = vmatpush.msra.mxu0 %v1139
    %1429 = vmatmul.f32.gmra.mxu0 %v1127
    %v1430 = vpop.f32.mrf.mxu0
    %v1431 = vadd.f32 %v1397, %v1430
    %1432 = vmatmul.f32.gmra.mxu0 %v1129
    %v1433 = vpop.f32.mrf.mxu0
    %v1434 = vadd.f32 %v1397, %v1433
    %1435 = vmatmul.f32.gmra.mxu0 %v1131
    %v1436 = vpop.f32.mrf.mxu0
    %v1437 = vadd.f32 %v1397, %v1436
    %1438 = vmatmul.f32.gmra.mxu0 %v1133
    %v1439 = vpop.f32.mrf.mxu0
    %v1440 = vadd.f32 %v1397, %v1439
    %1441 = vmatmul.f32.gmra.mxu0 %v1135
    %v1442 = vpop.f32.mrf.mxu0
    %v1443 = vadd.f32 %v1397, %v1442
    %1444 = vmatmul.f32.gmra.mxu0 %v1137
    %v1445 = vpop.f32.mrf.mxu0
    %v1446 = vadd.f32 %v1397, %v1445
    %1447 = vdwg.mxu0
    %1448 = vmatpush.msra.mxu0 %v1387
    %1449 = vmatpush.msra.mxu0 %v1379
    %1450 = vmatpush.msra.mxu0 %v1371
    %1451 = vmatpush.msra.mxu0 %v1363
    %1452 = vmatpush.msra.mxu0 %v1355
    %1453 = vmatpush.msra.mxu0 %v1347
    %1454 = vmatpush.msra.mxu0 %v1339
    %1455 = vmatpush.msra.mxu0 %v1331
    %1456 = vmatpush.msra.mxu0 %v1323
    %1457 = vmatpush.msra.mxu0 %v1315
    %1458 = vmatpush.msra.mxu0 %v1307
    %1459 = vmatpush.msra.mxu0 %v1299
    %1460 = vmatpush.msra.mxu0 %v1291
    %1461 = vmatpush.msra.mxu0 %v1283
    %1462 = vmatpush.msra.mxu0 %v1275
    %1463 = vmatpush.msra.mxu0 %v1267
    %1464 = vmatmul.f32.gmra.mxu0 %v1128
    %v1465 = vpop.f32.mrf.mxu0
    %v1466 = vadd.f32 %v1431, %v1465
    %1467 = vmatmul.f32.gmra.mxu0 %v1130
    %v1468 = vpop.f32.mrf.mxu0
    %v1469 = vadd.f32 %v1434, %v1468
    %1470 = vmatmul.f32.gmra.mxu0 %v1132
    %v1471 = vpop.f32.mrf.mxu0
    %v1472 = vadd.f32 %v1437, %v1471
    %1473 = vmatmul.f32.gmra.mxu0 %v1134
    %v1474 = vpop.f32.mrf.mxu0
    %v1475 = vadd.f32 %v1440, %v1474
    %1476 = vmatmul.f32.gmra.mxu0 %v1136
    %v1477 = vpop.f32.mrf.mxu0
    %v1478 = vadd.f32 %v1443, %v1477
    %1479 = vmatmul.f32.gmra.mxu0 %v1138
    %v1480 = vpop.f32.mrf.mxu0
    %v1481 = vadd.f32 %v1446, %v1480
    %1482 = vdwg.mxu0
    %1483 = vmatpush.msra.mxu0 %v1260
    %1484 = vmatpush.msra.mxu0 %v1252
    %1485 = vmatpush.msra.mxu0 %v1244
    %1486 = vmatpush.msra.mxu0 %v1236
    %1487 = vmatpush.msra.mxu0 %v1228
    %1488 = vmatpush.msra.mxu0 %v1220
    %1489 = vmatpush.msra.mxu0 %v1212
    %1490 = vmatpush.msra.mxu0 %v1204
    %1491 = vmatpush.msra.mxu0 %v1196
    %1492 = vmatpush.msra.mxu0 %v1188
    %1493 = vmatpush.msra.mxu0 %v1180
    %1494 = vmatpush.msra.mxu0 %v1172
    %1495 = vmatpush.msra.mxu0 %v1164
    %1496 = vmatpush.msra.mxu0 %v1156
    %1497 = vmatpush.msra.mxu0 %v1148
    %1498 = vmatpush.msra.mxu0 %v1140
    %1499 = vmatmul.f32.gmra.mxu0 %v1127
    %v1500 = vpop.f32.mrf.mxu0
    %v1501 = vadd.f32 %v1398, %v1500
    %1502 = vmatmul.f32.gmra.mxu0 %v1129
    %v1503 = vpop.f32.mrf.mxu0
    %v1504 = vadd.f32 %v1398, %v1503
    %1505 = vmatmul.f32.gmra.mxu0 %v1131
    %v1506 = vpop.f32.mrf.mxu0
    %v1507 = vadd.f32 %v1398, %v1506
    %1508 = vmatmul.f32.gmra.mxu0 %v1133
    %v1509 = vpop.f32.mrf.mxu0
    %v1510 = vadd.f32 %v1398, %v1509
    %1511 = vmatmul.f32.gmra.mxu0 %v1135
    %v1512 = vpop.f32.mrf.mxu0
    %v1513 = vadd.f32 %v1398, %v1512
    %1514 = vmatmul.f32.gmra.mxu0 %v1137
    %v1515 = vpop.f32.mrf.mxu0
    %v1516 = vadd.f32 %v1398, %v1515
    %1517 = vdwg.mxu0
    %1518 = vmatpush.msra.mxu0 %v1388
    %1519 = vmatpush.msra.mxu0 %v1380
    %1520 = vmatpush.msra.mxu0 %v1372
    %1521 = vmatpush.msra.mxu0 %v1364
    %1522 = vmatpush.msra.mxu0 %v1356
    %1523 = vmatpush.msra.mxu0 %v1348
    %1524 = vmatpush.msra.mxu0 %v1340
    %1525 = vmatpush.msra.mxu0 %v1332
    %1526 = vmatpush.msra.mxu0 %v1324
    %1527 = vmatpush.msra.mxu0 %v1316
    %1528 = vmatpush.msra.mxu0 %v1308
    %1529 = vmatpush.msra.mxu0 %v1300
    %1530 = vmatpush.msra.mxu0 %v1292
    %1531 = vmatpush.msra.mxu0 %v1284
    %1532 = vmatpush.msra.mxu0 %v1276
    %1533 = vmatpush.msra.mxu0 %v1268
    %1534 = vmatmul.f32.gmra.mxu0 %v1128
    %v1535 = vpop.f32.mrf.mxu0
    %v1536 = vadd.f32 %v1501, %v1535
    %1537 = vmatmul.f32.gmra.mxu0 %v1130
    %v1538 = vpop.f32.mrf.mxu0
    %v1539 = vadd.f32 %v1504, %v1538
    %1540 = vmatmul.f32.gmra.mxu0 %v1132
    %v1541 = vpop.f32.mrf.mxu0
    %v1542 = vadd.f32 %v1507, %v1541
    %1543 = vmatmul.f32.gmra.mxu0 %v1134
    %v1544 = vpop.f32.mrf.mxu0
    %v1545 = vadd.f32 %v1510, %v1544
    %1546 = vmatmul.f32.gmra.mxu0 %v1136
    %v1547 = vpop.f32.mrf.mxu0
    %v1548 = vadd.f32 %v1513, %v1547
    %1549 = vmatmul.f32.gmra.mxu0 %v1138
    %v1550 = vpop.f32.mrf.mxu0
    %v1551 = vadd.f32 %v1516, %v1550
    %1552 = vdwg.mxu0
    %1553 = vmatpush.msra.mxu0 %v1261
    %1554 = vmatpush.msra.mxu0 %v1253
    %1555 = vmatpush.msra.mxu0 %v1245
    %1556 = vmatpush.msra.mxu0 %v1237
    %1557 = vmatpush.msra.mxu0 %v1229
    %1558 = vmatpush.msra.mxu0 %v1221
    %1559 = vmatpush.msra.mxu0 %v1213
    %1560 = vmatpush.msra.mxu0 %v1205
    %1561 = vmatpush.msra.mxu0 %v1197
    %1562 = vmatpush.msra.mxu0 %v1189
    %1563 = vmatpush.msra.mxu0 %v1181
    %1564 = vmatpush.msra.mxu0 %v1173
    %1565 = vmatpush.msra.mxu0 %v1165
    %1566 = vmatpush.msra.mxu0 %v1157
    %1567 = vmatpush.msra.mxu0 %v1149
    %1568 = vmatpush.msra.mxu0 %v1141
    %1569 = vmatmul.f32.gmra.mxu0 %v1127
    %v1570 = vpop.f32.mrf.mxu0
    %v1571 = vadd.f32 %v1399, %v1570
    %1572 = vmatmul.f32.gmra.mxu0 %v1129
    %v1573 = vpop.f32.mrf.mxu0
    %v1574 = vadd.f32 %v1399, %v1573
    %1575 = vmatmul.f32.gmra.mxu0 %v1131
    %v1576 = vpop.f32.mrf.mxu0
    %v1577 = vadd.f32 %v1399, %v1576
    %1578 = vmatmul.f32.gmra.mxu0 %v1133
    %v1579 = vpop.f32.mrf.mxu0
    %v1580 = vadd.f32 %v1399, %v1579
    %1581 = vmatmul.f32.gmra.mxu0 %v1135
    %v1582 = vpop.f32.mrf.mxu0
    %v1583 = vadd.f32 %v1399, %v1582
    %1584 = vmatmul.f32.gmra.mxu0 %v1137
    %v1585 = vpop.f32.mrf.mxu0
    %v1586 = vadd.f32 %v1399, %v1585
    %1587 = vdwg.mxu0
    %1588 = vmatpush.msra.mxu0 %v1389
    %1589 = vmatpush.msra.mxu0 %v1381
    %1590 = vmatpush.msra.mxu0 %v1373
    %1591 = vmatpush.msra.mxu0 %v1365
    %1592 = vmatpush.msra.mxu0 %v1357
    %1593 = vmatpush.msra.mxu0 %v1349
    %1594 = vmatpush.msra.mxu0 %v1341
    %1595 = vmatpush.msra.mxu0 %v1333
    %1596 = vmatpush.msra.mxu0 %v1325
    %1597 = vmatpush.msra.mxu0 %v1317
    %1598 = vmatpush.msra.mxu0 %v1309
    %1599 = vmatpush.msra.mxu0 %v1301
    %1600 = vmatpush.msra.mxu0 %v1293
    %1601 = vmatpush.msra.mxu0 %v1285
    %1602 = vmatpush.msra.mxu0 %v1277
    %1603 = vmatpush.msra.mxu0 %v1269
    %1604 = vmatmul.f32.gmra.mxu0 %v1128
    %v1605 = vpop.f32.mrf.mxu0
    %v1606 = vadd.f32 %v1571, %v1605
    %1607 = vmatmul.f32.gmra.mxu0 %v1130
    %v1608 = vpop.f32.mrf.mxu0
    %v1609 = vadd.f32 %v1574, %v1608
    %1610 = vmatmul.f32.gmra.mxu0 %v1132
    %v1611 = vpop.f32.mrf.mxu0
    %v1612 = vadd.f32 %v1577, %v1611
    %1613 = vmatmul.f32.gmra.mxu0 %v1134
    %v1614 = vpop.f32.mrf.mxu0
    %v1615 = vadd.f32 %v1580, %v1614
    %1616 = vmatmul.f32.gmra.mxu0 %v1136
    %v1617 = vpop.f32.mrf.mxu0
    %v1618 = vadd.f32 %v1583, %v1617
    %1619 = vmatmul.f32.gmra.mxu0 %v1138
    %v1620 = vpop.f32.mrf.mxu0
    %v1621 = vadd.f32 %v1586, %v1620
    %1622 = vdwg.mxu0
    %1623 = vmatpush.msra.mxu0 %v1262
    %1624 = vmatpush.msra.mxu0 %v1254
    %1625 = vmatpush.msra.mxu0 %v1246
    %1626 = vmatpush.msra.mxu0 %v1238
    %1627 = vmatpush.msra.mxu0 %v1230
    %1628 = vmatpush.msra.mxu0 %v1222
    %1629 = vmatpush.msra.mxu0 %v1214
    %1630 = vmatpush.msra.mxu0 %v1206
    %1631 = vmatpush.msra.mxu0 %v1198
    %1632 = vmatpush.msra.mxu0 %v1190
    %1633 = vmatpush.msra.mxu0 %v1182
    %1634 = vmatpush.msra.mxu0 %v1174
    %1635 = vmatpush.msra.mxu0 %v1166
    %1636 = vmatpush.msra.mxu0 %v1158
    %1637 = vmatpush.msra.mxu0 %v1150
    %1638 = vmatpush.msra.mxu0 %v1142
    %1639 = vmatmul.f32.gmra.mxu0 %v1127
    %v1640 = vpop.f32.mrf.mxu0
    %v1641 = vadd.f32 %v1400, %v1640
    %1642 = vmatmul.f32.gmra.mxu0 %v1129
    %v1643 = vpop.f32.mrf.mxu0
    %v1644 = vadd.f32 %v1400, %v1643
    %1645 = vmatmul.f32.gmra.mxu0 %v1131
    %v1646 = vpop.f32.mrf.mxu0
    %v1647 = vadd.f32 %v1400, %v1646
    %1648 = vmatmul.f32.gmra.mxu0 %v1133
    %v1649 = vpop.f32.mrf.mxu0
    %v1650 = vadd.f32 %v1400, %v1649
    %1651 = vmatmul.f32.gmra.mxu0 %v1135
    %v1652 = vpop.f32.mrf.mxu0
    %v1653 = vadd.f32 %v1400, %v1652
    %1654 = vmatmul.f32.gmra.mxu0 %v1137
    %v1655 = vpop.f32.mrf.mxu0
    %v1656 = vadd.f32 %v1400, %v1655
    %1657 = vdwg.mxu0
    %1658 = vmatpush.msra.mxu0 %v1390
    %1659 = vmatpush.msra.mxu0 %v1382
    %1660 = vmatpush.msra.mxu0 %v1374
    %1661 = vmatpush.msra.mxu0 %v1366
    %1662 = vmatpush.msra.mxu0 %v1358
    %1663 = vmatpush.msra.mxu0 %v1350
    %1664 = vmatpush.msra.mxu0 %v1342
    %1665 = vmatpush.msra.mxu0 %v1334
    %1666 = vmatpush.msra.mxu0 %v1326
    %1667 = vmatpush.msra.mxu0 %v1318
    %1668 = vmatpush.msra.mxu0 %v1310
    %1669 = vmatpush.msra.mxu0 %v1302
    %1670 = vmatpush.msra.mxu0 %v1294
    %1671 = vmatpush.msra.mxu0 %v1286
    %1672 = vmatpush.msra.mxu0 %v1278
    %1673 = vmatpush.msra.mxu0 %v1270
    %1674 = vmatmul.f32.gmra.mxu0 %v1128
    %v1675 = vpop.f32.mrf.mxu0
    %v1676 = vadd.f32 %v1641, %v1675
    %1677 = vmatmul.f32.gmra.mxu0 %v1130
    %v1678 = vpop.f32.mrf.mxu0
    %v1679 = vadd.f32 %v1644, %v1678
    %1680 = vmatmul.f32.gmra.mxu0 %v1132
    %v1681 = vpop.f32.mrf.mxu0
    %v1682 = vadd.f32 %v1647, %v1681
    %1683 = vmatmul.f32.gmra.mxu0 %v1134
    %v1684 = vpop.f32.mrf.mxu0
    %v1685 = vadd.f32 %v1650, %v1684
    %1686 = vmatmul.f32.gmra.mxu0 %v1136
    %v1687 = vpop.f32.mrf.mxu0
    %v1688 = vadd.f32 %v1653, %v1687
    %1689 = vmatmul.f32.gmra.mxu0 %v1138
    %v1690 = vpop.f32.mrf.mxu0
    %v1691 = vadd.f32 %v1656, %v1690
    %1692 = vdwg.mxu0
    %1693 = vmatpush.msra.mxu0 %v1263
    %1694 = vmatpush.msra.mxu0 %v1255
    %1695 = vmatpush.msra.mxu0 %v1247
    %1696 = vmatpush.msra.mxu0 %v1239
    %1697 = vmatpush.msra.mxu0 %v1231
    %1698 = vmatpush.msra.mxu0 %v1223
    %1699 = vmatpush.msra.mxu0 %v1215
    %1700 = vmatpush.msra.mxu0 %v1207
    %1701 = vmatpush.msra.mxu0 %v1199
    %1702 = vmatpush.msra.mxu0 %v1191
    %1703 = vmatpush.msra.mxu0 %v1183
    %1704 = vmatpush.msra.mxu0 %v1175
    %1705 = vmatpush.msra.mxu0 %v1167
    %1706 = vmatpush.msra.mxu0 %v1159
    %1707 = vmatpush.msra.mxu0 %v1151
    %1708 = vmatpush.msra.mxu0 %v1143
    %1709 = vmatmul.f32.gmra.mxu0 %v1127
    %v1710 = vpop.f32.mrf.mxu0
    %v1711 = vadd.f32 %v1401, %v1710
    %1712 = vmatmul.f32.gmra.mxu0 %v1129
    %v1713 = vpop.f32.mrf.mxu0
    %v1714 = vadd.f32 %v1401, %v1713
    %1715 = vmatmul.f32.gmra.mxu0 %v1131
    %v1716 = vpop.f32.mrf.mxu0
    %v1717 = vadd.f32 %v1401, %v1716
    %1718 = vmatmul.f32.gmra.mxu0 %v1133
    %v1719 = vpop.f32.mrf.mxu0
    %v1720 = vadd.f32 %v1401, %v1719
    %1721 = vmatmul.f32.gmra.mxu0 %v1135
    %v1722 = vpop.f32.mrf.mxu0
    %v1723 = vadd.f32 %v1401, %v1722
    %1724 = vmatmul.f32.gmra.mxu0 %v1137
    %v1725 = vpop.f32.mrf.mxu0
    %v1726 = vadd.f32 %v1401, %v1725
    %1727 = vdwg.mxu0
    %1728 = vmatpush.msra.mxu0 %v1391
    %1729 = vmatpush.msra.mxu0 %v1383
    %1730 = vmatpush.msra.mxu0 %v1375
    %1731 = vmatpush.msra.mxu0 %v1367
    %1732 = vmatpush.msra.mxu0 %v1359
    %1733 = vmatpush.msra.mxu0 %v1351
    %1734 = vmatpush.msra.mxu0 %v1343
    %1735 = vmatpush.msra.mxu0 %v1335
    %1736 = vmatpush.msra.mxu0 %v1327
    %1737 = vmatpush.msra.mxu0 %v1319
    %1738 = vmatpush.msra.mxu0 %v1311
    %1739 = vmatpush.msra.mxu0 %v1303
    %1740 = vmatpush.msra.mxu0 %v1295
    %1741 = vmatpush.msra.mxu0 %v1287
    %1742 = vmatpush.msra.mxu0 %v1279
    %1743 = vmatpush.msra.mxu0 %v1271
    %1744 = vmatmul.f32.gmra.mxu0 %v1128
    %v1745 = vpop.f32.mrf.mxu0
    %v1746 = vadd.f32 %v1711, %v1745
    %1747 = vmatmul.f32.gmra.mxu0 %v1130
    %v1748 = vpop.f32.mrf.mxu0
    %v1749 = vadd.f32 %v1714, %v1748
    %1750 = vmatmul.f32.gmra.mxu0 %v1132
    %v1751 = vpop.f32.mrf.mxu0
    %v1752 = vadd.f32 %v1717, %v1751
    %1753 = vmatmul.f32.gmra.mxu0 %v1134
    %v1754 = vpop.f32.mrf.mxu0
    %v1755 = vadd.f32 %v1720, %v1754
    %1756 = vmatmul.f32.gmra.mxu0 %v1136
    %v1757 = vpop.f32.mrf.mxu0
    %v1758 = vadd.f32 %v1723, %v1757
    %1759 = vmatmul.f32.gmra.mxu0 %v1138
    %v1760 = vpop.f32.mrf.mxu0
    %v1761 = vadd.f32 %v1726, %v1760
    %1762 = vdwg.mxu0
    %1763 = vmatpush.msra.mxu0 %v1264
    %1764 = vmatpush.msra.mxu0 %v1256
    %1765 = vmatpush.msra.mxu0 %v1248
    %1766 = vmatpush.msra.mxu0 %v1240
    %1767 = vmatpush.msra.mxu0 %v1232
    %1768 = vmatpush.msra.mxu0 %v1224
    %1769 = vmatpush.msra.mxu0 %v1216
    %1770 = vmatpush.msra.mxu0 %v1208
    %1771 = vmatpush.msra.mxu0 %v1200
    %1772 = vmatpush.msra.mxu0 %v1192
    %1773 = vmatpush.msra.mxu0 %v1184
    %1774 = vmatpush.msra.mxu0 %v1176
    %1775 = vmatpush.msra.mxu0 %v1168
    %1776 = vmatpush.msra.mxu0 %v1160
    %1777 = vmatpush.msra.mxu0 %v1152
    %1778 = vmatpush.msra.mxu0 %v1144
    %1779 = vmatmul.f32.gmra.mxu0 %v1127
    %v1780 = vpop.f32.mrf.mxu0
    %v1781 = vadd.f32 %v1402, %v1780
    %1782 = vmatmul.f32.gmra.mxu0 %v1129
    %v1783 = vpop.f32.mrf.mxu0
    %v1784 = vadd.f32 %v1402, %v1783
    %1785 = vmatmul.f32.gmra.mxu0 %v1131
    %v1786 = vpop.f32.mrf.mxu0
    %v1787 = vadd.f32 %v1402, %v1786
    %1788 = vmatmul.f32.gmra.mxu0 %v1133
    %v1789 = vpop.f32.mrf.mxu0
    %v1790 = vadd.f32 %v1402, %v1789
    %1791 = vmatmul.f32.gmra.mxu0 %v1135
    %v1792 = vpop.f32.mrf.mxu0
    %v1793 = vadd.f32 %v1402, %v1792
    %1794 = vmatmul.f32.gmra.mxu0 %v1137
    %v1795 = vpop.f32.mrf.mxu0
    %v1796 = vadd.f32 %v1402, %v1795
    %1797 = vdwg.mxu0
    %1798 = vmatpush.msra.mxu0 %v1392
    %1799 = vmatpush.msra.mxu0 %v1384
    %1800 = vmatpush.msra.mxu0 %v1376
    %1801 = vmatpush.msra.mxu0 %v1368
    %1802 = vmatpush.msra.mxu0 %v1360
    %1803 = vmatpush.msra.mxu0 %v1352
    %1804 = vmatpush.msra.mxu0 %v1344
    %1805 = vmatpush.msra.mxu0 %v1336
    %1806 = vmatpush.msra.mxu0 %v1328
    %1807 = vmatpush.msra.mxu0 %v1320
    %1808 = vmatpush.msra.mxu0 %v1312
    %1809 = vmatpush.msra.mxu0 %v1304
    %1810 = vmatpush.msra.mxu0 %v1296
    %1811 = vmatpush.msra.mxu0 %v1288
    %1812 = vmatpush.msra.mxu0 %v1280
    %1813 = vmatpush.msra.mxu0 %v1272
    %1814 = vmatmul.f32.gmra.mxu0 %v1128
    %v1815 = vpop.f32.mrf.mxu0
    %v1816 = vadd.f32 %v1781, %v1815
    %1817 = vmatmul.f32.gmra.mxu0 %v1130
    %v1818 = vpop.f32.mrf.mxu0
    %v1819 = vadd.f32 %v1784, %v1818
    %1820 = vmatmul.f32.gmra.mxu0 %v1132
    %v1821 = vpop.f32.mrf.mxu0
    %v1822 = vadd.f32 %v1787, %v1821
    %1823 = vmatmul.f32.gmra.mxu0 %v1134
    %v1824 = vpop.f32.mrf.mxu0
    %v1825 = vadd.f32 %v1790, %v1824
    %1826 = vmatmul.f32.gmra.mxu0 %v1136
    %v1827 = vpop.f32.mrf.mxu0
    %v1828 = vadd.f32 %v1793, %v1827
    %1829 = vmatmul.f32.gmra.mxu0 %v1138
    %v1830 = vpop.f32.mrf.mxu0
    %v1831 = vadd.f32 %v1796, %v1830
    %1832 = vdwg.mxu0
    %1833 = vmatpush.msra.mxu0 %v1265
    %1834 = vmatpush.msra.mxu0 %v1257
    %1835 = vmatpush.msra.mxu0 %v1249
    %1836 = vmatpush.msra.mxu0 %v1241
    %1837 = vmatpush.msra.mxu0 %v1233
    %1838 = vmatpush.msra.mxu0 %v1225
    %1839 = vmatpush.msra.mxu0 %v1217
    %1840 = vmatpush.msra.mxu0 %v1209
    %1841 = vmatpush.msra.mxu0 %v1201
    %1842 = vmatpush.msra.mxu0 %v1193
    %1843 = vmatpush.msra.mxu0 %v1185
    %1844 = vmatpush.msra.mxu0 %v1177
    %1845 = vmatpush.msra.mxu0 %v1169
    %1846 = vmatpush.msra.mxu0 %v1161
    %1847 = vmatpush.msra.mxu0 %v1153
    %1848 = vmatpush.msra.mxu0 %v1145
    %1849 = vmatmul.f32.gmra.mxu0 %v1127
    %v1850 = vpop.f32.mrf.mxu0
    %v1851 = vadd.f32 %v1403, %v1850
    %1852 = vmatmul.f32.gmra.mxu0 %v1129
    %v1853 = vpop.f32.mrf.mxu0
    %v1854 = vadd.f32 %v1403, %v1853
    %1855 = vmatmul.f32.gmra.mxu0 %v1131
    %v1856 = vpop.f32.mrf.mxu0
    %v1857 = vadd.f32 %v1403, %v1856
    %1858 = vmatmul.f32.gmra.mxu0 %v1133
    %v1859 = vpop.f32.mrf.mxu0
    %v1860 = vadd.f32 %v1403, %v1859
    %1861 = vmatmul.f32.gmra.mxu0 %v1135
    %v1862 = vpop.f32.mrf.mxu0
    %v1863 = vadd.f32 %v1403, %v1862
    %1864 = vmatmul.f32.gmra.mxu0 %v1137
    %v1865 = vpop.f32.mrf.mxu0
    %v1866 = vadd.f32 %v1403, %v1865
    %1867 = vdwg.mxu0
    %1868 = vmatpush.msra.mxu0 %v1393
    %1869 = vmatpush.msra.mxu0 %v1385
    %1870 = vmatpush.msra.mxu0 %v1377
    %1871 = vmatpush.msra.mxu0 %v1369
    %1872 = vmatpush.msra.mxu0 %v1361
    %1873 = vmatpush.msra.mxu0 %v1353
    %1874 = vmatpush.msra.mxu0 %v1345
    %1875 = vmatpush.msra.mxu0 %v1337
    %1876 = vmatpush.msra.mxu0 %v1329
    %1877 = vmatpush.msra.mxu0 %v1321
    %1878 = vmatpush.msra.mxu0 %v1313
    %1879 = vmatpush.msra.mxu0 %v1305
    %1880 = vmatpush.msra.mxu0 %v1297
    %1881 = vmatpush.msra.mxu0 %v1289
    %1882 = vmatpush.msra.mxu0 %v1281
    %1883 = vmatpush.msra.mxu0 %v1273
    %1884 = vmatmul.f32.gmra.mxu0 %v1128
    %v1885 = vpop.f32.mrf.mxu0
    %v1886 = vadd.f32 %v1851, %v1885
    %1887 = vmatmul.f32.gmra.mxu0 %v1130
    %v1888 = vpop.f32.mrf.mxu0
    %v1889 = vadd.f32 %v1854, %v1888
    %1890 = vmatmul.f32.gmra.mxu0 %v1132
    %v1891 = vpop.f32.mrf.mxu0
    %v1892 = vadd.f32 %v1857, %v1891
    %1893 = vmatmul.f32.gmra.mxu0 %v1134
    %v1894 = vpop.f32.mrf.mxu0
    %v1895 = vadd.f32 %v1860, %v1894
    %1896 = vmatmul.f32.gmra.mxu0 %v1136
    %v1897 = vpop.f32.mrf.mxu0
    %v1898 = vadd.f32 %v1863, %v1897
    %1899 = vmatmul.f32.gmra.mxu0 %v1138
    %v1900 = vpop.f32.mrf.mxu0
    %v1901 = vadd.f32 %v1866, %v1900
    %1902 = vdwg.mxu0
    %1903 = vmatpush.msra.mxu0 %v1266
    %1904 = vmatpush.msra.mxu0 %v1258
    %1905 = vmatpush.msra.mxu0 %v1250
    %1906 = vmatpush.msra.mxu0 %v1242
    %1907 = vmatpush.msra.mxu0 %v1234
    %1908 = vmatpush.msra.mxu0 %v1226
    %1909 = vmatpush.msra.mxu0 %v1218
    %1910 = vmatpush.msra.mxu0 %v1210
    %1911 = vmatpush.msra.mxu0 %v1202
    %1912 = vmatpush.msra.mxu0 %v1194
    %1913 = vmatpush.msra.mxu0 %v1186
    %1914 = vmatpush.msra.mxu0 %v1178
    %1915 = vmatpush.msra.mxu0 %v1170
    %1916 = vmatpush.msra.mxu0 %v1162
    %1917 = vmatpush.msra.mxu0 %v1154
    %1918 = vmatpush.msra.mxu0 %v1146
    %1919 = vmatmul.f32.gmra.mxu0 %v1127
    %v1920 = vpop.f32.mrf.mxu0
    %v1921 = vadd.f32 %v1404, %v1920
    %1922 = vmatmul.f32.gmra.mxu0 %v1129
    %v1923 = vpop.f32.mrf.mxu0
    %v1924 = vadd.f32 %v1404, %v1923
    %1925 = vmatmul.f32.gmra.mxu0 %v1131
    %v1926 = vpop.f32.mrf.mxu0
    %v1927 = vadd.f32 %v1404, %v1926
    %1928 = vmatmul.f32.gmra.mxu0 %v1133
    %v1929 = vpop.f32.mrf.mxu0
    %v1930 = vadd.f32 %v1404, %v1929
    %1931 = vmatmul.f32.gmra.mxu0 %v1135
    %v1932 = vpop.f32.mrf.mxu0
    %v1933 = vadd.f32 %v1404, %v1932
    %1934 = vmatmul.f32.gmra.mxu0 %v1137
    %v1935 = vpop.f32.mrf.mxu0
    %v1936 = vadd.f32 %v1404, %v1935
    %1937 = vdwg.mxu0
    %1938 = vmatpush.msra.mxu0 %v1394
    %1939 = vmatpush.msra.mxu0 %v1386
    %1940 = vmatpush.msra.mxu0 %v1378
    %1941 = vmatpush.msra.mxu0 %v1370
    %1942 = vmatpush.msra.mxu0 %v1362
    %1943 = vmatpush.msra.mxu0 %v1354
    %1944 = vmatpush.msra.mxu0 %v1346
    %1945 = vmatpush.msra.mxu0 %v1338
    %1946 = vmatpush.msra.mxu0 %v1330
    %1947 = vmatpush.msra.mxu0 %v1322
    %1948 = vmatpush.msra.mxu0 %v1314
    %1949 = vmatpush.msra.mxu0 %v1306
    %1950 = vmatpush.msra.mxu0 %v1298
    %1951 = vmatpush.msra.mxu0 %v1290
    %1952 = vmatpush.msra.mxu0 %v1282
    %1953 = vmatpush.msra.mxu0 %v1274
    %1954 = vmatmul.f32.gmra.mxu0 %v1128
    %v1955 = vpop.f32.mrf.mxu0
    %v1956 = vadd.f32 %v1921, %v1955
    %1957 = vmatmul.f32.gmra.mxu0 %v1130
    %v1958 = vpop.f32.mrf.mxu0
    %v1959 = vadd.f32 %v1924, %v1958
    %1960 = vmatmul.f32.gmra.mxu0 %v1132
    %v1961 = vpop.f32.mrf.mxu0
    %v1962 = vadd.f32 %v1927, %v1961
    %1963 = vmatmul.f32.gmra.mxu0 %v1134
    %v1964 = vpop.f32.mrf.mxu0
    %v1965 = vadd.f32 %v1930, %v1964
    %1966 = vmatmul.f32.gmra.mxu0 %v1136
    %v1967 = vpop.f32.mrf.mxu0
    %v1968 = vadd.f32 %v1933, %v1967
    %1969 = vmatmul.f32.gmra.mxu0 %v1138
    %v1970 = vpop.f32.mrf.mxu0
    %v1971 = vadd.f32 %v1936, %v1970
    %1972 = vdwg.mxu0
    %v1973 = vmax.f32 %v1466, 0.0
    %v1974 = vmax.f32 %v1536, 0.0
    %v1975 = vmax.f32 %v1606, 0.0
    %v1976 = vmax.f32 %v1676, 0.0
    %v1977 = vmax.f32 %v1746, 0.0
    %v1978 = vmax.f32 %v1816, 0.0
    %v1979 = vmax.f32 %v1886, 0.0
    %v1980 = vmax.f32 %v1956, 0.0
    %v1981 = vmax.f32 %v1469, 0.0
    %v1982 = vmax.f32 %v1539, 0.0
    %v1983 = vmax.f32 %v1609, 0.0
    %v1984 = vmax.f32 %v1679, 0.0
    %v1985 = vmax.f32 %v1749, 0.0
    %v1986 = vmax.f32 %v1819, 0.0
    %v1987 = vmax.f32 %v1889, 0.0
    %v1988 = vmax.f32 %v1959, 0.0
    %v1989 = vmax.f32 %v1472, 0.0
    %v1990 = vmax.f32 %v1542, 0.0
    %v1991 = vmax.f32 %v1612, 0.0
    %v1992 = vmax.f32 %v1682, 0.0
    %v1993 = vmax.f32 %v1752, 0.0
    %v1994 = vmax.f32 %v1822, 0.0
    %v1995 = vmax.f32 %v1892, 0.0
    %v1996 = vmax.f32 %v1962, 0.0
    %v1997 = vmax.f32 %v1475, 0.0
    %v1998 = vmax.f32 %v1545, 0.0
    %v1999 = vmax.f32 %v1615, 0.0
    %v2000 = vmax.f32 %v1685, 0.0
    %v2001 = vmax.f32 %v1755, 0.0
    %v2002 = vmax.f32 %v1825, 0.0
    %v2003 = vmax.f32 %v1895, 0.0
    %v2004 = vmax.f32 %v1965, 0.0
    %v2005 = vmax.f32 %v1478, 0.0
    %v2006 = vmax.f32 %v1548, 0.0
    %v2007 = vmax.f32 %v1618, 0.0
    %v2008 = vmax.f32 %v1688, 0.0
    %v2009 = vmax.f32 %v1758, 0.0
    %v2010 = vmax.f32 %v1828, 0.0
    %v2011 = vmax.f32 %v1898, 0.0
    %v2012 = vmax.f32 %v1968, 0.0
    %v2013 = vmax.f32 %v1481, 0.0
    %v2014 = vmax.f32 %v1551, 0.0
    %v2015 = vmax.f32 %v1621, 0.0
    %v2016 = vmax.f32 %v1691, 0.0
    %v2017 = vmax.f32 %v1761, 0.0
    %v2018 = vmax.f32 %v1831, 0.0
    %v2019 = vmax.f32 %v1901, 0.0
    %v2020 = vmax.f32 %v1971, 0.0
    %v2021 = vld [vmem:[#allocation8] sm:$0xff]
    %v2022 = vld [vmem:[#allocation8 + $0x8] sm:$0xff]
    %v2023 = vld [vmem:[#allocation8 + $0x10] sm:$0xff]
    %v2024 = vld [vmem:[#allocation8 + $0x18] sm:$0xff]
    %v2025 = vld [vmem:[#allocation8 + $0x20] sm:$0xff]
    %v2026 = vld [vmem:[#allocation8 + $0x28] sm:$0xff]
    %v2027 = vld [vmem:[#allocation8 + $0x30] sm:$0xff]
    %v2028 = vld [vmem:[#allocation8 + $0x38] sm:$0xff]
    %v2029 = vld [vmem:[#allocation8 + $0x40] sm:$0xff]
    %v2030 = vld [vmem:[#allocation8 + $0x48] sm:$0xff]
    %v2031 = vld [vmem:[#allocation8 + $0x50] sm:$0xff]
    %v2032 = vld [vmem:[#allocation8 + $0x58] sm:$0xff]
    %v2033 = vld [vmem:[#allocation8 + $0x60] sm:$0xff]
    %v2034 = vld [vmem:[#allocation8 + $0x68] sm:$0xff]
    %v2035 = vld [vmem:[#allocation8 + $0x70] sm:$0xff]
    %v2036 = vld [vmem:[#allocation8 + $0x78] sm:$0xff]
    %v2037 = vld [vmem:[#allocation8 + $0x80] sm:$0xff]
    %v2038 = vld [vmem:[#allocation8 + $0x88] sm:$0xff]
    %v2039 = vld [vmem:[#allocation8 + $0x90] sm:$0xff]
    %v2040 = vld [vmem:[#allocation8 + $0x98] sm:$0xff]
    %v2041 = vld [vmem:[#allocation8 + $0xa0] sm:$0xff]
    %v2042 = vld [vmem:[#allocation8 + $0xa8] sm:$0xff]
    %v2043 = vld [vmem:[#allocation8 + $0xb0] sm:$0xff]
    %v2044 = vld [vmem:[#allocation8 + $0xb8] sm:$0xff]
    %v2045 = vld [vmem:[#allocation8 + $0xc0] sm:$0xff]
    %v2046 = vld [vmem:[#allocation8 + $0xc8] sm:$0xff]
    %v2047 = vld [vmem:[#allocation8 + $0xd0] sm:$0xff]
    %v2048 = vld [vmem:[#allocation8 + $0xd8] sm:$0xff]
    %v2049 = vld [vmem:[#allocation8 + $0xe0] sm:$0xff]
    %v2050 = vld [vmem:[#allocation8 + $0xe8] sm:$0xff]
    %v2051 = vld [vmem:[#allocation8 + $0xf0] sm:$0xff]
    %v2052 = vld [vmem:[#allocation8 + $0xf8] sm:$0xff]
    %v2053 = vld [vmem:[#allocation8 + $0x100] sm:$0xff]
    %v2054 = vld [vmem:[#allocation8 + $0x108] sm:$0xff]
    %v2055 = vld [vmem:[#allocation8 + $0x110] sm:$0xff]
    %v2056 = vld [vmem:[#allocation8 + $0x118] sm:$0xff]
    %v2057 = vld [vmem:[#allocation8 + $0x120] sm:$0xff]
    %v2058 = vld [vmem:[#allocation8 + $0x128] sm:$0xff]
    %v2059 = vld [vmem:[#allocation8 + $0x130] sm:$0xff]
    %v2060 = vld [vmem:[#allocation8 + $0x138] sm:$0xff]
    %v2061 = vld [vmem:[#allocation8 + $0x140] sm:$0xff]
    %v2062 = vld [vmem:[#allocation8 + $0x148] sm:$0xff]
    %v2063 = vld [vmem:[#allocation8 + $0x150] sm:$0xff]
    %v2064 = vld [vmem:[#allocation8 + $0x158] sm:$0xff]
    %v2065 = vld [vmem:[#allocation8 + $0x160] sm:$0xff]
    %v2066 = vld [vmem:[#allocation8 + $0x168] sm:$0xff]
    %v2067 = vld [vmem:[#allocation8 + $0x170] sm:$0xff]
    %v2068 = vld [vmem:[#allocation8 + $0x178] sm:$0xff]
    %v2069 = vld [vmem:[#allocation8 + $0x180] sm:$0xff]
    %v2070 = vld [vmem:[#allocation8 + $0x188] sm:$0xff]
    %v2071 = vld [vmem:[#allocation8 + $0x190] sm:$0xff]
    %v2072 = vld [vmem:[#allocation8 + $0x198] sm:$0xff]
    %v2073 = vld [vmem:[#allocation8 + $0x1a0] sm:$0xff]
    %v2074 = vld [vmem:[#allocation8 + $0x1a8] sm:$0xff]
    %v2075 = vld [vmem:[#allocation8 + $0x1b0] sm:$0xff]
    %v2076 = vld [vmem:[#allocation8 + $0x1b8] sm:$0xff]
    %v2077 = vld [vmem:[#allocation8 + $0x1c0] sm:$0xff]
    %v2078 = vld [vmem:[#allocation8 + $0x1c8] sm:$0xff]
    %v2079 = vld [vmem:[#allocation8 + $0x1d0] sm:$0xff]
    %v2080 = vld [vmem:[#allocation8 + $0x1d8] sm:$0xff]
    %v2081 = vld [vmem:[#allocation8 + $0x1e0] sm:$0xff]
    %v2082 = vld [vmem:[#allocation8 + $0x1e8] sm:$0xff]
    %v2083 = vld [vmem:[#allocation8 + $0x1f0] sm:$0xff]
    %v2084 = vld [vmem:[#allocation8 + $0x1f8] sm:$0xff]
    %v2085 = vld [vmem:[#allocation8 + $0x200] sm:$0xff]
    %v2086 = vld [vmem:[#allocation8 + $0x208] sm:$0xff]
    %v2087 = vld [vmem:[#allocation8 + $0x210] sm:$0xff]
    %v2088 = vld [vmem:[#allocation8 + $0x218] sm:$0xff]
    %v2089 = vld [vmem:[#allocation8 + $0x220] sm:$0xff]
    %v2090 = vld [vmem:[#allocation8 + $0x228] sm:$0xff]
    %v2091 = vld [vmem:[#allocation8 + $0x230] sm:$0xff]
    %v2092 = vld [vmem:[#allocation8 + $0x238] sm:$0xff]
    %v2093 = vld [vmem:[#allocation8 + $0x240] sm:$0xff]
    %v2094 = vld [vmem:[#allocation8 + $0x248] sm:$0xff]
    %v2095 = vld [vmem:[#allocation8 + $0x250] sm:$0xff]
    %v2096 = vld [vmem:[#allocation8 + $0x258] sm:$0xff]
    %v2097 = vld [vmem:[#allocation8 + $0x260] sm:$0xff]
    %v2098 = vld [vmem:[#allocation8 + $0x268] sm:$0xff]
    %v2099 = vld [vmem:[#allocation8 + $0x270] sm:$0xff]
    %v2100 = vld [vmem:[#allocation8 + $0x278] sm:$0xff]
    %v2101 = vld [vmem:[#allocation8 + $0x280] sm:$0xff]
    %v2102 = vld [vmem:[#allocation8 + $0x288] sm:$0xff]
    %v2103 = vld [vmem:[#allocation8 + $0x290] sm:$0xff]
    %v2104 = vld [vmem:[#allocation8 + $0x298] sm:$0xff]
    %v2105 = vld [vmem:[#allocation8 + $0x2a0] sm:$0xff]
    %v2106 = vld [vmem:[#allocation8 + $0x2a8] sm:$0xff]
    %v2107 = vld [vmem:[#allocation8 + $0x2b0] sm:$0xff]
    %v2108 = vld [vmem:[#allocation8 + $0x2b8] sm:$0xff]
    %v2109 = vld [vmem:[#allocation8 + $0x2c0] sm:$0xff]
    %v2110 = vld [vmem:[#allocation8 + $0x2c8] sm:$0xff]
    %v2111 = vld [vmem:[#allocation8 + $0x2d0] sm:$0xff]
    %v2112 = vld [vmem:[#allocation8 + $0x2d8] sm:$0xff]
    %v2113 = vld [vmem:[#allocation8 + $0x2e0] sm:$0xff]
    %v2114 = vld [vmem:[#allocation8 + $0x2e8] sm:$0xff]
    %v2115 = vld [vmem:[#allocation8 + $0x2f0] sm:$0xff]
    %v2116 = vld [vmem:[#allocation8 + $0x2f8] sm:$0xff]
    %v2117 = vld [vmem:[#allocation8 + $0x300] sm:$0xff]
    %v2118 = vld [vmem:[#allocation8 + $0x308] sm:$0xff]
    %v2119 = vld [vmem:[#allocation8 + $0x310] sm:$0xff]
    %v2120 = vld [vmem:[#allocation8 + $0x318] sm:$0xff]
    %v2121 = vld [vmem:[#allocation8 + $0x320] sm:$0xff]
    %v2122 = vld [vmem:[#allocation8 + $0x328] sm:$0xff]
    %v2123 = vld [vmem:[#allocation8 + $0x330] sm:$0xff]
    %v2124 = vld [vmem:[#allocation8 + $0x338] sm:$0xff]
    %v2125 = vld [vmem:[#allocation8 + $0x340] sm:$0xff]
    %v2126 = vld [vmem:[#allocation8 + $0x348] sm:$0xff]
    %v2127 = vld [vmem:[#allocation8 + $0x350] sm:$0xff]
    %v2128 = vld [vmem:[#allocation8 + $0x358] sm:$0xff]
    %v2129 = vld [vmem:[#allocation8 + $0x360] sm:$0xff]
    %v2130 = vld [vmem:[#allocation8 + $0x368] sm:$0xff]
    %v2131 = vld [vmem:[#allocation8 + $0x370] sm:$0xff]
    %v2132 = vld [vmem:[#allocation8 + $0x378] sm:$0xff]
    %v2133 = vld [vmem:[#allocation8 + $0x380] sm:$0xff]
    %v2134 = vld [vmem:[#allocation8 + $0x388] sm:$0xff]
    %v2135 = vld [vmem:[#allocation8 + $0x390] sm:$0xff]
    %v2136 = vld [vmem:[#allocation8 + $0x398] sm:$0xff]
    %v2137 = vld [vmem:[#allocation8 + $0x3a0] sm:$0xff]
    %v2138 = vld [vmem:[#allocation8 + $0x3a8] sm:$0xff]
    %v2139 = vld [vmem:[#allocation8 + $0x3b0] sm:$0xff]
    %v2140 = vld [vmem:[#allocation8 + $0x3b8] sm:$0xff]
    %v2141 = vld [vmem:[#allocation8 + $0x3c0] sm:$0xff]
    %v2142 = vld [vmem:[#allocation8 + $0x3c8] sm:$0xff]
    %v2143 = vld [vmem:[#allocation8 + $0x3d0] sm:$0xff]
    %v2144 = vld [vmem:[#allocation8 + $0x3d8] sm:$0xff]
    %v2145 = vld [vmem:[#allocation8 + $0x3e0] sm:$0xff]
    %v2146 = vld [vmem:[#allocation8 + $0x3e8] sm:$0xff]
    %v2147 = vld [vmem:[#allocation8 + $0x3f0] sm:$0xff]
    %v2148 = vld [vmem:[#allocation8 + $0x3f8] sm:$0xff]
    %v2149 = vld [vmem:[#allocation8 + $0x400] sm:$0xff]
    %v2150 = vld [vmem:[#allocation8 + $0x408] sm:$0xff]
    %v2151 = vld [vmem:[#allocation8 + $0x410] sm:$0xff]
    %v2152 = vld [vmem:[#allocation8 + $0x418] sm:$0xff]
    %v2153 = vld [vmem:[#allocation8 + $0x420] sm:$0xff]
    %v2154 = vld [vmem:[#allocation8 + $0x428] sm:$0xff]
    %v2155 = vld [vmem:[#allocation8 + $0x430] sm:$0xff]
    %v2156 = vld [vmem:[#allocation8 + $0x438] sm:$0xff]
    %v2157 = vld [vmem:[#allocation8 + $0x440] sm:$0xff]
    %v2158 = vld [vmem:[#allocation8 + $0x448] sm:$0xff]
    %v2159 = vld [vmem:[#allocation8 + $0x450] sm:$0xff]
    %v2160 = vld [vmem:[#allocation8 + $0x458] sm:$0xff]
    %v2161 = vld [vmem:[#allocation8 + $0x460] sm:$0xff]
    %v2162 = vld [vmem:[#allocation8 + $0x468] sm:$0xff]
    %v2163 = vld [vmem:[#allocation8 + $0x470] sm:$0xff]
    %v2164 = vld [vmem:[#allocation8 + $0x478] sm:$0xff]
    %v2165 = vld [vmem:[#allocation8 + $0x480] sm:$0xff]
    %v2166 = vld [vmem:[#allocation8 + $0x488] sm:$0xff]
    %v2167 = vld [vmem:[#allocation8 + $0x490] sm:$0xff]
    %v2168 = vld [vmem:[#allocation8 + $0x498] sm:$0xff]
    %v2169 = vld [vmem:[#allocation8 + $0x4a0] sm:$0xff]
    %v2170 = vld [vmem:[#allocation8 + $0x4a8] sm:$0xff]
    %v2171 = vld [vmem:[#allocation8 + $0x4b0] sm:$0xff]
    %v2172 = vld [vmem:[#allocation8 + $0x4b8] sm:$0xff]
    %v2173 = vld [vmem:[#allocation8 + $0x4c0] sm:$0xff]
    %v2174 = vld [vmem:[#allocation8 + $0x4c8] sm:$0xff]
    %v2175 = vld [vmem:[#allocation8 + $0x4d0] sm:$0xff]
    %v2176 = vld [vmem:[#allocation8 + $0x4d8] sm:$0xff]
    %v2177 = vld [vmem:[#allocation8 + $0x4e0] sm:$0xff]
    %v2178 = vld [vmem:[#allocation8 + $0x4e8] sm:$0xff]
    %v2179 = vld [vmem:[#allocation8 + $0x4f0] sm:$0xff]
    %v2180 = vld [vmem:[#allocation8 + $0x4f8] sm:$0xff]
    %v2181 = vld [vmem:[#allocation8 + $0x500] sm:$0xff]
    %v2182 = vld [vmem:[#allocation8 + $0x508] sm:$0xff]
    %v2183 = vld [vmem:[#allocation8 + $0x510] sm:$0xff]
    %v2184 = vld [vmem:[#allocation8 + $0x518] sm:$0xff]
    %v2185 = vld [vmem:[#allocation8 + $0x520] sm:$0xff]
    %v2186 = vld [vmem:[#allocation8 + $0x528] sm:$0xff]
    %v2187 = vld [vmem:[#allocation8 + $0x530] sm:$0xff]
    %v2188 = vld [vmem:[#allocation8 + $0x538] sm:$0xff]
    %v2189 = vld [vmem:[#allocation8 + $0x540] sm:$0xff]
    %v2190 = vld [vmem:[#allocation8 + $0x548] sm:$0xff]
    %v2191 = vld [vmem:[#allocation8 + $0x550] sm:$0xff]
    %v2192 = vld [vmem:[#allocation8 + $0x558] sm:$0xff]
    %v2193 = vld [vmem:[#allocation8 + $0x560] sm:$0xff]
    %v2194 = vld [vmem:[#allocation8 + $0x568] sm:$0xff]
    %v2195 = vld [vmem:[#allocation8 + $0x570] sm:$0xff]
    %v2196 = vld [vmem:[#allocation8 + $0x578] sm:$0xff]
    %v2197 = vld [vmem:[#allocation8 + $0x580] sm:$0xff]
    %v2198 = vld [vmem:[#allocation8 + $0x588] sm:$0xff]
    %v2199 = vld [vmem:[#allocation8 + $0x590] sm:$0xff]
    %v2200 = vld [vmem:[#allocation8 + $0x598] sm:$0xff]
    %v2201 = vld [vmem:[#allocation8 + $0x5a0] sm:$0xff]
    %v2202 = vld [vmem:[#allocation8 + $0x5a8] sm:$0xff]
    %v2203 = vld [vmem:[#allocation8 + $0x5b0] sm:$0xff]
    %v2204 = vld [vmem:[#allocation8 + $0x5b8] sm:$0xff]
    %v2205 = vld [vmem:[#allocation8 + $0x5c0] sm:$0xff]
    %v2206 = vld [vmem:[#allocation8 + $0x5c8] sm:$0xff]
    %v2207 = vld [vmem:[#allocation8 + $0x5d0] sm:$0xff]
    %v2208 = vld [vmem:[#allocation8 + $0x5d8] sm:$0xff]
    %v2209 = vld [vmem:[#allocation8 + $0x5e0] sm:$0xff]
    %v2210 = vld [vmem:[#allocation8 + $0x5e8] sm:$0xff]
    %v2211 = vld [vmem:[#allocation8 + $0x5f0] sm:$0xff]
    %v2212 = vld [vmem:[#allocation8 + $0x5f8] sm:$0xff]
    %v2213 = vld [vmem:[#allocation8 + $0x600] sm:$0xff]
    %v2214 = vld [vmem:[#allocation8 + $0x608] sm:$0xff]
    %v2215 = vld [vmem:[#allocation8 + $0x610] sm:$0xff]
    %v2216 = vld [vmem:[#allocation8 + $0x618] sm:$0xff]
    %v2217 = vld [vmem:[#allocation8 + $0x620] sm:$0xff]
    %v2218 = vld [vmem:[#allocation8 + $0x628] sm:$0xff]
    %v2219 = vld [vmem:[#allocation8 + $0x630] sm:$0xff]
    %v2220 = vld [vmem:[#allocation8 + $0x638] sm:$0xff]
    %v2221 = vld [vmem:[#allocation8 + $0x640] sm:$0xff]
    %v2222 = vld [vmem:[#allocation8 + $0x648] sm:$0xff]
    %v2223 = vld [vmem:[#allocation8 + $0x650] sm:$0xff]
    %v2224 = vld [vmem:[#allocation8 + $0x658] sm:$0xff]
    %v2225 = vld [vmem:[#allocation8 + $0x660] sm:$0xff]
    %v2226 = vld [vmem:[#allocation8 + $0x668] sm:$0xff]
    %v2227 = vld [vmem:[#allocation8 + $0x670] sm:$0xff]
    %v2228 = vld [vmem:[#allocation8 + $0x678] sm:$0xff]
    %v2229 = vld [vmem:[#allocation8 + $0x680] sm:$0xff]
    %v2230 = vld [vmem:[#allocation8 + $0x688] sm:$0xff]
    %v2231 = vld [vmem:[#allocation8 + $0x690] sm:$0xff]
    %v2232 = vld [vmem:[#allocation8 + $0x698] sm:$0xff]
    %v2233 = vld [vmem:[#allocation8 + $0x6a0] sm:$0xff]
    %v2234 = vld [vmem:[#allocation8 + $0x6a8] sm:$0xff]
    %v2235 = vld [vmem:[#allocation8 + $0x6b0] sm:$0xff]
    %v2236 = vld [vmem:[#allocation8 + $0x6b8] sm:$0xff]
    %v2237 = vld [vmem:[#allocation8 + $0x6c0] sm:$0xff]
    %v2238 = vld [vmem:[#allocation8 + $0x6c8] sm:$0xff]
    %v2239 = vld [vmem:[#allocation8 + $0x6d0] sm:$0xff]
    %v2240 = vld [vmem:[#allocation8 + $0x6d8] sm:$0xff]
    %v2241 = vld [vmem:[#allocation8 + $0x6e0] sm:$0xff]
    %v2242 = vld [vmem:[#allocation8 + $0x6e8] sm:$0xff]
    %v2243 = vld [vmem:[#allocation8 + $0x6f0] sm:$0xff]
    %v2244 = vld [vmem:[#allocation8 + $0x6f8] sm:$0xff]
    %v2245 = vld [vmem:[#allocation8 + $0x700] sm:$0xff]
    %v2246 = vld [vmem:[#allocation8 + $0x708] sm:$0xff]
    %v2247 = vld [vmem:[#allocation8 + $0x710] sm:$0xff]
    %v2248 = vld [vmem:[#allocation8 + $0x718] sm:$0xff]
    %v2249 = vld [vmem:[#allocation8 + $0x720] sm:$0xff]
    %v2250 = vld [vmem:[#allocation8 + $0x728] sm:$0xff]
    %v2251 = vld [vmem:[#allocation8 + $0x730] sm:$0xff]
    %v2252 = vld [vmem:[#allocation8 + $0x738] sm:$0xff]
    %v2253 = vld [vmem:[#allocation8 + $0x740] sm:$0xff]
    %v2254 = vld [vmem:[#allocation8 + $0x748] sm:$0xff]
    %v2255 = vld [vmem:[#allocation8 + $0x750] sm:$0xff]
    %v2256 = vld [vmem:[#allocation8 + $0x758] sm:$0xff]
    %v2257 = vld [vmem:[#allocation8 + $0x760] sm:$0xff]
    %v2258 = vld [vmem:[#allocation8 + $0x768] sm:$0xff]
    %v2259 = vld [vmem:[#allocation8 + $0x770] sm:$0xff]
    %v2260 = vld [vmem:[#allocation8 + $0x778] sm:$0xff]
    %v2261 = vld [vmem:[#allocation8 + $0x780] sm:$0xff]
    %v2262 = vld [vmem:[#allocation8 + $0x788] sm:$0xff]
    %v2263 = vld [vmem:[#allocation8 + $0x790] sm:$0xff]
    %v2264 = vld [vmem:[#allocation8 + $0x798] sm:$0xff]
    %v2265 = vld [vmem:[#allocation8 + $0x7a0] sm:$0xff]
    %v2266 = vld [vmem:[#allocation8 + $0x7a8] sm:$0xff]
    %v2267 = vld [vmem:[#allocation8 + $0x7b0] sm:$0xff]
    %v2268 = vld [vmem:[#allocation8 + $0x7b8] sm:$0xff]
    %v2269 = vld [vmem:[#allocation8 + $0x7c0] sm:$0xff]
    %v2270 = vld [vmem:[#allocation8 + $0x7c8] sm:$0xff]
    %v2271 = vld [vmem:[#allocation8 + $0x7d0] sm:$0xff]
    %v2272 = vld [vmem:[#allocation8 + $0x7d8] sm:$0xff]
    %v2273 = vld [vmem:[#allocation8 + $0x7e0] sm:$0xff]
    %v2274 = vld [vmem:[#allocation8 + $0x7e8] sm:$0xff]
    %v2275 = vld [vmem:[#allocation8 + $0x7f0] sm:$0xff]
    %v2276 = vld [vmem:[#allocation8 + $0x7f8] sm:$0xff]
    %v2277 = vperm.slane %v105, 2
    %v2278 = vperm.slane %v106, 2
    %2279 = vmatpush.msra.mxu0 %v2051
    %2280 = vmatpush.msra.mxu0 %v2049
    %2281 = vmatpush.msra.mxu0 %v2047
    %2282 = vmatpush.msra.mxu0 %v2045
    %2283 = vmatpush.msra.mxu0 %v2043
    %2284 = vmatpush.msra.mxu0 %v2041
    %2285 = vmatpush.msra.mxu0 %v2039
    %2286 = vmatpush.msra.mxu0 %v2037
    %2287 = vmatpush.msra.mxu0 %v2035
    %2288 = vmatpush.msra.mxu0 %v2033
    %2289 = vmatpush.msra.mxu0 %v2031
    %2290 = vmatpush.msra.mxu0 %v2029
    %2291 = vmatpush.msra.mxu0 %v2027
    %2292 = vmatpush.msra.mxu0 %v2025
    %2293 = vmatpush.msra.mxu0 %v2023
    %2294 = vmatpush.msra.mxu0 %v2021
    %2295 = vmatmul.f32.gmra.mxu0 %v1973
    %v2296 = vpop.f32.mrf.mxu0
    %v2297 = vadd.f32 %v2277, %v2296
    %2298 = vmatmul.f32.gmra.mxu0 %v1981
    %v2299 = vpop.f32.mrf.mxu0
    %v2300 = vadd.f32 %v2277, %v2299
    %2301 = vmatmul.f32.gmra.mxu0 %v1989
    %v2302 = vpop.f32.mrf.mxu0
    %v2303 = vadd.f32 %v2277, %v2302
    %2304 = vmatmul.f32.gmra.mxu0 %v1997
    %v2305 = vpop.f32.mrf.mxu0
    %v2306 = vadd.f32 %v2277, %v2305
    %2307 = vmatmul.f32.gmra.mxu0 %v2005
    %v2308 = vpop.f32.mrf.mxu0
    %v2309 = vadd.f32 %v2277, %v2308
    %2310 = vmatmul.f32.gmra.mxu0 %v2013
    %v2311 = vpop.f32.mrf.mxu0
    %v2312 = vadd.f32 %v2277, %v2311
    %2313 = vdwg.mxu0
    %2314 = vmatpush.msra.mxu0 %v2083
    %2315 = vmatpush.msra.mxu0 %v2081
    %2316 = vmatpush.msra.mxu0 %v2079
    %2317 = vmatpush.msra.mxu0 %v2077
    %2318 = vmatpush.msra.mxu0 %v2075
    %2319 = vmatpush.msra.mxu0 %v2073
    %2320 = vmatpush.msra.mxu0 %v2071
    %2321 = vmatpush.msra.mxu0 %v2069
    %2322 = vmatpush.msra.mxu0 %v2067
    %2323 = vmatpush.msra.mxu0 %v2065
    %2324 = vmatpush.msra.mxu0 %v2063
    %2325 = vmatpush.msra.mxu0 %v2061
    %2326 = vmatpush.msra.mxu0 %v2059
    %2327 = vmatpush.msra.mxu0 %v2057
    %2328 = vmatpush.msra.mxu0 %v2055
    %2329 = vmatpush.msra.mxu0 %v2053
    %2330 = vmatmul.f32.gmra.mxu0 %v1974
    %v2331 = vpop.f32.mrf.mxu0
    %v2332 = vadd.f32 %v2297, %v2331
    %2333 = vmatmul.f32.gmra.mxu0 %v1982
    %v2334 = vpop.f32.mrf.mxu0
    %v2335 = vadd.f32 %v2300, %v2334
    %2336 = vmatmul.f32.gmra.mxu0 %v1990
    %v2337 = vpop.f32.mrf.mxu0
    %v2338 = vadd.f32 %v2303, %v2337
    %2339 = vmatmul.f32.gmra.mxu0 %v1998
    %v2340 = vpop.f32.mrf.mxu0
    %v2341 = vadd.f32 %v2306, %v2340
    %2342 = vmatmul.f32.gmra.mxu0 %v2006
    %v2343 = vpop.f32.mrf.mxu0
    %v2344 = vadd.f32 %v2309, %v2343
    %2345 = vmatmul.f32.gmra.mxu0 %v2014
    %v2346 = vpop.f32.mrf.mxu0
    %v2347 = vadd.f32 %v2312, %v2346
    %2348 = vdwg.mxu0
    %2349 = vmatpush.msra.mxu0 %v2115
    %2350 = vmatpush.msra.mxu0 %v2113
    %2351 = vmatpush.msra.mxu0 %v2111
    %2352 = vmatpush.msra.mxu0 %v2109
    %2353 = vmatpush.msra.mxu0 %v2107
    %2354 = vmatpush.msra.mxu0 %v2105
    %2355 = vmatpush.msra.mxu0 %v2103
    %2356 = vmatpush.msra.mxu0 %v2101
    %2357 = vmatpush.msra.mxu0 %v2099
    %2358 = vmatpush.msra.mxu0 %v2097
    %2359 = vmatpush.msra.mxu0 %v2095
    %2360 = vmatpush.msra.mxu0 %v2093
    %2361 = vmatpush.msra.mxu0 %v2091
    %2362 = vmatpush.msra.mxu0 %v2089
    %2363 = vmatpush.msra.mxu0 %v2087
    %2364 = vmatpush.msra.mxu0 %v2085
    %2365 = vmatmul.f32.gmra.mxu0 %v1975
    %v2366 = vpop.f32.mrf.mxu0
    %v2367 = vadd.f32 %v2332, %v2366
    %2368 = vmatmul.f32.gmra.mxu0 %v1983
    %v2369 = vpop.f32.mrf.mxu0
    %v2370 = vadd.f32 %v2335, %v2369
    %2371 = vmatmul.f32.gmra.mxu0 %v1991
    %v2372 = vpop.f32.mrf.mxu0
    %v2373 = vadd.f32 %v2338, %v2372
    %2374 = vmatmul.f32.gmra.mxu0 %v1999
    %v2375 = vpop.f32.mrf.mxu0
    %v2376 = vadd.f32 %v2341, %v2375
    %2377 = vmatmul.f32.gmra.mxu0 %v2007
    %v2378 = vpop.f32.mrf.mxu0
    %v2379 = vadd.f32 %v2344, %v2378
    %2380 = vmatmul.f32.gmra.mxu0 %v2015
    %v2381 = vpop.f32.mrf.mxu0
    %v2382 = vadd.f32 %v2347, %v2381
    %2383 = vdwg.mxu0
    %2384 = vmatpush.msra.mxu0 %v2147
    %2385 = vmatpush.msra.mxu0 %v2145
    %2386 = vmatpush.msra.mxu0 %v2143
    %2387 = vmatpush.msra.mxu0 %v2141
    %2388 = vmatpush.msra.mxu0 %v2139
    %2389 = vmatpush.msra.mxu0 %v2137
    %2390 = vmatpush.msra.mxu0 %v2135
    %2391 = vmatpush.msra.mxu0 %v2133
    %2392 = vmatpush.msra.mxu0 %v2131
    %2393 = vmatpush.msra.mxu0 %v2129
    %2394 = vmatpush.msra.mxu0 %v2127
    %2395 = vmatpush.msra.mxu0 %v2125
    %2396 = vmatpush.msra.mxu0 %v2123
    %2397 = vmatpush.msra.mxu0 %v2121
    %2398 = vmatpush.msra.mxu0 %v2119
    %2399 = vmatpush.msra.mxu0 %v2117
    %2400 = vmatmul.f32.gmra.mxu0 %v1976
    %v2401 = vpop.f32.mrf.mxu0
    %v2402 = vadd.f32 %v2367, %v2401
    %2403 = vmatmul.f32.gmra.mxu0 %v1984
    %v2404 = vpop.f32.mrf.mxu0
    %v2405 = vadd.f32 %v2370, %v2404
    %2406 = vmatmul.f32.gmra.mxu0 %v1992
    %v2407 = vpop.f32.mrf.mxu0
    %v2408 = vadd.f32 %v2373, %v2407
    %2409 = vmatmul.f32.gmra.mxu0 %v2000
    %v2410 = vpop.f32.mrf.mxu0
    %v2411 = vadd.f32 %v2376, %v2410
    %2412 = vmatmul.f32.gmra.mxu0 %v2008
    %v2413 = vpop.f32.mrf.mxu0
    %v2414 = vadd.f32 %v2379, %v2413
    %2415 = vmatmul.f32.gmra.mxu0 %v2016
    %v2416 = vpop.f32.mrf.mxu0
    %v2417 = vadd.f32 %v2382, %v2416
    %2418 = vdwg.mxu0
    %2419 = vmatpush.msra.mxu0 %v2179
    %2420 = vmatpush.msra.mxu0 %v2177
    %2421 = vmatpush.msra.mxu0 %v2175
    %2422 = vmatpush.msra.mxu0 %v2173
    %2423 = vmatpush.msra.mxu0 %v2171
    %2424 = vmatpush.msra.mxu0 %v2169
    %2425 = vmatpush.msra.mxu0 %v2167
    %2426 = vmatpush.msra.mxu0 %v2165
    %2427 = vmatpush.msra.mxu0 %v2163
    %2428 = vmatpush.msra.mxu0 %v2161
    %2429 = vmatpush.msra.mxu0 %v2159
    %2430 = vmatpush.msra.mxu0 %v2157
    %2431 = vmatpush.msra.mxu0 %v2155
    %2432 = vmatpush.msra.mxu0 %v2153
    %2433 = vmatpush.msra.mxu0 %v2151
    %2434 = vmatpush.msra.mxu0 %v2149
    %2435 = vmatmul.f32.gmra.mxu0 %v1977
    %v2436 = vpop.f32.mrf.mxu0
    %v2437 = vadd.f32 %v2402, %v2436
    %2438 = vmatmul.f32.gmra.mxu0 %v1985
    %v2439 = vpop.f32.mrf.mxu0
    %v2440 = vadd.f32 %v2405, %v2439
    %2441 = vmatmul.f32.gmra.mxu0 %v1993
    %v2442 = vpop.f32.mrf.mxu0
    %v2443 = vadd.f32 %v2408, %v2442
    %2444 = vmatmul.f32.gmra.mxu0 %v2001
    %v2445 = vpop.f32.mrf.mxu0
    %v2446 = vadd.f32 %v2411, %v2445
    %2447 = vmatmul.f32.gmra.mxu0 %v2009
    %v2448 = vpop.f32.mrf.mxu0
    %v2449 = vadd.f32 %v2414, %v2448
    %2450 = vmatmul.f32.gmra.mxu0 %v2017
    %v2451 = vpop.f32.mrf.mxu0
    %v2452 = vadd.f32 %v2417, %v2451
    %2453 = vdwg.mxu0
    %2454 = vmatpush.msra.mxu0 %v2211
    %2455 = vmatpush.msra.mxu0 %v2209
    %2456 = vmatpush.msra.mxu0 %v2207
    %2457 = vmatpush.msra.mxu0 %v2205
    %2458 = vmatpush.msra.mxu0 %v2203
    %2459 = vmatpush.msra.mxu0 %v2201
    %2460 = vmatpush.msra.mxu0 %v2199
    %2461 = vmatpush.msra.mxu0 %v2197
    %2462 = vmatpush.msra.mxu0 %v2195
    %2463 = vmatpush.msra.mxu0 %v2193
    %2464 = vmatpush.msra.mxu0 %v2191
    %2465 = vmatpush.msra.mxu0 %v2189
    %2466 = vmatpush.msra.mxu0 %v2187
    %2467 = vmatpush.msra.mxu0 %v2185
    %2468 = vmatpush.msra.mxu0 %v2183
    %2469 = vmatpush.msra.mxu0 %v2181
    %2470 = vmatmul.f32.gmra.mxu0 %v1978
    %v2471 = vpop.f32.mrf.mxu0
    %v2472 = vadd.f32 %v2437, %v2471
    %2473 = vmatmul.f32.gmra.mxu0 %v1986
    %v2474 = vpop.f32.mrf.mxu0
    %v2475 = vadd.f32 %v2440, %v2474
    %2476 = vmatmul.f32.gmra.mxu0 %v1994
    %v2477 = vpop.f32.mrf.mxu0
    %v2478 = vadd.f32 %v2443, %v2477
    %2479 = vmatmul.f32.gmra.mxu0 %v2002
    %v2480 = vpop.f32.mrf.mxu0
    %v2481 = vadd.f32 %v2446, %v2480
    %2482 = vmatmul.f32.gmra.mxu0 %v2010
    %v2483 = vpop.f32.mrf.mxu0
    %v2484 = vadd.f32 %v2449, %v2483
    %2485 = vmatmul.f32.gmra.mxu0 %v2018
    %v2486 = vpop.f32.mrf.mxu0
    %v2487 = vadd.f32 %v2452, %v2486
    %2488 = vdwg.mxu0
    %2489 = vmatpush.msra.mxu0 %v2243
    %2490 = vmatpush.msra.mxu0 %v2241
    %2491 = vmatpush.msra.mxu0 %v2239
    %2492 = vmatpush.msra.mxu0 %v2237
    %2493 = vmatpush.msra.mxu0 %v2235
    %2494 = vmatpush.msra.mxu0 %v2233
    %2495 = vmatpush.msra.mxu0 %v2231
    %2496 = vmatpush.msra.mxu0 %v2229
    %2497 = vmatpush.msra.mxu0 %v2227
    %2498 = vmatpush.msra.mxu0 %v2225
    %2499 = vmatpush.msra.mxu0 %v2223
    %2500 = vmatpush.msra.mxu0 %v2221
    %2501 = vmatpush.msra.mxu0 %v2219
    %2502 = vmatpush.msra.mxu0 %v2217
    %2503 = vmatpush.msra.mxu0 %v2215
    %2504 = vmatpush.msra.mxu0 %v2213
    %2505 = vmatmul.f32.gmra.mxu0 %v1979
    %v2506 = vpop.f32.mrf.mxu0
    %v2507 = vadd.f32 %v2472, %v2506
    %2508 = vmatmul.f32.gmra.mxu0 %v1987
    %v2509 = vpop.f32.mrf.mxu0
    %v2510 = vadd.f32 %v2475, %v2509
    %2511 = vmatmul.f32.gmra.mxu0 %v1995
    %v2512 = vpop.f32.mrf.mxu0
    %v2513 = vadd.f32 %v2478, %v2512
    %2514 = vmatmul.f32.gmra.mxu0 %v2003
    %v2515 = vpop.f32.mrf.mxu0
    %v2516 = vadd.f32 %v2481, %v2515
    %2517 = vmatmul.f32.gmra.mxu0 %v2011
    %v2518 = vpop.f32.mrf.mxu0
    %v2519 = vadd.f32 %v2484, %v2518
    %2520 = vmatmul.f32.gmra.mxu0 %v2019
    %v2521 = vpop.f32.mrf.mxu0
    %v2522 = vadd.f32 %v2487, %v2521
    %2523 = vdwg.mxu0
    %2524 = vmatpush.msra.mxu0 %v2275
    %2525 = vmatpush.msra.mxu0 %v2273
    %2526 = vmatpush.msra.mxu0 %v2271
    %2527 = vmatpush.msra.mxu0 %v2269
    %2528 = vmatpush.msra.mxu0 %v2267
    %2529 = vmatpush.msra.mxu0 %v2265
    %2530 = vmatpush.msra.mxu0 %v2263
    %2531 = vmatpush.msra.mxu0 %v2261
    %2532 = vmatpush.msra.mxu0 %v2259
    %2533 = vmatpush.msra.mxu0 %v2257
    %2534 = vmatpush.msra.mxu0 %v2255
    %2535 = vmatpush.msra.mxu0 %v2253
    %2536 = vmatpush.msra.mxu0 %v2251
    %2537 = vmatpush.msra.mxu0 %v2249
    %2538 = vmatpush.msra.mxu0 %v2247
    %2539 = vmatpush.msra.mxu0 %v2245
    %2540 = vmatmul.f32.gmra.mxu0 %v1980
    %v2541 = vpop.f32.mrf.mxu0
    %v2542 = vadd.f32 %v2507, %v2541
    %2543 = vmatmul.f32.gmra.mxu0 %v1988
    %v2544 = vpop.f32.mrf.mxu0
    %v2545 = vadd.f32 %v2510, %v2544
    %2546 = vmatmul.f32.gmra.mxu0 %v1996
    %v2547 = vpop.f32.mrf.mxu0
    %v2548 = vadd.f32 %v2513, %v2547
    %2549 = vmatmul.f32.gmra.mxu0 %v2004
    %v2550 = vpop.f32.mrf.mxu0
    %v2551 = vadd.f32 %v2516, %v2550
    %2552 = vmatmul.f32.gmra.mxu0 %v2012
    %v2553 = vpop.f32.mrf.mxu0
    %v2554 = vadd.f32 %v2519, %v2553
    %2555 = vmatmul.f32.gmra.mxu0 %v2020
    %v2556 = vpop.f32.mrf.mxu0
    %v2557 = vadd.f32 %v2522, %v2556
    %2558 = vdwg.mxu0
    %2559 = vmatpush.msra.mxu0 %v2052
    %2560 = vmatpush.msra.mxu0 %v2050
    %2561 = vmatpush.msra.mxu0 %v2048
    %2562 = vmatpush.msra.mxu0 %v2046
    %2563 = vmatpush.msra.mxu0 %v2044
    %2564 = vmatpush.msra.mxu0 %v2042
    %2565 = vmatpush.msra.mxu0 %v2040
    %2566 = vmatpush.msra.mxu0 %v2038
    %2567 = vmatpush.msra.mxu0 %v2036
    %2568 = vmatpush.msra.mxu0 %v2034
    %2569 = vmatpush.msra.mxu0 %v2032
    %2570 = vmatpush.msra.mxu0 %v2030
    %2571 = vmatpush.msra.mxu0 %v2028
    %2572 = vmatpush.msra.mxu0 %v2026
    %2573 = vmatpush.msra.mxu0 %v2024
    %2574 = vmatpush.msra.mxu0 %v2022
    %2575 = vmatmul.f32.gmra.mxu0 %v1973
    %v2576 = vpop.f32.mrf.mxu0
    %v2577 = vadd.f32 %v2278, %v2576
    %2578 = vmatmul.f32.gmra.mxu0 %v1981
    %v2579 = vpop.f32.mrf.mxu0
    %v2580 = vadd.f32 %v2278, %v2579
    %2581 = vmatmul.f32.gmra.mxu0 %v1989
    %v2582 = vpop.f32.mrf.mxu0
    %v2583 = vadd.f32 %v2278, %v2582
    %2584 = vmatmul.f32.gmra.mxu0 %v1997
    %v2585 = vpop.f32.mrf.mxu0
    %v2586 = vadd.f32 %v2278, %v2585
    %2587 = vmatmul.f32.gmra.mxu0 %v2005
    %v2588 = vpop.f32.mrf.mxu0
    %v2589 = vadd.f32 %v2278, %v2588
    %2590 = vmatmul.f32.gmra.mxu0 %v2013
    %v2591 = vpop.f32.mrf.mxu0
    %v2592 = vadd.f32 %v2278, %v2591
    %2593 = vdwg.mxu0
    %2594 = vmatpush.msra.mxu0 %v2084
    %2595 = vmatpush.msra.mxu0 %v2082
    %2596 = vmatpush.msra.mxu0 %v2080
    %2597 = vmatpush.msra.mxu0 %v2078
    %2598 = vmatpush.msra.mxu0 %v2076
    %2599 = vmatpush.msra.mxu0 %v2074
    %2600 = vmatpush.msra.mxu0 %v2072
    %2601 = vmatpush.msra.mxu0 %v2070
    %2602 = vmatpush.msra.mxu0 %v2068
    %2603 = vmatpush.msra.mxu0 %v2066
    %2604 = vmatpush.msra.mxu0 %v2064
    %2605 = vmatpush.msra.mxu0 %v2062
    %2606 = vmatpush.msra.mxu0 %v2060
    %2607 = vmatpush.msra.mxu0 %v2058
    %2608 = vmatpush.msra.mxu0 %v2056
    %2609 = vmatpush.msra.mxu0 %v2054
    %2610 = vmatmul.f32.gmra.mxu0 %v1974
    %v2611 = vpop.f32.mrf.mxu0
    %v2612 = vadd.f32 %v2577, %v2611
    %2613 = vmatmul.f32.gmra.mxu0 %v1982
    %v2614 = vpop.f32.mrf.mxu0
    %v2615 = vadd.f32 %v2580, %v2614
    %2616 = vmatmul.f32.gmra.mxu0 %v1990
    %v2617 = vpop.f32.mrf.mxu0
    %v2618 = vadd.f32 %v2583, %v2617
    %2619 = vmatmul.f32.gmra.mxu0 %v1998
    %v2620 = vpop.f32.mrf.mxu0
    %v2621 = vadd.f32 %v2586, %v2620
    %2622 = vmatmul.f32.gmra.mxu0 %v2006
    %v2623 = vpop.f32.mrf.mxu0
    %v2624 = vadd.f32 %v2589, %v2623
    %2625 = vmatmul.f32.gmra.mxu0 %v2014
    %v2626 = vpop.f32.mrf.mxu0
    %v2627 = vadd.f32 %v2592, %v2626
    %2628 = vdwg.mxu0
    %2629 = vmatpush.msra.mxu0 %v2116
    %2630 = vmatpush.msra.mxu0 %v2114
    %2631 = vmatpush.msra.mxu0 %v2112
    %2632 = vmatpush.msra.mxu0 %v2110
    %2633 = vmatpush.msra.mxu0 %v2108
    %2634 = vmatpush.msra.mxu0 %v2106
    %2635 = vmatpush.msra.mxu0 %v2104
    %2636 = vmatpush.msra.mxu0 %v2102
    %2637 = vmatpush.msra.mxu0 %v2100
    %2638 = vmatpush.msra.mxu0 %v2098
    %2639 = vmatpush.msra.mxu0 %v2096
    %2640 = vmatpush.msra.mxu0 %v2094
    %2641 = vmatpush.msra.mxu0 %v2092
    %2642 = vmatpush.msra.mxu0 %v2090
    %2643 = vmatpush.msra.mxu0 %v2088
    %2644 = vmatpush.msra.mxu0 %v2086
    %2645 = vmatmul.f32.gmra.mxu0 %v1975
    %v2646 = vpop.f32.mrf.mxu0
    %v2647 = vadd.f32 %v2612, %v2646
    %2648 = vmatmul.f32.gmra.mxu0 %v1983
    %v2649 = vpop.f32.mrf.mxu0
    %v2650 = vadd.f32 %v2615, %v2649
    %2651 = vmatmul.f32.gmra.mxu0 %v1991
    %v2652 = vpop.f32.mrf.mxu0
    %v2653 = vadd.f32 %v2618, %v2652
    %2654 = vmatmul.f32.gmra.mxu0 %v1999
    %v2655 = vpop.f32.mrf.mxu0
    %v2656 = vadd.f32 %v2621, %v2655
    %2657 = vmatmul.f32.gmra.mxu0 %v2007
    %v2658 = vpop.f32.mrf.mxu0
    %v2659 = vadd.f32 %v2624, %v2658
    %2660 = vmatmul.f32.gmra.mxu0 %v2015
    %v2661 = vpop.f32.mrf.mxu0
    %v2662 = vadd.f32 %v2627, %v2661
    %2663 = vdwg.mxu0
    %2664 = vmatpush.msra.mxu0 %v2148
    %2665 = vmatpush.msra.mxu0 %v2146
    %2666 = vmatpush.msra.mxu0 %v2144
    %2667 = vmatpush.msra.mxu0 %v2142
    %2668 = vmatpush.msra.mxu0 %v2140
    %2669 = vmatpush.msra.mxu0 %v2138
    %2670 = vmatpush.msra.mxu0 %v2136
    %2671 = vmatpush.msra.mxu0 %v2134
    %2672 = vmatpush.msra.mxu0 %v2132
    %2673 = vmatpush.msra.mxu0 %v2130
    %2674 = vmatpush.msra.mxu0 %v2128
    %2675 = vmatpush.msra.mxu0 %v2126
    %2676 = vmatpush.msra.mxu0 %v2124
    %2677 = vmatpush.msra.mxu0 %v2122
    %2678 = vmatpush.msra.mxu0 %v2120
    %2679 = vmatpush.msra.mxu0 %v2118
    %2680 = vmatmul.f32.gmra.mxu0 %v1976
    %v2681 = vpop.f32.mrf.mxu0
    %v2682 = vadd.f32 %v2647, %v2681
    %2683 = vmatmul.f32.gmra.mxu0 %v1984
    %v2684 = vpop.f32.mrf.mxu0
    %v2685 = vadd.f32 %v2650, %v2684
    %2686 = vmatmul.f32.gmra.mxu0 %v1992
    %v2687 = vpop.f32.mrf.mxu0
    %v2688 = vadd.f32 %v2653, %v2687
    %2689 = vmatmul.f32.gmra.mxu0 %v2000
    %v2690 = vpop.f32.mrf.mxu0
    %v2691 = vadd.f32 %v2656, %v2690
    %2692 = vmatmul.f32.gmra.mxu0 %v2008
    %v2693 = vpop.f32.mrf.mxu0
    %v2694 = vadd.f32 %v2659, %v2693
    %2695 = vmatmul.f32.gmra.mxu0 %v2016
    %v2696 = vpop.f32.mrf.mxu0
    %v2697 = vadd.f32 %v2662, %v2696
    %2698 = vdwg.mxu0
    %2699 = vmatpush.msra.mxu0 %v2180
    %2700 = vmatpush.msra.mxu0 %v2178
    %2701 = vmatpush.msra.mxu0 %v2176
    %2702 = vmatpush.msra.mxu0 %v2174
    %2703 = vmatpush.msra.mxu0 %v2172
    %2704 = vmatpush.msra.mxu0 %v2170
    %2705 = vmatpush.msra.mxu0 %v2168
    %2706 = vmatpush.msra.mxu0 %v2166
    %2707 = vmatpush.msra.mxu0 %v2164
    %2708 = vmatpush.msra.mxu0 %v2162
    %2709 = vmatpush.msra.mxu0 %v2160
    %2710 = vmatpush.msra.mxu0 %v2158
    %2711 = vmatpush.msra.mxu0 %v2156
    %2712 = vmatpush.msra.mxu0 %v2154
    %2713 = vmatpush.msra.mxu0 %v2152
    %2714 = vmatpush.msra.mxu0 %v2150
    %2715 = vmatmul.f32.gmra.mxu0 %v1977
    %v2716 = vpop.f32.mrf.mxu0
    %v2717 = vadd.f32 %v2682, %v2716
    %2718 = vmatmul.f32.gmra.mxu0 %v1985
    %v2719 = vpop.f32.mrf.mxu0
    %v2720 = vadd.f32 %v2685, %v2719
    %2721 = vmatmul.f32.gmra.mxu0 %v1993
    %v2722 = vpop.f32.mrf.mxu0
    %v2723 = vadd.f32 %v2688, %v2722
    %2724 = vmatmul.f32.gmra.mxu0 %v2001
    %v2725 = vpop.f32.mrf.mxu0
    %v2726 = vadd.f32 %v2691, %v2725
    %2727 = vmatmul.f32.gmra.mxu0 %v2009
    %v2728 = vpop.f32.mrf.mxu0
    %v2729 = vadd.f32 %v2694, %v2728
    %2730 = vmatmul.f32.gmra.mxu0 %v2017
    %v2731 = vpop.f32.mrf.mxu0
    %v2732 = vadd.f32 %v2697, %v2731
    %2733 = vdwg.mxu0
    %2734 = vmatpush.msra.mxu0 %v2212
    %2735 = vmatpush.msra.mxu0 %v2210
    %2736 = vmatpush.msra.mxu0 %v2208
    %2737 = vmatpush.msra.mxu0 %v2206
    %2738 = vmatpush.msra.mxu0 %v2204
    %2739 = vmatpush.msra.mxu0 %v2202
    %2740 = vmatpush.msra.mxu0 %v2200
    %2741 = vmatpush.msra.mxu0 %v2198
    %2742 = vmatpush.msra.mxu0 %v2196
    %2743 = vmatpush.msra.mxu0 %v2194
    %2744 = vmatpush.msra.mxu0 %v2192
    %2745 = vmatpush.msra.mxu0 %v2190
    %2746 = vmatpush.msra.mxu0 %v2188
    %2747 = vmatpush.msra.mxu0 %v2186
    %2748 = vmatpush.msra.mxu0 %v2184
    %2749 = vmatpush.msra.mxu0 %v2182
    %2750 = vmatmul.f32.gmra.mxu0 %v1978
    %v2751 = vpop.f32.mrf.mxu0
    %v2752 = vadd.f32 %v2717, %v2751
    %2753 = vmatmul.f32.gmra.mxu0 %v1986
    %v2754 = vpop.f32.mrf.mxu0
    %v2755 = vadd.f32 %v2720, %v2754
    %2756 = vmatmul.f32.gmra.mxu0 %v1994
    %v2757 = vpop.f32.mrf.mxu0
    %v2758 = vadd.f32 %v2723, %v2757
    %2759 = vmatmul.f32.gmra.mxu0 %v2002
    %v2760 = vpop.f32.mrf.mxu0
    %v2761 = vadd.f32 %v2726, %v2760
    %2762 = vmatmul.f32.gmra.mxu0 %v2010
    %v2763 = vpop.f32.mrf.mxu0
    %v2764 = vadd.f32 %v2729, %v2763
    %2765 = vmatmul.f32.gmra.mxu0 %v2018
    %v2766 = vpop.f32.mrf.mxu0
    %v2767 = vadd.f32 %v2732, %v2766
    %2768 = vdwg.mxu0
    %2769 = vmatpush.msra.mxu0 %v2244
    %2770 = vmatpush.msra.mxu0 %v2242
    %2771 = vmatpush.msra.mxu0 %v2240
    %2772 = vmatpush.msra.mxu0 %v2238
    %2773 = vmatpush.msra.mxu0 %v2236
    %2774 = vmatpush.msra.mxu0 %v2234
    %2775 = vmatpush.msra.mxu0 %v2232
    %2776 = vmatpush.msra.mxu0 %v2230
    %2777 = vmatpush.msra.mxu0 %v2228
    %2778 = vmatpush.msra.mxu0 %v2226
    %2779 = vmatpush.msra.mxu0 %v2224
    %2780 = vmatpush.msra.mxu0 %v2222
    %2781 = vmatpush.msra.mxu0 %v2220
    %2782 = vmatpush.msra.mxu0 %v2218
    %2783 = vmatpush.msra.mxu0 %v2216
    %2784 = vmatpush.msra.mxu0 %v2214
    %2785 = vmatmul.f32.gmra.mxu0 %v1979
    %v2786 = vpop.f32.mrf.mxu0
    %v2787 = vadd.f32 %v2752, %v2786
    %2788 = vmatmul.f32.gmra.mxu0 %v1987
    %v2789 = vpop.f32.mrf.mxu0
    %v2790 = vadd.f32 %v2755, %v2789
    %2791 = vmatmul.f32.gmra.mxu0 %v1995
    %v2792 = vpop.f32.mrf.mxu0
    %v2793 = vadd.f32 %v2758, %v2792
    %2794 = vmatmul.f32.gmra.mxu0 %v2003
    %v2795 = vpop.f32.mrf.mxu0
    %v2796 = vadd.f32 %v2761, %v2795
    %2797 = vmatmul.f32.gmra.mxu0 %v2011
    %v2798 = vpop.f32.mrf.mxu0
    %v2799 = vadd.f32 %v2764, %v2798
    %2800 = vmatmul.f32.gmra.mxu0 %v2019
    %v2801 = vpop.f32.mrf.mxu0
    %v2802 = vadd.f32 %v2767, %v2801
    %2803 = vdwg.mxu0
    %2804 = vmatpush.msra.mxu0 %v2276
    %2805 = vmatpush.msra.mxu0 %v2274
    %2806 = vmatpush.msra.mxu0 %v2272
    %2807 = vmatpush.msra.mxu0 %v2270
    %2808 = vmatpush.msra.mxu0 %v2268
    %2809 = vmatpush.msra.mxu0 %v2266
    %2810 = vmatpush.msra.mxu0 %v2264
    %2811 = vmatpush.msra.mxu0 %v2262
    %2812 = vmatpush.msra.mxu0 %v2260
    %2813 = vmatpush.msra.mxu0 %v2258
    %2814 = vmatpush.msra.mxu0 %v2256
    %2815 = vmatpush.msra.mxu0 %v2254
    %2816 = vmatpush.msra.mxu0 %v2252
    %2817 = vmatpush.msra.mxu0 %v2250
    %2818 = vmatpush.msra.mxu0 %v2248
    %2819 = vmatpush.msra.mxu0 %v2246
    %2820 = vmatmul.f32.gmra.mxu0 %v1980
    %v2821 = vpop.f32.mrf.mxu0
    %v2822 = vadd.f32 %v2787, %v2821
    %2823 = vmatmul.f32.gmra.mxu0 %v1988
    %v2824 = vpop.f32.mrf.mxu0
    %v2825 = vadd.f32 %v2790, %v2824
    %2826 = vmatmul.f32.gmra.mxu0 %v1996
    %v2827 = vpop.f32.mrf.mxu0
    %v2828 = vadd.f32 %v2793, %v2827
    %2829 = vmatmul.f32.gmra.mxu0 %v2004
    %v2830 = vpop.f32.mrf.mxu0
    %v2831 = vadd.f32 %v2796, %v2830
    %2832 = vmatmul.f32.gmra.mxu0 %v2012
    %v2833 = vpop.f32.mrf.mxu0
    %v2834 = vadd.f32 %v2799, %v2833
    %2835 = vmatmul.f32.gmra.mxu0 %v2020
    %v2836 = vpop.f32.mrf.mxu0
    %v2837 = vadd.f32 %v2802, %v2836
    %2838 = vdwg.mxu0
    %v2839 = vadd.f32 %v949, %v2542
    %v2840 = vadd.f32 %v950, %v2822
    %v2841 = vadd.f32 %v951, %v2545
    %v2842 = vadd.f32 %v952, %v2825
    %v2843 = vadd.f32 %v953, %v2548
    %v2844 = vadd.f32 %v954, %v2828
    %v2845 = vadd.f32 %v955, %v2551
    %v2846 = vadd.f32 %v956, %v2831
    %v2847 = vadd.f32 %v957, %v2554
    %v2848 = vadd.f32 %v958, %v2834
    %v2849 = vadd.f32 %v959, %v2557
    %v2850 = vadd.f32 %v960, %v2837
    %v2851 = vadd.f32 %v2839, %v2840
    %2852 = vadd.xlane.f32.xlu0 %v2851
    %v2853 = vpop.xlane.xlu0 %2852
    %v2854 = vadd.f32 %v2841, %v2842
    %2855 = vadd.xlane.f32.xlu0 %v2854
    %v2856 = vpop.xlane.xlu0 %2855
    %v2857 = vadd.f32 %v2843, %v2844
    %2858 = vadd.xlane.f32.xlu0 %v2857
    %v2859 = vpop.xlane.xlu0 %2858
    %v2860 = vadd.f32 %v2845, %v2846
    %2861 = vadd.xlane.f32.xlu0 %v2860
    %v2862 = vpop.xlane.xlu0 %2861
    %v2863 = vadd.f32 %v2847, %v2848
    %2864 = vadd.xlane.f32.xlu0 %v2863
    %v2865 = vpop.xlane.xlu0 %2864
    %v2866 = vadd.f32 %v2849, %v2850
    %2867 = vadd.xlane.f32.xlu0 %v2866
    %v2868 = vpop.xlane.xlu0 %2867
    %v2869 = vmul.f32 %v2853, %v133
    %v2870 = vmul.f32 %v2856, %v133
    %v2871 = vmul.f32 %v2859, %v133
    %v2872 = vmul.f32 %v2862, %v133
    %v2873 = vmul.f32 %v2865, %v133
    %v2874 = vmul.f32 %v2868, %v133
    %v2875 = vsub.f32 %v2839, %v2869
    %v2876 = vsub.f32 %v2840, %v2869
    %v2877 = vsub.f32 %v2841, %v2870
    %v2878 = vsub.f32 %v2842, %v2870
    %v2879 = vsub.f32 %v2843, %v2871
    %v2880 = vsub.f32 %v2844, %v2871
    %v2881 = vsub.f32 %v2845, %v2872
    %v2882 = vsub.f32 %v2846, %v2872
    %v2883 = vsub.f32 %v2847, %v2873
    %v2884 = vsub.f32 %v2848, %v2873
    %v2885 = vsub.f32 %v2849, %v2874
    %v2886 = vsub.f32 %v2850, %v2874
    %v2887 = vmul.f32 %v2875, %v2875
    %v2888 = vmul.f32 %v2876, %v2876
    %v2889 = vmul.f32 %v2877, %v2877
    %v2890 = vmul.f32 %v2878, %v2878
    %v2891 = vmul.f32 %v2879, %v2879
    %v2892 = vmul.f32 %v2880, %v2880
    %v2893 = vmul.f32 %v2881, %v2881
    %v2894 = vmul.f32 %v2882, %v2882
    %v2895 = vmul.f32 %v2883, %v2883
    %v2896 = vmul.f32 %v2884, %v2884
    %v2897 = vmul.f32 %v2885, %v2885
    %v2898 = vmul.f32 %v2886, %v2886
    %v2899 = vadd.f32 %v2887, %v2888
    %2900 = vadd.xlane.f32.xlu0 %v2899
    %v2901 = vpop.xlane.xlu0 %2900
    %v2902 = vadd.f32 %v2889, %v2890
    %2903 = vadd.xlane.f32.xlu0 %v2902
    %v2904 = vpop.xlane.xlu0 %2903
    %v2905 = vadd.f32 %v2891, %v2892
    %2906 = vadd.xlane.f32.xlu0 %v2905
    %v2907 = vpop.xlane.xlu0 %2906
    %v2908 = vadd.f32 %v2893, %v2894
    %2909 = vadd.xlane.f32.xlu0 %v2908
    %v2910 = vpop.xlane.xlu0 %2909
    %v2911 = vadd.f32 %v2895, %v2896
    %2912 = vadd.xlane.f32.xlu0 %v2911
    %v2913 = vpop.xlane.xlu0 %2912
    %v2914 = vadd.f32 %v2897, %v2898
    %2915 = vadd.xlane.f32.xlu0 %v2914
    %v2916 = vpop.xlane.xlu0 %2915
    %v2917 = vmul.f32 %v2901, %v133
    %v2918 = vmul.f32 %v2904, %v133
    %v2919 = vmul.f32 %v2907, %v133
    %v2920 = vmul.f32 %v2910, %v133
    %v2921 = vmul.f32 %v2913, %v133
    %v2922 = vmul.f32 %v2916, %v133
    %v2923 = vadd.f32 %v2917, 1e-05
    %v2924 = vadd.f32 %v2918, 1e-05
    %v2925 = vadd.f32 %v2919, 1e-05
    %v2926 = vadd.f32 %v2920, 1e-05
    %v2927 = vadd.f32 %v2921, 1e-05
    %v2928 = vadd.f32 %v2922, 1e-05
    %v2929 = vrsqrt.pop %v2923
    %v2930 = vmul.f32 %v2929, %v2923
    %v2931 = vmul.f32 %v2930, %v2929
    %v2932 = vmul.f32 0.5, %v2931
    %v2933 = vsub.f32 1.5, %v2932
    %v2934 = vmul.f32 %v2929, %v2933
    %vm2935 = vweird.f32 %v2923
    %vm2936 = vweird.f32 %v2929
    %vm2937 = vmor %vm2935, %vm2936
    %v2938 = vsel %vm2937, %v2929, %v2934
    %v2939 = vrsqrt.pop %v2924
    %v2940 = vmul.f32 %v2939, %v2924
    %v2941 = vmul.f32 %v2940, %v2939
    %v2942 = vmul.f32 0.5, %v2941
    %v2943 = vsub.f32 1.5, %v2942
    %v2944 = vmul.f32 %v2939, %v2943
    %vm2945 = vweird.f32 %v2924
    %vm2946 = vweird.f32 %v2939
    %vm2947 = vmor %vm2945, %vm2946
    %v2948 = vsel %vm2947, %v2939, %v2944
    %v2949 = vrsqrt.pop %v2925
    %v2950 = vmul.f32 %v2949, %v2925
    %v2951 = vmul.f32 %v2950, %v2949
    %v2952 = vmul.f32 0.5, %v2951
    %v2953 = vsub.f32 1.5, %v2952
    %v2954 = vmul.f32 %v2949, %v2953
    %vm2955 = vweird.f32 %v2925
    %vm2956 = vweird.f32 %v2949
    %vm2957 = vmor %vm2955, %vm2956
    %v2958 = vsel %vm2957, %v2949, %v2954
    %v2959 = vrsqrt.pop %v2926
    %v2960 = vmul.f32 %v2959, %v2926
    %v2961 = vmul.f32 %v2960, %v2959
    %v2962 = vmul.f32 0.5, %v2961
    %v2963 = vsub.f32 1.5, %v2962
    %v2964 = vmul.f32 %v2959, %v2963
    %vm2965 = vweird.f32 %v2926
    %vm2966 = vweird.f32 %v2959
    %vm2967 = vmor %vm2965, %vm2966
    %v2968 = vsel %vm2967, %v2959, %v2964
    %v2969 = vrsqrt.pop %v2927
    %v2970 = vmul.f32 %v2969, %v2927
    %v2971 = vmul.f32 %v2970, %v2969
    %v2972 = vmul.f32 0.5, %v2971
    %v2973 = vsub.f32 1.5, %v2972
    %v2974 = vmul.f32 %v2969, %v2973
    %vm2975 = vweird.f32 %v2927
    %vm2976 = vweird.f32 %v2969
    %vm2977 = vmor %vm2975, %vm2976
    %v2978 = vsel %vm2977, %v2969, %v2974
    %v2979 = vrsqrt.pop %v2928
    %v2980 = vmul.f32 %v2979, %v2928
    %v2981 = vmul.f32 %v2980, %v2979
    %v2982 = vmul.f32 0.5, %v2981
    %v2983 = vsub.f32 1.5, %v2982
    %v2984 = vmul.f32 %v2979, %v2983
    %vm2985 = vweird.f32 %v2928
    %vm2986 = vweird.f32 %v2979
    %vm2987 = vmor %vm2985, %vm2986
    %v2988 = vsel %vm2987, %v2979, %v2984
    %v2989 = vmul.f32 %v2875, %v2938
    %v2990 = vmul.f32 %v2876, %v2938
    %v2991 = vmul.f32 %v2877, %v2948
    %v2992 = vmul.f32 %v2878, %v2948
    %v2993 = vmul.f32 %v2879, %v2958
    %v2994 = vmul.f32 %v2880, %v2958
    %v2995 = vmul.f32 %v2881, %v2968
    %v2996 = vmul.f32 %v2882, %v2968
    %v2997 = vmul.f32 %v2883, %v2978
    %v2998 = vmul.f32 %v2884, %v2978
    %v2999 = vmul.f32 %v2885, %v2988
    %v3000 = vmul.f32 %v2886, %v2988
    %v3001 = vperm.slane %v105, 0
    %v3002 = vperm.slane %v106, 0
    %v3003 = vmul.f32 %v2989, %v3001
    %v3004 = vmul.f32 %v2990, %v3002
    %v3005 = vmul.f32 %v2991, %v3001
    %v3006 = vmul.f32 %v2992, %v3002
    %v3007 = vmul.f32 %v2993, %v3001
    %v3008 = vmul.f32 %v2994, %v3002
    %v3009 = vmul.f32 %v2995, %v3001
    %v3010 = vmul.f32 %v2996, %v3002
    %v3011 = vmul.f32 %v2997, %v3001
    %v3012 = vmul.f32 %v2998, %v3002
    %v3013 = vmul.f32 %v2999, %v3001
    %v3014 = vmul.f32 %v3000, %v3002
    %v3015 = vperm.slane %v105, 1
    %v3016 = vperm.slane %v106, 1
    %v3017 = vadd.f32 %v3003, %v3015
    %v3018 = vadd.f32 %v3004, %v3016
    %v3019 = vadd.f32 %v3005, %v3015
    %v3020 = vadd.f32 %v3006, %v3016
    %v3021 = vadd.f32 %v3007, %v3015
    %v3022 = vadd.f32 %v3008, %v3016
    %v3023 = vadd.f32 %v3009, %v3015
    %v3024 = vadd.f32 %v3010, %v3016
    %v3025 = vadd.f32 %v3011, %v3015
    %v3026 = vadd.f32 %v3012, %v3016
    %v3027 = vadd.f32 %v3013, %v3015
    %v3028 = vadd.f32 %v3014, %v3016
    %3029 = vst [vmem:[#allocation10] sm:$0xff] %v3017
    %3030 = vst [vmem:[#allocation10 + $0x8] sm:$0xff] %v3018
    %3031 = vst [vmem:[#allocation10 + $0x10] sm:$0xff] %v3019
    %3032 = vst [vmem:[#allocation10 + $0x18] sm:$0xff] %v3020
    %3033 = vst [vmem:[#allocation10 + $0x20] sm:$0xff] %v3021
    %3034 = vst [vmem:[#allocation10 + $0x28] sm:$0xff] %v3022
    %3035 = vst [vmem:[#allocation10 + $0x30] sm:$0xff] %v3023
    %3036 = vst [vmem:[#allocation10 + $0x38] sm:$0xff] %v3024
    %3037 = vst [vmem:[#allocation11] sm:$0xff] %v3025
    %3038 = vst [vmem:[#allocation11 + $0x8] sm:$0xff] %v3026
    %3039 = vst [vmem:[#allocation11 + $0x10] sm:$0xff] %v3027
    %3040 = vst [vmem:[#allocation11 + $0x18] sm:$0xff] %v3028
    // Predicated region
    $region58: #{dtf_forward.1} parent=1 // pred_check
      _
    $region59: #{dtf_forward.1} parent=1 // pred_check_branch
      %3042 = sbr.rel (0) target = $region61
    $region60: #{dtf_forward.1} parent=1 // pred_region
      %3044 = vsyncadd [#allocation4], 0
      %s3045 = sshll.u32 [#allocation10], 4
      %s3046 = int_to_ptr.vmem [resolvable:$true] %s3045
      %s3047 = sshll.u32 %s10, 4
      %s3048 = int_to_ptr.hbm [resolvable:$true] %s3047
      %3053 = dma.vmem_to_hbm [thread:$0]  %s3046, 1024, %s3048, [#allocation4], 256, 256, 16
    $region61: #{dtf_forward.1} parent=1 // pred_fallthru
      _
    // Predicated region
    $region62: #{dtf_forward.1} parent=1 // pred_check
      _
    $region63: #{dtf_forward.1} parent=1 // pred_check_branch
      %3055 = sbr.rel (0) target = $region65
    $region64: #{dtf_forward.1} parent=1 // pred_region
      %3057 = vsyncadd [#allocation12], 0
      %s3058 = sshll.u32 [#allocation11], 4
      %s3059 = int_to_ptr.vmem [resolvable:$true] %s3058
      %s3060 = sshll.u32 %s11, 4
      %s3061 = int_to_ptr.hbm [resolvable:$true] %s3060
      %3066 = dma.vmem_to_hbm [thread:$0]  %s3059, 512, %s3061, [#allocation12], 256, 256, 16
    $region65: #{dtf_forward.1} parent=1 // pred_fallthru
      _
    // Predicated region
    $region66: #{dtf_forward.1} parent=1 // pred_check
      _
    $region67: #{dtf_forward.1} parent=1 // pred_check_branch
      %3068 = sbr.rel (0) target = $region69
    $region68: #{dtf_forward.1} parent=1 // pred_region
      %3070 = dma.done [#allocation4], 1024
    $region69: #{dtf_forward.1} parent=1 // pred_fallthru
      _
    // Predicated region
    $region70: #{dtf_forward.1} parent=1 // pred_check
      _
    $region71: #{dtf_forward.1} parent=1 // pred_check_branch
      %3072 = sbr.rel (0) target = $region73
    $region72: #{dtf_forward.1} parent=1 // pred_region
      %3074 = dma.done [#allocation12], 512
    $region73: #{dtf_forward.1} parent=1 // pred_fallthru
      _
    %3075 = vsyncpa [#allocation3], 1
    %3076 = vsyncpa [#allocation6], 1
    %3077 = vsyncpa [#allocation9], 1
    %3078 = vsyncpa [#allocation4], 1
    %3079 = vsyncpa [#allocation12], 1

</llo_original>
